<compile_context>
chip_gen: v6e
topology: v6e:2x2x1
jax: 0.10.0
libtpu: 0.0.40
codegen_flags: <defaults>
</compile_context>

<pallas_src>
import math
from functools import partial

import jax
import jax.numpy as jnp
import numpy as np
from jax.experimental import pallas as pl
from jax.experimental.pallas import tpu as pltpu

# ----- small test configuration (consistent with the module's forward) -------
VOCAB_SIZE = 32
EMBED_DIM = 32        # d_model
NUM_HEADS = 4
NUM_LAYERS = 2
MAX_SEQ_LEN = 16
SEQ_LEN = 8
BATCH = 2
OUTPUT_DIM = 4
FFN_DIM = 64          # TODO(synk): PyTorch default dim_feedforward=2048; kept small here.
LN_EPS = 1e-5


# =============================================================================
# Fused kernel
# =============================================================================
def _layer_norm(x, gamma, beta, eps=LN_EPS):
    mean = jnp.mean(x, axis=-1, keepdims=True)
    var = jnp.mean(jnp.square(x - mean), axis=-1, keepdims=True)
    return (x - mean) * jax.lax.rsqrt(var + eps) * gamma + beta


def _fused_forward_kernel(ids_ref, emb_ref, pos_ref,
                          qkv_w_ref, qkv_b_ref, wo_ref, dvec_ref,
                          w1_ref, b1_ref, w2_ref,
                          fc_w_ref, fc_b_ref,
                          o_ref, *, num_heads, num_layers):
    """Whole forward pass for one batch element.

    ids_ref   : VMEM (1, S, 1) int32     token ids for this batch element
    emb_ref   : VMEM (V, D)              embedding table
    pos_ref   : VMEM (S, D)              positional encoding
    qkv_w_ref : VMEM (L*3*H, D, dh)      per-head Q/K/V projection weights
    qkv_b_ref : VMEM (L*3*H, 1, dh)      per-head Q/K/V biases
    wo_ref    : VMEM (L*H, dh, D)        per-head rows of the output proj
    dvec_ref  : VMEM (L*6, 1, D)         [bo, ln1_g, ln1_b, b2, ln2_g, ln2_b]
    w1_ref    : VMEM (L, D, F), b1_ref (L, 1, F), w2_ref (L, F, D)
    fc_w_ref  : VMEM (D, O), fc_b_ref (1, O)
    o_ref     : VMEM (1, 1, O) output block
    """
    seq, d = pos_ref.shape
    vocab = emb_ref.shape[0]
    dh = d // num_heads
    scale = 1.0 / math.sqrt(dh)

    # ---- embedding gather as one-hot MXU matmul + positional add ----------
    ids_col = ids_ref[0]                                        # (S, 1) int32
    iota_v = jax.lax.broadcasted_iota(jnp.int32, (seq, vocab), 1)
    onehot = (iota_v == ids_col).astype(jnp.float32)            # (S, V)
    x = jnp.dot(onehot, emb_ref[...],
                preferred_element_type=jnp.float32) + pos_ref[...]

    # ---- encoder layers (post-norm; static unroll, L and H are tiny) ------
    for l in range(num_layers):
        attn = jnp.zeros((seq, d), jnp.float32)
        for h in range(num_heads):
            qi = (l * 3 + 0) * num_heads + h
            ki = (l * 3 + 1) * num_heads + h
            vi = (l * 3 + 2) * num_heads + h
            qh = jnp.dot(x, qkv_w_ref[qi],
                         preferred_element_type=jnp.float32) + qkv_b_ref[qi]
            kh = jnp.dot(x, qkv_w_ref[ki],
                         preferred_element_type=jnp.float32) + qkv_b_ref[ki]
            vh = jnp.dot(x, qkv_w_ref[vi],
                         preferred_element_type=jnp.float32) + qkv_b_ref[vi]
            # Contract on the last dim directly — no kh.T materialization.
            scores = jax.lax.dot_general(
                qh, kh, (((1,), (1,)), ((), ())),
                preferred_element_type=jnp.float32) * scale
            scores = scores - jnp.max(scores, axis=-1, keepdims=True)
            p = jnp.exp(scores)
            inv = pl.reciprocal(jnp.sum(p, axis=-1, keepdims=True), approx=True)
            p = p * inv
            head = jnp.dot(p, vh, preferred_element_type=jnp.float32)  # (S, dh)
            # concat-of-heads @ Wo rewritten as sum_h head_h @ Wo_rows_h.
            attn = attn + jnp.dot(head, wo_ref[l * num_heads + h],
                                  preferred_element_type=jnp.float32)
        attn = attn + dvec_ref[6 * l + 0]                       # + bo

        # Residual + LayerNorm 1 (dropout = inference no-op).
        y = _layer_norm(x + attn, dvec_ref[6 * l + 1], dvec_ref[6 * l + 2])

        # Feed-forward: Linear -> ReLU -> Linear, residual + LayerNorm 2.
        h1 = jnp.maximum(
            jnp.dot(y, w1_ref[l], preferred_element_type=jnp.float32)
            + b1_ref[l], 0.0)
        h2 = jnp.dot(h1, w2_ref[l],
                     preferred_element_type=jnp.float32) + dvec_ref[6 * l + 3]
        x = _layer_norm(y + h2, dvec_ref[6 * l + 4], dvec_ref[6 * l + 5])

    # ---- epilogue: mean over sequence + FC head ----------------------------
    pooled = jnp.sum(x, axis=0, keepdims=True) * (1.0 / seq)    # (1, D)
    out = jnp.dot(pooled, fc_w_ref[...],
                  preferred_element_type=jnp.float32) + fc_b_ref[...]
    o_ref[0] = out.astype(o_ref.dtype)


# =============================================================================
# Wrapper: pack / pre-slice weights at trace time, single pallas_call
# =============================================================================
def transformer_regressor_forward(params, ids, pos_enc):
    b, s = ids.shape
    emb = params["embedding"]
    v, d = emb.shape
    o = params["fc_w"].shape[1]
    num_layers = len(params["layers"])
    num_heads = NUM_HEADS
    dh = d // num_heads

    # Pre-slice per-head projection weights/biases outside the kernel so the
    # kernel never does width-dh lane slices of its activations.
    qkv_w, qkv_b, wo_rows, dvecs = [], [], [], []
    w1s, b1s, w2s = [], [], []
    for lp in params["layers"]:
        for name_w, name_b in (("wq", "bq"), ("wk", "bk"), ("wv", "bv")):
            w = lp[name_w]
            bias = lp[name_b][0]
            for h in range(num_heads):
                sl = slice(h * dh, (h + 1) * dh)
                qkv_w.append(w[:, sl])                  # (D, dh)
                qkv_b.append(bias[sl][None, :])         # (1, dh)
        for h in range(num_heads):
            wo_rows.append(lp["wo"][h * dh:(h + 1) * dh, :])   # (dh, D)
        dvecs += [lp["bo"], lp["ln1_g"], lp["ln1_b"],
                  lp["b2"], lp["ln2_g"], lp["ln2_b"]]          # each (1, D)
        w1s.append(lp["w1"])
        b1s.append(lp["b1"])
        w2s.append(lp["w2"])

    qkv_w = jnp.stack(qkv_w)        # (L*3*H, D, dh)
    qkv_b = jnp.stack(qkv_b)        # (L*3*H, 1, dh)
    wo_h = jnp.stack(wo_rows)       # (L*H, dh, D)
    dvec = jnp.stack(dvecs)         # (L*6, 1, D)
    w1 = jnp.stack(w1s)             # (L, D, F)
    b1 = jnp.stack(b1s)             # (L, 1, F)
    w2 = jnp.stack(w2s)             # (L, F, D)

    ids3 = ids.astype(jnp.int32).reshape(b, s, 1)
    pos = pos_enc[:s]

    def full_spec(arr):
        nd = arr.ndim
        return pl.BlockSpec(arr.shape, lambda i, _nd=nd: (0,) * _nd)

    weight_inputs = (emb, pos, qkv_w, qkv_b, wo_h, dvec, w1, b1, w2,
                     params["fc_w"], params["fc_b"])

    in_specs = [pl.BlockSpec((1, s, 1), lambda i: (i, 0, 0))]   # ids per batch
    in_specs += [full_spec(a) for a in weight_inputs]

    out = pl.pallas_call(
        partial(_fused_forward_kernel,
                num_heads=num_heads, num_layers=num_layers),
        out_shape=jax.ShapeDtypeStruct((b, 1, o), jnp.float32),
        grid=(b,),
        in_specs=in_specs,
        out_specs=pl.BlockSpec((1, 1, o), lambda i: (i, 0, 0)),
        compiler_params=pltpu.CompilerParams(
            dimension_semantics=("parallel",)),
    )(ids3, *weight_inputs)
    return out.reshape(b, o)


# =============================================================================
# Parameters, positional encoding, pure-JAX reference
# =============================================================================
def make_positional_encoding(d, max_len):
    position = jnp.arange(max_len, dtype=jnp.float32)[:, None]
    div_term = jnp.exp(jnp.arange(0, d, 2, dtype=jnp.float32)
                       * (-math.log(10000.0) / d))
    enc = jnp.zeros((max_len, d), dtype=jnp.float32)
    enc = enc.at[:, 0::2].set(jnp.sin(position * div_term))
    enc = enc.at[:, 1::2].set(jnp.cos(position * div_term))
    return enc


def init_params(key):
    keys = jax.random.split(key, 2 + NUM_LAYERS)
    d, f = EMBED_DIM, FFN_DIM

    def w(k, shape, fan_in):
        return (jax.random.normal(k, shape, jnp.float32)
                * (1.0 / math.sqrt(fan_in)))

    params = {
        "embedding": jax.random.normal(keys[0], (VOCAB_SIZE, d), jnp.float32),
        "fc_w": w(keys[1], (d, OUTPUT_DIM), d),
        "fc_b": jnp.zeros((1, OUTPUT_DIM), jnp.float32),
        "layers": [],
    }
    for l in range(NUM_LAYERS):
        lk = jax.random.split(keys[2 + l], 14)
        layer = dict(
            wq=w(lk[0], (d, d), d), bq=0.1 * jax.random.normal(lk[6], (1, d)),
            wk=w(lk[1], (d, d), d), bk=0.1 * jax.random.normal(lk[7], (1, d)),
            wv=w(lk[2], (d, d), d), bv=0.1 * jax.random.normal(lk[8], (1, d)),
            wo=w(lk[3], (d, d), d), bo=0.1 * jax.random.normal(lk[9], (1, d)),
            ln1_g=1.0 + 0.1 * jax.random.normal(lk[10], (1, d)),
            ln1_b=0.1 * jax.random.normal(lk[11], (1, d)),
            w1=w(lk[4], (d, f), d), b1=0.1 * jax.random.normal(lk[12], (1, f)),
            w2=w(lk[5], (f, d), f), b2=0.1 * jax.random.normal(lk[13], (1, d)),
            ln2_g=1.0 + 0.1 * jax.random.normal(lk[10], (1, d)),
            ln2_b=0.1 * jax.random.normal(lk[11], (1, d)),
        )
        params["layers"].append(layer)
    return params


def reference_forward(params, ids, pos_enc):
    """Pure-jnp reference implementation (no Pallas) for correctness checks."""
    s = ids.shape[1]
    x = params["embedding"][ids] + pos_enc[:s][None]
    dh = EMBED_DIM // NUM_HEADS
    for lp in params["layers"]:
        q = x @ lp["wq"] + lp["bq"][0]
        k = x @ lp["wk"] + lp["bk"][0]
        v = x @ lp["wv"] + lp["bv"][0]
        b, s_, d = q.shape
        qh = q.reshape(b, s_, NUM_HEADS, dh).transpose(0, 2, 1, 3)
        kh = k.reshape(b, s_, NUM_HEADS, dh).transpose(0, 2, 1, 3)
        vh = v.reshape(b, s_, NUM_HEADS, dh).transpose(0, 2, 1, 3)
        scores = jnp.einsum("bhqd,bhkd->bhqk", qh, kh) / math.sqrt(dh)
        p = jax.nn.softmax(scores, axis=-1)
        attn = (jnp.einsum("bhqk,bhkd->bhqd", p, vh)
                .transpose(0, 2, 1, 3).reshape(b, s_, d))
        attn = attn @ lp["wo"] + lp["bo"][0]

        def ln(t, g, bb):
            m = t.mean(-1, keepdims=True)
            var = jnp.mean(jnp.square(t - m), axis=-1, keepdims=True)
            return (t - m) * jax.lax.rsqrt(var + LN_EPS) * g + bb

        y = ln(x + attn, lp["ln1_g"][0], lp["ln1_b"][0])
        h1 = jax.nn.relu(y @ lp["w1"] + lp["b1"][0])
        h2 = h1 @ lp["w2"] + lp["b2"][0]
        x = ln(y + h2, lp["ln2_g"][0], lp["ln2_b"][0])
    pooled = x.mean(axis=1)
    return pooled @ params["fc_w"] + params["fc_b"][0]


# =============================================================================
# Main
# =============================================================================
if __name__ == "__main__":
    key = jax.random.PRNGKey(0)
    pkey, dkey = jax.random.split(key)

    params = init_params(pkey)
    pos_enc = make_positional_encoding(EMBED_DIM, MAX_SEQ_LEN)
    ids = jax.random.randint(dkey, (BATCH, SEQ_LEN), 0, VOCAB_SIZE,
                             dtype=jnp.int32)

    out = transformer_regressor_forward(params, ids, pos_enc)
    out = jax.block_until_ready(out)
    assert out.shape == (BATCH, OUTPUT_DIM), out.shape

    ref = reference_forward(params, ids, pos_enc)
    max_err = float(np.max(np.abs(np.asarray(out) - np.asarray(ref))))
    # Tolerance relaxed slightly (2e-4 -> 2e-3) because the softmax
    # normalization now uses the EUP approximate reciprocal.
    assert np.allclose(np.asarray(out), np.asarray(ref),
                       atol=2e-3, rtol=2e-3), f"max abs err {max_err}"

    print("KERNEL_OK")
</pallas_src>

<mosaic_0001>
module attributes {stable_mosaic.version = 11 : i64} {
  func.func @_fused_forward_kernel(%arg0: i32, %arg1: memref<1x8x1xi32, #tpu.memory_space<vmem>>, %arg2: memref<32x32xf32, #tpu.memory_space<vmem>>, %arg3: memref<8x32xf32, #tpu.memory_space<vmem>>, %arg4: memref<24x32x8xf32, #tpu.memory_space<vmem>>, %arg5: memref<24x1x8xf32, #tpu.memory_space<vmem>>, %arg6: memref<8x8x32xf32, #tpu.memory_space<vmem>>, %arg7: memref<12x1x32xf32, #tpu.memory_space<vmem>>, %arg8: memref<2x32x64xf32, #tpu.memory_space<vmem>>, %arg9: memref<2x1x64xf32, #tpu.memory_space<vmem>>, %arg10: memref<2x64x32xf32, #tpu.memory_space<vmem>>, %arg11: memref<32x4xf32, #tpu.memory_space<vmem>>, %arg12: memref<1x4xf32, #tpu.memory_space<vmem>>, %arg13: memref<1x1x4xf32, #tpu.memory_space<vmem>>) attributes {dimension_semantics = [#tpu.dimension_semantics<parallel>], iteration_bounds = array<i64: 2>, scalar_prefetch = 0 : i64, scratch_operands = 0 : i64, tpu.core_type = #tpu.core_type<tc>, window_params = [{transform_indices = @transform_0, window_bounds = array<i64: 1, 8, 1>}, {pipeline_mode = #tpu.pipeline_mode<synchronous>, transform_indices = @transform_1, window_bounds = array<i64: 32, 32>}, {pipeline_mode = #tpu.pipeline_mode<synchronous>, transform_indices = @transform_2, window_bounds = array<i64: 8, 32>}, {pipeline_mode = #tpu.pipeline_mode<synchronous>, transform_indices = @transform_3, window_bounds = array<i64: 24, 32, 8>}, {pipeline_mode = #tpu.pipeline_mode<synchronous>, transform_indices = @transform_4, window_bounds = array<i64: 24, 1, 8>}, {pipeline_mode = #tpu.pipeline_mode<synchronous>, transform_indices = @transform_5, window_bounds = array<i64: 8, 8, 32>}, {pipeline_mode = #tpu.pipeline_mode<synchronous>, transform_indices = @transform_6, window_bounds = array<i64: 12, 1, 32>}, {pipeline_mode = #tpu.pipeline_mode<synchronous>, transform_indices = @transform_7, window_bounds = array<i64: 2, 32, 64>}, {pipeline_mode = #tpu.pipeline_mode<synchronous>, transform_indices = @transform_8, window_bounds = array<i64: 2, 1, 64>}, {pipeline_mode = #tpu.pipeline_mode<synchronous>, transform_indices = @transform_9, window_bounds = array<i64: 2, 64, 32>}, {pipeline_mode = #tpu.pipeline_mode<synchronous>, transform_indices = @transform_10, window_bounds = array<i64: 32, 4>}, {pipeline_mode = #tpu.pipeline_mode<synchronous>, transform_indices = @transform_11, window_bounds = array<i64: 1, 4>}, {transform_indices = @transform_12, window_bounds = array<i64: 1, 1, 4>}]} {
    %c0 = arith.constant 0 : index
    %c0_0 = arith.constant 0 : index
    %c0_1 = arith.constant 0 : index
    %0 = vector.load %arg1[%c0, %c0_0, %c0_1] : memref<1x8x1xi32, #tpu.memory_space<vmem>>, vector<1x8x1xi32>
    %1 = vector.shape_cast %0 : vector<1x8x1xi32> to vector<8x1xi32>
    %2 = tpu.iota {dimensions = array<i32: 1>} : vector<8x32xi32>
    %3 = vector.broadcast %1 : vector<8x1xi32> to vector<8x32xi32>
    %4 = arith.cmpi eq, %2, %3 : vector<8x32xi32>
    %5 = arith.extui %4 : vector<8x32xi1> to vector<8x32xi32>
    %6 = arith.sitofp %5 : vector<8x32xi32> to vector<8x32xf32>
    %c0_2 = arith.constant 0 : index
    %c0_3 = arith.constant 0 : index
    %7 = vector.load %arg2[%c0_2, %c0_3] : memref<32x32xf32, #tpu.memory_space<vmem>>, vector<32x32xf32>
    %cst = arith.constant dense<0.000000e+00> : vector<8x32xf32>
    %8 = tpu.matmul %6, %7, %cst {dimension_numbers = #tpu.dot_dimension_numbers<[1], [0], [0], [1], [0, 0, 1, 1], [], []>} : vector<8x32xf32>, vector<32x32xf32>, vector<8x32xf32> -> vector<8x32xf32>
    %c0_4 = arith.constant 0 : index
    %c0_5 = arith.constant 0 : index
    %9 = vector.load %arg3[%c0_4, %c0_5] : memref<8x32xf32, #tpu.memory_space<vmem>>, vector<8x32xf32>
    %10 = arith.addf %8, %9 : vector<8x32xf32>
    %cst_6 = arith.constant 0.000000e+00 : f32
    %11 = vector.broadcast %cst_6 : f32 to vector<8x32xf32>
    %c0_7 = arith.constant 0 : index
    %c0_8 = arith.constant 0 : index
    %c0_9 = arith.constant 0 : index
    %12 = vector.load %arg4[%c0_7, %c0_8, %c0_9] : memref<24x32x8xf32, #tpu.memory_space<vmem>>, vector<1x32x8xf32>
    %13 = vector.shape_cast %12 : vector<1x32x8xf32> to vector<32x8xf32>
    %cst_10 = arith.constant dense<0.000000e+00> : vector<8x8xf32>
    %14 = tpu.matmul %10, %13, %cst_10 {dimension_numbers = #tpu.dot_dimension_numbers<[1], [0], [0], [1], [0, 0, 1, 1], [], []>} : vector<8x32xf32>, vector<32x8xf32>, vector<8x8xf32> -> vector<8x8xf32>
    %c0_11 = arith.constant 0 : index
    %c0_12 = arith.constant 0 : index
    %c0_13 = arith.constant 0 : index
    %15 = vector.load %arg5[%c0_11, %c0_12, %c0_13] : memref<24x1x8xf32, #tpu.memory_space<vmem>>, vector<1x1x8xf32>
    %16 = vector.shape_cast %15 : vector<1x1x8xf32> to vector<1x8xf32>
    %17 = vector.broadcast %16 : vector<1x8xf32> to vector<8x8xf32>
    %18 = arith.addf %14, %17 : vector<8x8xf32>
    %c4 = arith.constant 4 : index
    %c0_14 = arith.constant 0 : index
    %c0_15 = arith.constant 0 : index
    %19 = vector.load %arg4[%c4, %c0_14, %c0_15] : memref<24x32x8xf32, #tpu.memory_space<vmem>>, vector<1x32x8xf32>
    %20 = vector.shape_cast %19 : vector<1x32x8xf32> to vector<32x8xf32>
    %cst_16 = arith.constant dense<0.000000e+00> : vector<8x8xf32>
    %21 = tpu.matmul %10, %20, %cst_16 {dimension_numbers = #tpu.dot_dimension_numbers<[1], [0], [0], [1], [0, 0, 1, 1], [], []>} : vector<8x32xf32>, vector<32x8xf32>, vector<8x8xf32> -> vector<8x8xf32>
    %c4_17 = arith.constant 4 : index
    %c0_18 = arith.constant 0 : index
    %c0_19 = arith.constant 0 : index
    %22 = vector.load %arg5[%c4_17, %c0_18, %c0_19] : memref<24x1x8xf32, #tpu.memory_space<vmem>>, vector<1x1x8xf32>
    %23 = vector.shape_cast %22 : vector<1x1x8xf32> to vector<1x8xf32>
    %24 = vector.broadcast %23 : vector<1x8xf32> to vector<8x8xf32>
    %25 = arith.addf %21, %24 : vector<8x8xf32>
    %c8 = arith.constant 8 : index
    %c0_20 = arith.constant 0 : index
    %c0_21 = arith.constant 0 : index
    %26 = vector.load %arg4[%c8, %c0_20, %c0_21] : memref<24x32x8xf32, #tpu.memory_space<vmem>>, vector<1x32x8xf32>
    %27 = vector.shape_cast %26 : vector<1x32x8xf32> to vector<32x8xf32>
    %cst_22 = arith.constant dense<0.000000e+00> : vector<8x8xf32>
    %28 = tpu.matmul %10, %27, %cst_22 {dimension_numbers = #tpu.dot_dimension_numbers<[1], [0], [0], [1], [0, 0, 1, 1], [], []>} : vector<8x32xf32>, vector<32x8xf32>, vector<8x8xf32> -> vector<8x8xf32>
    %c8_23 = arith.constant 8 : index
    %c0_24 = arith.constant 0 : index
    %c0_25 = arith.constant 0 : index
    %29 = vector.load %arg5[%c8_23, %c0_24, %c0_25] : memref<24x1x8xf32, #tpu.memory_space<vmem>>, vector<1x1x8xf32>
    %30 = vector.shape_cast %29 : vector<1x1x8xf32> to vector<1x8xf32>
    %31 = vector.broadcast %30 : vector<1x8xf32> to vector<8x8xf32>
    %32 = arith.addf %28, %31 : vector<8x8xf32>
    %cst_26 = arith.constant dense<0.000000e+00> : vector<8x8xf32>
    %33 = tpu.matmul %18, %25, %cst_26 {dimension_numbers = #tpu.dot_dimension_numbers<[1], [1], [0], [0], [0, 0, 1, 0], [], []>} : vector<8x8xf32>, vector<8x8xf32>, vector<8x8xf32> -> vector<8x8xf32>
    %cst_27 = arith.constant 0.353553385 : f32
    %34 = vector.broadcast %cst_27 : f32 to vector<8x8xf32>
    %35 = arith.mulf %33, %34 : vector<8x8xf32>
    %cst_28 = arith.constant dense<0xFF800000> : vector<8xf32>
    %36 = vector.multi_reduction <maximumf>, %35, %cst_28 [1] : vector<8x8xf32> to vector<8xf32>
    %37 = vector.shape_cast %36 : vector<8xf32> to vector<8x1xf32>
    %38 = vector.broadcast %37 : vector<8x1xf32> to vector<8x8xf32>
    %39 = arith.subf %35, %38 : vector<8x8xf32>
    %40 = math.exp %39 : vector<8x8xf32>
    %cst_29 = arith.constant dense<0.000000e+00> : vector<8xf32>
    %41 = vector.multi_reduction <add>, %40, %cst_29 [1] : vector<8x8xf32> to vector<8xf32>
    %42 = vector.shape_cast %41 : vector<8xf32> to vector<8x1xf32>
    %43 = tpu.reciprocal %42 {approx = true} : vector<8x1xf32> -> vector<8x1xf32>
    %44 = vector.broadcast %43 : vector<8x1xf32> to vector<8x8xf32>
    %45 = arith.mulf %40, %44 : vector<8x8xf32>
    %cst_30 = arith.constant dense<0.000000e+00> : vector<8x8xf32>
    %46 = tpu.matmul %45, %32, %cst_30 {dimension_numbers = #tpu.dot_dimension_numbers<[1], [0], [0], [1], [0, 0, 1, 1], [], []>} : vector<8x8xf32>, vector<8x8xf32>, vector<8x8xf32> -> vector<8x8xf32>
    %c0_31 = arith.constant 0 : index
    %c0_32 = arith.constant 0 : index
    %c0_33 = arith.constant 0 : index
    %47 = vector.load %arg6[%c0_31, %c0_32, %c0_33] : memref<8x8x32xf32, #tpu.memory_space<vmem>>, vector<1x8x32xf32>
    %48 = vector.shape_cast %47 : vector<1x8x32xf32> to vector<8x32xf32>
    %cst_34 = arith.constant dense<0.000000e+00> : vector<8x32xf32>
    %49 = tpu.matmul %46, %48, %cst_34 {dimension_numbers = #tpu.dot_dimension_numbers<[1], [0], [0], [1], [0, 0, 1, 1], [], []>} : vector<8x8xf32>, vector<8x32xf32>, vector<8x32xf32> -> vector<8x32xf32>
    %50 = arith.addf %11, %49 : vector<8x32xf32>
    %c1 = arith.constant 1 : index
    %c0_35 = arith.constant 0 : index
    %c0_36 = arith.constant 0 : index
    %51 = vector.load %arg4[%c1, %c0_35, %c0_36] : memref<24x32x8xf32, #tpu.memory_space<vmem>>, vector<1x32x8xf32>
    %52 = vector.shape_cast %51 : vector<1x32x8xf32> to vector<32x8xf32>
    %cst_37 = arith.constant dense<0.000000e+00> : vector<8x8xf32>
    %53 = tpu.matmul %10, %52, %cst_37 {dimension_numbers = #tpu.dot_dimension_numbers<[1], [0], [0], [1], [0, 0, 1, 1], [], []>} : vector<8x32xf32>, vector<32x8xf32>, vector<8x8xf32> -> vector<8x8xf32>
    %c1_38 = arith.constant 1 : index
    %c0_39 = arith.constant 0 : index
    %c0_40 = arith.constant 0 : index
    %54 = vector.load %arg5[%c1_38, %c0_39, %c0_40] : memref<24x1x8xf32, #tpu.memory_space<vmem>>, vector<1x1x8xf32>
    %55 = vector.shape_cast %54 : vector<1x1x8xf32> to vector<1x8xf32>
    %56 = vector.broadcast %55 : vector<1x8xf32> to vector<8x8xf32>
    %57 = arith.addf %53, %56 : vector<8x8xf32>
    %c5 = arith.constant 5 : index
    %c0_41 = arith.constant 0 : index
    %c0_42 = arith.constant 0 : index
    %58 = vector.load %arg4[%c5, %c0_41, %c0_42] : memref<24x32x8xf32, #tpu.memory_space<vmem>>, vector<1x32x8xf32>
    %59 = vector.shape_cast %58 : vector<1x32x8xf32> to vector<32x8xf32>
    %cst_43 = arith.constant dense<0.000000e+00> : vector<8x8xf32>
    %60 = tpu.matmul %10, %59, %cst_43 {dimension_numbers = #tpu.dot_dimension_numbers<[1], [0], [0], [1], [0, 0, 1, 1], [], []>} : vector<8x32xf32>, vector<32x8xf32>, vector<8x8xf32> -> vector<8x8xf32>
    %c5_44 = arith.constant 5 : index
    %c0_45 = arith.constant 0 : index
    %c0_46 = arith.constant 0 : index
    %61 = vector.load %arg5[%c5_44, %c0_45, %c0_46] : memref<24x1x8xf32, #tpu.memory_space<vmem>>, vector<1x1x8xf32>
    %62 = vector.shape_cast %61 : vector<1x1x8xf32> to vector<1x8xf32>
    %63 = vector.broadcast %62 : vector<1x8xf32> to vector<8x8xf32>
    %64 = arith.addf %60, %63 : vector<8x8xf32>
    %c9 = arith.constant 9 : index
    %c0_47 = arith.constant 0 : index
    %c0_48 = arith.constant 0 : index
    %65 = vector.load %arg4[%c9, %c0_47, %c0_48] : memref<24x32x8xf32, #tpu.memory_space<vmem>>, vector<1x32x8xf32>
    %66 = vector.shape_cast %65 : vector<1x32x8xf32> to vector<32x8xf32>
    %cst_49 = arith.constant dense<0.000000e+00> : vector<8x8xf32>
    %67 = tpu.matmul %10, %66, %cst_49 {dimension_numbers = #tpu.dot_dimension_numbers<[1], [0], [0], [1], [0, 0, 1, 1], [], []>} : vector<8x32xf32>, vector<32x8xf32>, vector<8x8xf32> -> vector<8x8xf32>
    %c9_50 = arith.constant 9 : index
    %c0_51 = arith.constant 0 : index
    %c0_52 = arith.constant 0 : index
    %68 = vector.load %arg5[%c9_50, %c0_51, %c0_52] : memref<24x1x8xf32, #tpu.memory_space<vmem>>, vector<1x1x8xf32>
    %69 = vector.shape_cast %68 : vector<1x1x8xf32> to vector<1x8xf32>
    %70 = vector.broadcast %69 : vector<1x8xf32> to vector<8x8xf32>
    %71 = arith.addf %67, %70 : vector<8x8xf32>
    %cst_53 = arith.constant dense<0.000000e+00> : vector<8x8xf32>
    %72 = tpu.matmul %57, %64, %cst_53 {dimension_numbers = #tpu.dot_dimension_numbers<[1], [1], [0], [0], [0, 0, 1, 0], [], []>} : vector<8x8xf32>, vector<8x8xf32>, vector<8x8xf32> -> vector<8x8xf32>
    %cst_54 = arith.constant 0.353553385 : f32
    %73 = vector.broadcast %cst_54 : f32 to vector<8x8xf32>
    %74 = arith.mulf %72, %73 : vector<8x8xf32>
    %cst_55 = arith.constant dense<0xFF800000> : vector<8xf32>
    %75 = vector.multi_reduction <maximumf>, %74, %cst_55 [1] : vector<8x8xf32> to vector<8xf32>
    %76 = vector.shape_cast %75 : vector<8xf32> to vector<8x1xf32>
    %77 = vector.broadcast %76 : vector<8x1xf32> to vector<8x8xf32>
    %78 = arith.subf %74, %77 : vector<8x8xf32>
    %79 = math.exp %78 : vector<8x8xf32>
    %cst_56 = arith.constant dense<0.000000e+00> : vector<8xf32>
    %80 = vector.multi_reduction <add>, %79, %cst_56 [1] : vector<8x8xf32> to vector<8xf32>
    %81 = vector.shape_cast %80 : vector<8xf32> to vector<8x1xf32>
    %82 = tpu.reciprocal %81 {approx = true} : vector<8x1xf32> -> vector<8x1xf32>
    %83 = vector.broadcast %82 : vector<8x1xf32> to vector<8x8xf32>
    %84 = arith.mulf %79, %83 : vector<8x8xf32>
    %cst_57 = arith.constant dense<0.000000e+00> : vector<8x8xf32>
    %85 = tpu.matmul %84, %71, %cst_57 {dimension_numbers = #tpu.dot_dimension_numbers<[1], [0], [0], [1], [0, 0, 1, 1], [], []>} : vector<8x8xf32>, vector<8x8xf32>, vector<8x8xf32> -> vector<8x8xf32>
    %c1_58 = arith.constant 1 : index
    %c0_59 = arith.constant 0 : index
    %c0_60 = arith.constant 0 : index
    %86 = vector.load %arg6[%c1_58, %c0_59, %c0_60] : memref<8x8x32xf32, #tpu.memory_space<vmem>>, vector<1x8x32xf32>
    %87 = vector.shape_cast %86 : vector<1x8x32xf32> to vector<8x32xf32>
    %cst_61 = arith.constant dense<0.000000e+00> : vector<8x32xf32>
    %88 = tpu.matmul %85, %87, %cst_61 {dimension_numbers = #tpu.dot_dimension_numbers<[1], [0], [0], [1], [0, 0, 1, 1], [], []>} : vector<8x8xf32>, vector<8x32xf32>, vector<8x32xf32> -> vector<8x32xf32>
    %89 = arith.addf %50, %88 : vector<8x32xf32>
    %c2 = arith.constant 2 : index
    %c0_62 = arith.constant 0 : index
    %c0_63 = arith.constant 0 : index
    %90 = vector.load %arg4[%c2, %c0_62, %c0_63] : memref<24x32x8xf32, #tpu.memory_space<vmem>>, vector<1x32x8xf32>
    %91 = vector.shape_cast %90 : vector<1x32x8xf32> to vector<32x8xf32>
    %cst_64 = arith.constant dense<0.000000e+00> : vector<8x8xf32>
    %92 = tpu.matmul %10, %91, %cst_64 {dimension_numbers = #tpu.dot_dimension_numbers<[1], [0], [0], [1], [0, 0, 1, 1], [], []>} : vector<8x32xf32>, vector<32x8xf32>, vector<8x8xf32> -> vector<8x8xf32>
    %c2_65 = arith.constant 2 : index
    %c0_66 = arith.constant 0 : index
    %c0_67 = arith.constant 0 : index
    %93 = vector.load %arg5[%c2_65, %c0_66, %c0_67] : memref<24x1x8xf32, #tpu.memory_space<vmem>>, vector<1x1x8xf32>
    %94 = vector.shape_cast %93 : vector<1x1x8xf32> to vector<1x8xf32>
    %95 = vector.broadcast %94 : vector<1x8xf32> to vector<8x8xf32>
    %96 = arith.addf %92, %95 : vector<8x8xf32>
    %c6 = arith.constant 6 : index
    %c0_68 = arith.constant 0 : index
    %c0_69 = arith.constant 0 : index
    %97 = vector.load %arg4[%c6, %c0_68, %c0_69] : memref<24x32x8xf32, #tpu.memory_space<vmem>>, vector<1x32x8xf32>
    %98 = vector.shape_cast %97 : vector<1x32x8xf32> to vector<32x8xf32>
    %cst_70 = arith.constant dense<0.000000e+00> : vector<8x8xf32>
    %99 = tpu.matmul %10, %98, %cst_70 {dimension_numbers = #tpu.dot_dimension_numbers<[1], [0], [0], [1], [0, 0, 1, 1], [], []>} : vector<8x32xf32>, vector<32x8xf32>, vector<8x8xf32> -> vector<8x8xf32>
    %c6_71 = arith.constant 6 : index
    %c0_72 = arith.constant 0 : index
    %c0_73 = arith.constant 0 : index
    %100 = vector.load %arg5[%c6_71, %c0_72, %c0_73] : memref<24x1x8xf32, #tpu.memory_space<vmem>>, vector<1x1x8xf32>
    %101 = vector.shape_cast %100 : vector<1x1x8xf32> to vector<1x8xf32>
    %102 = vector.broadcast %101 : vector<1x8xf32> to vector<8x8xf32>
    %103 = arith.addf %99, %102 : vector<8x8xf32>
    %c10 = arith.constant 10 : index
    %c0_74 = arith.constant 0 : index
    %c0_75 = arith.constant 0 : index
    %104 = vector.load %arg4[%c10, %c0_74, %c0_75] : memref<24x32x8xf32, #tpu.memory_space<vmem>>, vector<1x32x8xf32>
    %105 = vector.shape_cast %104 : vector<1x32x8xf32> to vector<32x8xf32>
    %cst_76 = arith.constant dense<0.000000e+00> : vector<8x8xf32>
    %106 = tpu.matmul %10, %105, %cst_76 {dimension_numbers = #tpu.dot_dimension_numbers<[1], [0], [0], [1], [0, 0, 1, 1], [], []>} : vector<8x32xf32>, vector<32x8xf32>, vector<8x8xf32> -> vector<8x8xf32>
    %c10_77 = arith.constant 10 : index
    %c0_78 = arith.constant 0 : index
    %c0_79 = arith.constant 0 : index
    %107 = vector.load %arg5[%c10_77, %c0_78, %c0_79] : memref<24x1x8xf32, #tpu.memory_space<vmem>>, vector<1x1x8xf32>
    %108 = vector.shape_cast %107 : vector<1x1x8xf32> to vector<1x8xf32>
    %109 = vector.broadcast %108 : vector<1x8xf32> to vector<8x8xf32>
    %110 = arith.addf %106, %109 : vector<8x8xf32>
    %cst_80 = arith.constant dense<0.000000e+00> : vector<8x8xf32>
    %111 = tpu.matmul %96, %103, %cst_80 {dimension_numbers = #tpu.dot_dimension_numbers<[1], [1], [0], [0], [0, 0, 1, 0], [], []>} : vector<8x8xf32>, vector<8x8xf32>, vector<8x8xf32> -> vector<8x8xf32>
    %cst_81 = arith.constant 0.353553385 : f32
    %112 = vector.broadcast %cst_81 : f32 to vector<8x8xf32>
    %113 = arith.mulf %111, %112 : vector<8x8xf32>
    %cst_82 = arith.constant dense<0xFF800000> : vector<8xf32>
    %114 = vector.multi_reduction <maximumf>, %113, %cst_82 [1] : vector<8x8xf32> to vector<8xf32>
    %115 = vector.shape_cast %114 : vector<8xf32> to vector<8x1xf32>
    %116 = vector.broadcast %115 : vector<8x1xf32> to vector<8x8xf32>
    %117 = arith.subf %113, %116 : vector<8x8xf32>
    %118 = math.exp %117 : vector<8x8xf32>
    %cst_83 = arith.constant dense<0.000000e+00> : vector<8xf32>
    %119 = vector.multi_reduction <add>, %118, %cst_83 [1] : vector<8x8xf32> to vector<8xf32>
    %120 = vector.shape_cast %119 : vector<8xf32> to vector<8x1xf32>
    %121 = tpu.reciprocal %120 {approx = true} : vector<8x1xf32> -> vector<8x1xf32>
    %122 = vector.broadcast %121 : vector<8x1xf32> to vector<8x8xf32>
    %123 = arith.mulf %118, %122 : vector<8x8xf32>
    %cst_84 = arith.constant dense<0.000000e+00> : vector<8x8xf32>
    %124 = tpu.matmul %123, %110, %cst_84 {dimension_numbers = #tpu.dot_dimension_numbers<[1], [0], [0], [1], [0, 0, 1, 1], [], []>} : vector<8x8xf32>, vector<8x8xf32>, vector<8x8xf32> -> vector<8x8xf32>
    %c2_85 = arith.constant 2 : index
    %c0_86 = arith.constant 0 : index
    %c0_87 = arith.constant 0 : index
    %125 = vector.load %arg6[%c2_85, %c0_86, %c0_87] : memref<8x8x32xf32, #tpu.memory_space<vmem>>, vector<1x8x32xf32>
    %126 = vector.shape_cast %125 : vector<1x8x32xf32> to vector<8x32xf32>
    %cst_88 = arith.constant dense<0.000000e+00> : vector<8x32xf32>
    %127 = tpu.matmul %124, %126, %cst_88 {dimension_numbers = #tpu.dot_dimension_numbers<[1], [0], [0], [1], [0, 0, 1, 1], [], []>} : vector<8x8xf32>, vector<8x32xf32>, vector<8x32xf32> -> vector<8x32xf32>
    %128 = arith.addf %89, %127 : vector<8x32xf32>
    %c3 = arith.constant 3 : index
    %c0_89 = arith.constant 0 : index
    %c0_90 = arith.constant 0 : index
    %129 = vector.load %arg4[%c3, %c0_89, %c0_90] : memref<24x32x8xf32, #tpu.memory_space<vmem>>, vector<1x32x8xf32>
    %130 = vector.shape_cast %129 : vector<1x32x8xf32> to vector<32x8xf32>
    %cst_91 = arith.constant dense<0.000000e+00> : vector<8x8xf32>
    %131 = tpu.matmul %10, %130, %cst_91 {dimension_numbers = #tpu.dot_dimension_numbers<[1], [0], [0], [1], [0, 0, 1, 1], [], []>} : vector<8x32xf32>, vector<32x8xf32>, vector<8x8xf32> -> vector<8x8xf32>
    %c3_92 = arith.constant 3 : index
    %c0_93 = arith.constant 0 : index
    %c0_94 = arith.constant 0 : index
    %132 = vector.load %arg5[%c3_92, %c0_93, %c0_94] : memref<24x1x8xf32, #tpu.memory_space<vmem>>, vector<1x1x8xf32>
    %133 = vector.shape_cast %132 : vector<1x1x8xf32> to vector<1x8xf32>
    %134 = vector.broadcast %133 : vector<1x8xf32> to vector<8x8xf32>
    %135 = arith.addf %131, %134 : vector<8x8xf32>
    %c7 = arith.constant 7 : index
    %c0_95 = arith.constant 0 : index
    %c0_96 = arith.constant 0 : index
    %136 = vector.load %arg4[%c7, %c0_95, %c0_96] : memref<24x32x8xf32, #tpu.memory_space<vmem>>, vector<1x32x8xf32>
    %137 = vector.shape_cast %136 : vector<1x32x8xf32> to vector<32x8xf32>
    %cst_97 = arith.constant dense<0.000000e+00> : vector<8x8xf32>
    %138 = tpu.matmul %10, %137, %cst_97 {dimension_numbers = #tpu.dot_dimension_numbers<[1], [0], [0], [1], [0, 0, 1, 1], [], []>} : vector<8x32xf32>, vector<32x8xf32>, vector<8x8xf32> -> vector<8x8xf32>
    %c7_98 = arith.constant 7 : index
    %c0_99 = arith.constant 0 : index
    %c0_100 = arith.constant 0 : index
    %139 = vector.load %arg5[%c7_98, %c0_99, %c0_100] : memref<24x1x8xf32, #tpu.memory_space<vmem>>, vector<1x1x8xf32>
    %140 = vector.shape_cast %139 : vector<1x1x8xf32> to vector<1x8xf32>
    %141 = vector.broadcast %140 : vector<1x8xf32> to vector<8x8xf32>
    %142 = arith.addf %138, %141 : vector<8x8xf32>
    %c11 = arith.constant 11 : index
    %c0_101 = arith.constant 0 : index
    %c0_102 = arith.constant 0 : index
    %143 = vector.load %arg4[%c11, %c0_101, %c0_102] : memref<24x32x8xf32, #tpu.memory_space<vmem>>, vector<1x32x8xf32>
    %144 = vector.shape_cast %143 : vector<1x32x8xf32> to vector<32x8xf32>
    %cst_103 = arith.constant dense<0.000000e+00> : vector<8x8xf32>
    %145 = tpu.matmul %10, %144, %cst_103 {dimension_numbers = #tpu.dot_dimension_numbers<[1], [0], [0], [1], [0, 0, 1, 1], [], []>} : vector<8x32xf32>, vector<32x8xf32>, vector<8x8xf32> -> vector<8x8xf32>
    %c11_104 = arith.constant 11 : index
    %c0_105 = arith.constant 0 : index
    %c0_106 = arith.constant 0 : index
    %146 = vector.load %arg5[%c11_104, %c0_105, %c0_106] : memref<24x1x8xf32, #tpu.memory_space<vmem>>, vector<1x1x8xf32>
    %147 = vector.shape_cast %146 : vector<1x1x8xf32> to vector<1x8xf32>
    %148 = vector.broadcast %147 : vector<1x8xf32> to vector<8x8xf32>
    %149 = arith.addf %145, %148 : vector<8x8xf32>
    %cst_107 = arith.constant dense<0.000000e+00> : vector<8x8xf32>
    %150 = tpu.matmul %135, %142, %cst_107 {dimension_numbers = #tpu.dot_dimension_numbers<[1], [1], [0], [0], [0, 0, 1, 0], [], []>} : vector<8x8xf32>, vector<8x8xf32>, vector<8x8xf32> -> vector<8x8xf32>
    %cst_108 = arith.constant 0.353553385 : f32
    %151 = vector.broadcast %cst_108 : f32 to vector<8x8xf32>
    %152 = arith.mulf %150, %151 : vector<8x8xf32>
    %cst_109 = arith.constant dense<0xFF800000> : vector<8xf32>
    %153 = vector.multi_reduction <maximumf>, %152, %cst_109 [1] : vector<8x8xf32> to vector<8xf32>
    %154 = vector.shape_cast %153 : vector<8xf32> to vector<8x1xf32>
    %155 = vector.broadcast %154 : vector<8x1xf32> to vector<8x8xf32>
    %156 = arith.subf %152, %155 : vector<8x8xf32>
    %157 = math.exp %156 : vector<8x8xf32>
    %cst_110 = arith.constant dense<0.000000e+00> : vector<8xf32>
    %158 = vector.multi_reduction <add>, %157, %cst_110 [1] : vector<8x8xf32> to vector<8xf32>
    %159 = vector.shape_cast %158 : vector<8xf32> to vector<8x1xf32>
    %160 = tpu.reciprocal %159 {approx = true} : vector<8x1xf32> -> vector<8x1xf32>
    %161 = vector.broadcast %160 : vector<8x1xf32> to vector<8x8xf32>
    %162 = arith.mulf %157, %161 : vector<8x8xf32>
    %cst_111 = arith.constant dense<0.000000e+00> : vector<8x8xf32>
    %163 = tpu.matmul %162, %149, %cst_111 {dimension_numbers = #tpu.dot_dimension_numbers<[1], [0], [0], [1], [0, 0, 1, 1], [], []>} : vector<8x8xf32>, vector<8x8xf32>, vector<8x8xf32> -> vector<8x8xf32>
    %c3_112 = arith.constant 3 : index
    %c0_113 = arith.constant 0 : index
    %c0_114 = arith.constant 0 : index
    %164 = vector.load %arg6[%c3_112, %c0_113, %c0_114] : memref<8x8x32xf32, #tpu.memory_space<vmem>>, vector<1x8x32xf32>
    %165 = vector.shape_cast %164 : vector<1x8x32xf32> to vector<8x32xf32>
    %cst_115 = arith.constant dense<0.000000e+00> : vector<8x32xf32>
    %166 = tpu.matmul %163, %165, %cst_115 {dimension_numbers = #tpu.dot_dimension_numbers<[1], [0], [0], [1], [0, 0, 1, 1], [], []>} : vector<8x8xf32>, vector<8x32xf32>, vector<8x32xf32> -> vector<8x32xf32>
    %167 = arith.addf %128, %166 : vector<8x32xf32>
    %c0_116 = arith.constant 0 : index
    %c0_117 = arith.constant 0 : index
    %c0_118 = arith.constant 0 : index
    %168 = vector.load %arg7[%c0_116, %c0_117, %c0_118] : memref<12x1x32xf32, #tpu.memory_space<vmem>>, vector<1x1x32xf32>
    %169 = vector.shape_cast %168 : vector<1x1x32xf32> to vector<1x32xf32>
    %170 = vector.broadcast %169 : vector<1x32xf32> to vector<8x32xf32>
    %171 = arith.addf %167, %170 : vector<8x32xf32>
    %172 = arith.addf %10, %171 : vector<8x32xf32>
    %c1_119 = arith.constant 1 : index
    %c0_120 = arith.constant 0 : index
    %c0_121 = arith.constant 0 : index
    %173 = vector.load %arg7[%c1_119, %c0_120, %c0_121] : memref<12x1x32xf32, #tpu.memory_space<vmem>>, vector<1x1x32xf32>
    %174 = vector.shape_cast %173 : vector<1x1x32xf32> to vector<1x32xf32>
    %c2_122 = arith.constant 2 : index
    %c0_123 = arith.constant 0 : index
    %c0_124 = arith.constant 0 : index
    %175 = vector.load %arg7[%c2_122, %c0_123, %c0_124] : memref<12x1x32xf32, #tpu.memory_space<vmem>>, vector<1x1x32xf32>
    %176 = vector.shape_cast %175 : vector<1x1x32xf32> to vector<1x32xf32>
    %cst_125 = arith.constant dense<0.000000e+00> : vector<8xf32>
    %177 = vector.multi_reduction <add>, %172, %cst_125 [1] : vector<8x32xf32> to vector<8xf32>
    %178 = vector.shape_cast %177 : vector<8xf32> to vector<8x1xf32>
    %cst_126 = arith.constant 3.200000e+01 : f32
    %179 = vector.broadcast %cst_126 : f32 to vector<8x1xf32>
    %180 = arith.divf %178, %179 : vector<8x1xf32>
    %181 = vector.broadcast %180 : vector<8x1xf32> to vector<8x32xf32>
    %182 = arith.subf %172, %181 : vector<8x32xf32>
    %183 = arith.mulf %182, %182 : vector<8x32xf32>
    %cst_127 = arith.constant dense<0.000000e+00> : vector<8xf32>
    %184 = vector.multi_reduction <add>, %183, %cst_127 [1] : vector<8x32xf32> to vector<8xf32>
    %185 = vector.shape_cast %184 : vector<8xf32> to vector<8x1xf32>
    %cst_128 = arith.constant 3.200000e+01 : f32
    %186 = vector.broadcast %cst_128 : f32 to vector<8x1xf32>
    %187 = arith.divf %185, %186 : vector<8x1xf32>
    %188 = vector.broadcast %180 : vector<8x1xf32> to vector<8x32xf32>
    %189 = arith.subf %172, %188 : vector<8x32xf32>
    %cst_129 = arith.constant 9.99999974E-6 : f32
    %190 = vector.broadcast %cst_129 : f32 to vector<8x1xf32>
    %191 = arith.addf %187, %190 : vector<8x1xf32>
    %192 = math.rsqrt %191 : vector<8x1xf32>
    %193 = vector.broadcast %192 : vector<8x1xf32> to vector<8x32xf32>
    %194 = arith.mulf %189, %193 : vector<8x32xf32>
    %195 = vector.broadcast %174 : vector<1x32xf32> to vector<8x32xf32>
    %196 = arith.mulf %194, %195 : vector<8x32xf32>
    %197 = vector.broadcast %176 : vector<1x32xf32> to vector<8x32xf32>
    %198 = arith.addf %196, %197 : vector<8x32xf32>
    %c0_130 = arith.constant 0 : index
    %c0_131 = arith.constant 0 : index
    %c0_132 = arith.constant 0 : index
    %199 = vector.load %arg8[%c0_130, %c0_131, %c0_132] : memref<2x32x64xf32, #tpu.memory_space<vmem>>, vector<1x32x64xf32>
    %200 = vector.shape_cast %199 : vector<1x32x64xf32> to vector<32x64xf32>
    %cst_133 = arith.constant dense<0.000000e+00> : vector<8x64xf32>
    %201 = tpu.matmul %198, %200, %cst_133 {dimension_numbers = #tpu.dot_dimension_numbers<[1], [0], [0], [1], [0, 0, 1, 1], [], []>} : vector<8x32xf32>, vector<32x64xf32>, vector<8x64xf32> -> vector<8x64xf32>
    %c0_134 = arith.constant 0 : index
    %c0_135 = arith.constant 0 : index
    %c0_136 = arith.constant 0 : index
    %202 = vector.load %arg9[%c0_134, %c0_135, %c0_136] : memref<2x1x64xf32, #tpu.memory_space<vmem>>, vector<1x1x64xf32>
    %203 = vector.shape_cast %202 : vector<1x1x64xf32> to vector<1x64xf32>
    %204 = vector.broadcast %203 : vector<1x64xf32> to vector<8x64xf32>
    %205 = arith.addf %201, %204 : vector<8x64xf32>
    %cst_137 = arith.constant 0.000000e+00 : f32
    %206 = vector.broadcast %cst_137 : f32 to vector<8x64xf32>
    %207 = arith.maximumf %205, %206 : vector<8x64xf32>
    %c0_138 = arith.constant 0 : index
    %c0_139 = arith.constant 0 : index
    %c0_140 = arith.constant 0 : index
    %208 = vector.load %arg10[%c0_138, %c0_139, %c0_140] : memref<2x64x32xf32, #tpu.memory_space<vmem>>, vector<1x64x32xf32>
    %209 = vector.shape_cast %208 : vector<1x64x32xf32> to vector<64x32xf32>
    %cst_141 = arith.constant dense<0.000000e+00> : vector<8x32xf32>
    %210 = tpu.matmul %207, %209, %cst_141 {dimension_numbers = #tpu.dot_dimension_numbers<[1], [0], [0], [1], [0, 0, 1, 1], [], []>} : vector<8x64xf32>, vector<64x32xf32>, vector<8x32xf32> -> vector<8x32xf32>
    %c3_142 = arith.constant 3 : index
    %c0_143 = arith.constant 0 : index
    %c0_144 = arith.constant 0 : index
    %211 = vector.load %arg7[%c3_142, %c0_143, %c0_144] : memref<12x1x32xf32, #tpu.memory_space<vmem>>, vector<1x1x32xf32>
    %212 = vector.shape_cast %211 : vector<1x1x32xf32> to vector<1x32xf32>
    %213 = vector.broadcast %212 : vector<1x32xf32> to vector<8x32xf32>
    %214 = arith.addf %210, %213 : vector<8x32xf32>
    %215 = arith.addf %198, %214 : vector<8x32xf32>
    %c4_145 = arith.constant 4 : index
    %c0_146 = arith.constant 0 : index
    %c0_147 = arith.constant 0 : index
    %216 = vector.load %arg7[%c4_145, %c0_146, %c0_147] : memref<12x1x32xf32, #tpu.memory_space<vmem>>, vector<1x1x32xf32>
    %217 = vector.shape_cast %216 : vector<1x1x32xf32> to vector<1x32xf32>
    %c5_148 = arith.constant 5 : index
    %c0_149 = arith.constant 0 : index
    %c0_150 = arith.constant 0 : index
    %218 = vector.load %arg7[%c5_148, %c0_149, %c0_150] : memref<12x1x32xf32, #tpu.memory_space<vmem>>, vector<1x1x32xf32>
    %219 = vector.shape_cast %218 : vector<1x1x32xf32> to vector<1x32xf32>
    %cst_151 = arith.constant dense<0.000000e+00> : vector<8xf32>
    %220 = vector.multi_reduction <add>, %215, %cst_151 [1] : vector<8x32xf32> to vector<8xf32>
    %221 = vector.shape_cast %220 : vector<8xf32> to vector<8x1xf32>
    %cst_152 = arith.constant 3.200000e+01 : f32
    %222 = vector.broadcast %cst_152 : f32 to vector<8x1xf32>
    %223 = arith.divf %221, %222 : vector<8x1xf32>
    %224 = vector.broadcast %223 : vector<8x1xf32> to vector<8x32xf32>
    %225 = arith.subf %215, %224 : vector<8x32xf32>
    %226 = arith.mulf %225, %225 : vector<8x32xf32>
    %cst_153 = arith.constant dense<0.000000e+00> : vector<8xf32>
    %227 = vector.multi_reduction <add>, %226, %cst_153 [1] : vector<8x32xf32> to vector<8xf32>
    %228 = vector.shape_cast %227 : vector<8xf32> to vector<8x1xf32>
    %cst_154 = arith.constant 3.200000e+01 : f32
    %229 = vector.broadcast %cst_154 : f32 to vector<8x1xf32>
    %230 = arith.divf %228, %229 : vector<8x1xf32>
    %231 = vector.broadcast %223 : vector<8x1xf32> to vector<8x32xf32>
    %232 = arith.subf %215, %231 : vector<8x32xf32>
    %cst_155 = arith.constant 9.99999974E-6 : f32
    %233 = vector.broadcast %cst_155 : f32 to vector<8x1xf32>
    %234 = arith.addf %230, %233 : vector<8x1xf32>
    %235 = math.rsqrt %234 : vector<8x1xf32>
    %236 = vector.broadcast %235 : vector<8x1xf32> to vector<8x32xf32>
    %237 = arith.mulf %232, %236 : vector<8x32xf32>
    %238 = vector.broadcast %217 : vector<1x32xf32> to vector<8x32xf32>
    %239 = arith.mulf %237, %238 : vector<8x32xf32>
    %240 = vector.broadcast %219 : vector<1x32xf32> to vector<8x32xf32>
    %241 = arith.addf %239, %240 : vector<8x32xf32>
    %cst_156 = arith.constant 0.000000e+00 : f32
    %242 = vector.broadcast %cst_156 : f32 to vector<8x32xf32>
    %c12 = arith.constant 12 : index
    %c0_157 = arith.constant 0 : index
    %c0_158 = arith.constant 0 : index
    %243 = vector.load %arg4[%c12, %c0_157, %c0_158] : memref<24x32x8xf32, #tpu.memory_space<vmem>>, vector<1x32x8xf32>
    %244 = vector.shape_cast %243 : vector<1x32x8xf32> to vector<32x8xf32>
    %cst_159 = arith.constant dense<0.000000e+00> : vector<8x8xf32>
    %245 = tpu.matmul %241, %244, %cst_159 {dimension_numbers = #tpu.dot_dimension_numbers<[1], [0], [0], [1], [0, 0, 1, 1], [], []>} : vector<8x32xf32>, vector<32x8xf32>, vector<8x8xf32> -> vector<8x8xf32>
    %c12_160 = arith.constant 12 : index
    %c0_161 = arith.constant 0 : index
    %c0_162 = arith.constant 0 : index
    %246 = vector.load %arg5[%c12_160, %c0_161, %c0_162] : memref<24x1x8xf32, #tpu.memory_space<vmem>>, vector<1x1x8xf32>
    %247 = vector.shape_cast %246 : vector<1x1x8xf32> to vector<1x8xf32>
    %248 = vector.broadcast %247 : vector<1x8xf32> to vector<8x8xf32>
    %249 = arith.addf %245, %248 : vector<8x8xf32>
    %c16 = arith.constant 16 : index
    %c0_163 = arith.constant 0 : index
    %c0_164 = arith.constant 0 : index
    %250 = vector.load %arg4[%c16, %c0_163, %c0_164] : memref<24x32x8xf32, #tpu.memory_space<vmem>>, vector<1x32x8xf32>
    %251 = vector.shape_cast %250 : vector<1x32x8xf32> to vector<32x8xf32>
    %cst_165 = arith.constant dense<0.000000e+00> : vector<8x8xf32>
    %252 = tpu.matmul %241, %251, %cst_165 {dimension_numbers = #tpu.dot_dimension_numbers<[1], [0], [0], [1], [0, 0, 1, 1], [], []>} : vector<8x32xf32>, vector<32x8xf32>, vector<8x8xf32> -> vector<8x8xf32>
    %c16_166 = arith.constant 16 : index
    %c0_167 = arith.constant 0 : index
    %c0_168 = arith.constant 0 : index
    %253 = vector.load %arg5[%c16_166, %c0_167, %c0_168] : memref<24x1x8xf32, #tpu.memory_space<vmem>>, vector<1x1x8xf32>
    %254 = vector.shape_cast %253 : vector<1x1x8xf32> to vector<1x8xf32>
    %255 = vector.broadcast %254 : vector<1x8xf32> to vector<8x8xf32>
    %256 = arith.addf %252, %255 : vector<8x8xf32>
    %c20 = arith.constant 20 : index
    %c0_169 = arith.constant 0 : index
    %c0_170 = arith.constant 0 : index
    %257 = vector.load %arg4[%c20, %c0_169, %c0_170] : memref<24x32x8xf32, #tpu.memory_space<vmem>>, vector<1x32x8xf32>
    %258 = vector.shape_cast %257 : vector<1x32x8xf32> to vector<32x8xf32>
    %cst_171 = arith.constant dense<0.000000e+00> : vector<8x8xf32>
    %259 = tpu.matmul %241, %258, %cst_171 {dimension_numbers = #tpu.dot_dimension_numbers<[1], [0], [0], [1], [0, 0, 1, 1], [], []>} : vector<8x32xf32>, vector<32x8xf32>, vector<8x8xf32> -> vector<8x8xf32>
    %c20_172 = arith.constant 20 : index
    %c0_173 = arith.constant 0 : index
    %c0_174 = arith.constant 0 : index
    %260 = vector.load %arg5[%c20_172, %c0_173, %c0_174] : memref<24x1x8xf32, #tpu.memory_space<vmem>>, vector<1x1x8xf32>
    %261 = vector.shape_cast %260 : vector<1x1x8xf32> to vector<1x8xf32>
    %262 = vector.broadcast %261 : vector<1x8xf32> to vector<8x8xf32>
    %263 = arith.addf %259, %262 : vector<8x8xf32>
    %cst_175 = arith.constant dense<0.000000e+00> : vector<8x8xf32>
    %264 = tpu.matmul %249, %256, %cst_175 {dimension_numbers = #tpu.dot_dimension_numbers<[1], [1], [0], [0], [0, 0, 1, 0], [], []>} : vector<8x8xf32>, vector<8x8xf32>, vector<8x8xf32> -> vector<8x8xf32>
    %cst_176 = arith.constant 0.353553385 : f32
    %265 = vector.broadcast %cst_176 : f32 to vector<8x8xf32>
    %266 = arith.mulf %264, %265 : vector<8x8xf32>
    %cst_177 = arith.constant dense<0xFF800000> : vector<8xf32>
    %267 = vector.multi_reduction <maximumf>, %266, %cst_177 [1] : vector<8x8xf32> to vector<8xf32>
    %268 = vector.shape_cast %267 : vector<8xf32> to vector<8x1xf32>
    %269 = vector.broadcast %268 : vector<8x1xf32> to vector<8x8xf32>
    %270 = arith.subf %266, %269 : vector<8x8xf32>
    %271 = math.exp %270 : vector<8x8xf32>
    %cst_178 = arith.constant dense<0.000000e+00> : vector<8xf32>
    %272 = vector.multi_reduction <add>, %271, %cst_178 [1] : vector<8x8xf32> to vector<8xf32>
    %273 = vector.shape_cast %272 : vector<8xf32> to vector<8x1xf32>
    %274 = tpu.reciprocal %273 {approx = true} : vector<8x1xf32> -> vector<8x1xf32>
    %275 = vector.broadcast %274 : vector<8x1xf32> to vector<8x8xf32>
    %276 = arith.mulf %271, %275 : vector<8x8xf32>
    %cst_179 = arith.constant dense<0.000000e+00> : vector<8x8xf32>
    %277 = tpu.matmul %276, %263, %cst_179 {dimension_numbers = #tpu.dot_dimension_numbers<[1], [0], [0], [1], [0, 0, 1, 1], [], []>} : vector<8x8xf32>, vector<8x8xf32>, vector<8x8xf32> -> vector<8x8xf32>
    %c4_180 = arith.constant 4 : index
    %c0_181 = arith.constant 0 : index
    %c0_182 = arith.constant 0 : index
    %278 = vector.load %arg6[%c4_180, %c0_181, %c0_182] : memref<8x8x32xf32, #tpu.memory_space<vmem>>, vector<1x8x32xf32>
    %279 = vector.shape_cast %278 : vector<1x8x32xf32> to vector<8x32xf32>
    %cst_183 = arith.constant dense<0.000000e+00> : vector<8x32xf32>
    %280 = tpu.matmul %277, %279, %cst_183 {dimension_numbers = #tpu.dot_dimension_numbers<[1], [0], [0], [1], [0, 0, 1, 1], [], []>} : vector<8x8xf32>, vector<8x32xf32>, vector<8x32xf32> -> vector<8x32xf32>
    %281 = arith.addf %242, %280 : vector<8x32xf32>
    %c13 = arith.constant 13 : index
    %c0_184 = arith.constant 0 : index
    %c0_185 = arith.constant 0 : index
    %282 = vector.load %arg4[%c13, %c0_184, %c0_185] : memref<24x32x8xf32, #tpu.memory_space<vmem>>, vector<1x32x8xf32>
    %283 = vector.shape_cast %282 : vector<1x32x8xf32> to vector<32x8xf32>
    %cst_186 = arith.constant dense<0.000000e+00> : vector<8x8xf32>
    %284 = tpu.matmul %241, %283, %cst_186 {dimension_numbers = #tpu.dot_dimension_numbers<[1], [0], [0], [1], [0, 0, 1, 1], [], []>} : vector<8x32xf32>, vector<32x8xf32>, vector<8x8xf32> -> vector<8x8xf32>
    %c13_187 = arith.constant 13 : index
    %c0_188 = arith.constant 0 : index
    %c0_189 = arith.constant 0 : index
    %285 = vector.load %arg5[%c13_187, %c0_188, %c0_189] : memref<24x1x8xf32, #tpu.memory_space<vmem>>, vector<1x1x8xf32>
    %286 = vector.shape_cast %285 : vector<1x1x8xf32> to vector<1x8xf32>
    %287 = vector.broadcast %286 : vector<1x8xf32> to vector<8x8xf32>
    %288 = arith.addf %284, %287 : vector<8x8xf32>
    %c17 = arith.constant 17 : index
    %c0_190 = arith.constant 0 : index
    %c0_191 = arith.constant 0 : index
    %289 = vector.load %arg4[%c17, %c0_190, %c0_191] : memref<24x32x8xf32, #tpu.memory_space<vmem>>, vector<1x32x8xf32>
    %290 = vector.shape_cast %289 : vector<1x32x8xf32> to vector<32x8xf32>
    %cst_192 = arith.constant dense<0.000000e+00> : vector<8x8xf32>
    %291 = tpu.matmul %241, %290, %cst_192 {dimension_numbers = #tpu.dot_dimension_numbers<[1], [0], [0], [1], [0, 0, 1, 1], [], []>} : vector<8x32xf32>, vector<32x8xf32>, vector<8x8xf32> -> vector<8x8xf32>
    %c17_193 = arith.constant 17 : index
    %c0_194 = arith.constant 0 : index
    %c0_195 = arith.constant 0 : index
    %292 = vector.load %arg5[%c17_193, %c0_194, %c0_195] : memref<24x1x8xf32, #tpu.memory_space<vmem>>, vector<1x1x8xf32>
    %293 = vector.shape_cast %292 : vector<1x1x8xf32> to vector<1x8xf32>
    %294 = vector.broadcast %293 : vector<1x8xf32> to vector<8x8xf32>
    %295 = arith.addf %291, %294 : vector<8x8xf32>
    %c21 = arith.constant 21 : index
    %c0_196 = arith.constant 0 : index
    %c0_197 = arith.constant 0 : index
    %296 = vector.load %arg4[%c21, %c0_196, %c0_197] : memref<24x32x8xf32, #tpu.memory_space<vmem>>, vector<1x32x8xf32>
    %297 = vector.shape_cast %296 : vector<1x32x8xf32> to vector<32x8xf32>
    %cst_198 = arith.constant dense<0.000000e+00> : vector<8x8xf32>
    %298 = tpu.matmul %241, %297, %cst_198 {dimension_numbers = #tpu.dot_dimension_numbers<[1], [0], [0], [1], [0, 0, 1, 1], [], []>} : vector<8x32xf32>, vector<32x8xf32>, vector<8x8xf32> -> vector<8x8xf32>
    %c21_199 = arith.constant 21 : index
    %c0_200 = arith.constant 0 : index
    %c0_201 = arith.constant 0 : index
    %299 = vector.load %arg5[%c21_199, %c0_200, %c0_201] : memref<24x1x8xf32, #tpu.memory_space<vmem>>, vector<1x1x8xf32>
    %300 = vector.shape_cast %299 : vector<1x1x8xf32> to vector<1x8xf32>
    %301 = vector.broadcast %300 : vector<1x8xf32> to vector<8x8xf32>
    %302 = arith.addf %298, %301 : vector<8x8xf32>
    %cst_202 = arith.constant dense<0.000000e+00> : vector<8x8xf32>
    %303 = tpu.matmul %288, %295, %cst_202 {dimension_numbers = #tpu.dot_dimension_numbers<[1], [1], [0], [0], [0, 0, 1, 0], [], []>} : vector<8x8xf32>, vector<8x8xf32>, vector<8x8xf32> -> vector<8x8xf32>
    %cst_203 = arith.constant 0.353553385 : f32
    %304 = vector.broadcast %cst_203 : f32 to vector<8x8xf32>
    %305 = arith.mulf %303, %304 : vector<8x8xf32>
    %cst_204 = arith.constant dense<0xFF800000> : vector<8xf32>
    %306 = vector.multi_reduction <maximumf>, %305, %cst_204 [1] : vector<8x8xf32> to vector<8xf32>
    %307 = vector.shape_cast %306 : vector<8xf32> to vector<8x1xf32>
    %308 = vector.broadcast %307 : vector<8x1xf32> to vector<8x8xf32>
    %309 = arith.subf %305, %308 : vector<8x8xf32>
    %310 = math.exp %309 : vector<8x8xf32>
    %cst_205 = arith.constant dense<0.000000e+00> : vector<8xf32>
    %311 = vector.multi_reduction <add>, %310, %cst_205 [1] : vector<8x8xf32> to vector<8xf32>
    %312 = vector.shape_cast %311 : vector<8xf32> to vector<8x1xf32>
    %313 = tpu.reciprocal %312 {approx = true} : vector<8x1xf32> -> vector<8x1xf32>
    %314 = vector.broadcast %313 : vector<8x1xf32> to vector<8x8xf32>
    %315 = arith.mulf %310, %314 : vector<8x8xf32>
    %cst_206 = arith.constant dense<0.000000e+00> : vector<8x8xf32>
    %316 = tpu.matmul %315, %302, %cst_206 {dimension_numbers = #tpu.dot_dimension_numbers<[1], [0], [0], [1], [0, 0, 1, 1], [], []>} : vector<8x8xf32>, vector<8x8xf32>, vector<8x8xf32> -> vector<8x8xf32>
    %c5_207 = arith.constant 5 : index
    %c0_208 = arith.constant 0 : index
    %c0_209 = arith.constant 0 : index
    %317 = vector.load %arg6[%c5_207, %c0_208, %c0_209] : memref<8x8x32xf32, #tpu.memory_space<vmem>>, vector<1x8x32xf32>
    %318 = vector.shape_cast %317 : vector<1x8x32xf32> to vector<8x32xf32>
    %cst_210 = arith.constant dense<0.000000e+00> : vector<8x32xf32>
    %319 = tpu.matmul %316, %318, %cst_210 {dimension_numbers = #tpu.dot_dimension_numbers<[1], [0], [0], [1], [0, 0, 1, 1], [], []>} : vector<8x8xf32>, vector<8x32xf32>, vector<8x32xf32> -> vector<8x32xf32>
    %320 = arith.addf %281, %319 : vector<8x32xf32>
    %c14 = arith.constant 14 : index
    %c0_211 = arith.constant 0 : index
    %c0_212 = arith.constant 0 : index
    %321 = vector.load %arg4[%c14, %c0_211, %c0_212] : memref<24x32x8xf32, #tpu.memory_space<vmem>>, vector<1x32x8xf32>
    %322 = vector.shape_cast %321 : vector<1x32x8xf32> to vector<32x8xf32>
    %cst_213 = arith.constant dense<0.000000e+00> : vector<8x8xf32>
    %323 = tpu.matmul %241, %322, %cst_213 {dimension_numbers = #tpu.dot_dimension_numbers<[1], [0], [0], [1], [0, 0, 1, 1], [], []>} : vector<8x32xf32>, vector<32x8xf32>, vector<8x8xf32> -> vector<8x8xf32>
    %c14_214 = arith.constant 14 : index
    %c0_215 = arith.constant 0 : index
    %c0_216 = arith.constant 0 : index
    %324 = vector.load %arg5[%c14_214, %c0_215, %c0_216] : memref<24x1x8xf32, #tpu.memory_space<vmem>>, vector<1x1x8xf32>
    %325 = vector.shape_cast %324 : vector<1x1x8xf32> to vector<1x8xf32>
    %326 = vector.broadcast %325 : vector<1x8xf32> to vector<8x8xf32>
    %327 = arith.addf %323, %326 : vector<8x8xf32>
    %c18 = arith.constant 18 : index
    %c0_217 = arith.constant 0 : index
    %c0_218 = arith.constant 0 : index
    %328 = vector.load %arg4[%c18, %c0_217, %c0_218] : memref<24x32x8xf32, #tpu.memory_space<vmem>>, vector<1x32x8xf32>
    %329 = vector.shape_cast %328 : vector<1x32x8xf32> to vector<32x8xf32>
    %cst_219 = arith.constant dense<0.000000e+00> : vector<8x8xf32>
    %330 = tpu.matmul %241, %329, %cst_219 {dimension_numbers = #tpu.dot_dimension_numbers<[1], [0], [0], [1], [0, 0, 1, 1], [], []>} : vector<8x32xf32>, vector<32x8xf32>, vector<8x8xf32> -> vector<8x8xf32>
    %c18_220 = arith.constant 18 : index
    %c0_221 = arith.constant 0 : index
    %c0_222 = arith.constant 0 : index
    %331 = vector.load %arg5[%c18_220, %c0_221, %c0_222] : memref<24x1x8xf32, #tpu.memory_space<vmem>>, vector<1x1x8xf32>
    %332 = vector.shape_cast %331 : vector<1x1x8xf32> to vector<1x8xf32>
    %333 = vector.broadcast %332 : vector<1x8xf32> to vector<8x8xf32>
    %334 = arith.addf %330, %333 : vector<8x8xf32>
    %c22 = arith.constant 22 : index
    %c0_223 = arith.constant 0 : index
    %c0_224 = arith.constant 0 : index
    %335 = vector.load %arg4[%c22, %c0_223, %c0_224] : memref<24x32x8xf32, #tpu.memory_space<vmem>>, vector<1x32x8xf32>
    %336 = vector.shape_cast %335 : vector<1x32x8xf32> to vector<32x8xf32>
    %cst_225 = arith.constant dense<0.000000e+00> : vector<8x8xf32>
    %337 = tpu.matmul %241, %336, %cst_225 {dimension_numbers = #tpu.dot_dimension_numbers<[1], [0], [0], [1], [0, 0, 1, 1], [], []>} : vector<8x32xf32>, vector<32x8xf32>, vector<8x8xf32> -> vector<8x8xf32>
    %c22_226 = arith.constant 22 : index
    %c0_227 = arith.constant 0 : index
    %c0_228 = arith.constant 0 : index
    %338 = vector.load %arg5[%c22_226, %c0_227, %c0_228] : memref<24x1x8xf32, #tpu.memory_space<vmem>>, vector<1x1x8xf32>
    %339 = vector.shape_cast %338 : vector<1x1x8xf32> to vector<1x8xf32>
    %340 = vector.broadcast %339 : vector<1x8xf32> to vector<8x8xf32>
    %341 = arith.addf %337, %340 : vector<8x8xf32>
    %cst_229 = arith.constant dense<0.000000e+00> : vector<8x8xf32>
    %342 = tpu.matmul %327, %334, %cst_229 {dimension_numbers = #tpu.dot_dimension_numbers<[1], [1], [0], [0], [0, 0, 1, 0], [], []>} : vector<8x8xf32>, vector<8x8xf32>, vector<8x8xf32> -> vector<8x8xf32>
    %cst_230 = arith.constant 0.353553385 : f32
    %343 = vector.broadcast %cst_230 : f32 to vector<8x8xf32>
    %344 = arith.mulf %342, %343 : vector<8x8xf32>
    %cst_231 = arith.constant dense<0xFF800000> : vector<8xf32>
    %345 = vector.multi_reduction <maximumf>, %344, %cst_231 [1] : vector<8x8xf32> to vector<8xf32>
    %346 = vector.shape_cast %345 : vector<8xf32> to vector<8x1xf32>
    %347 = vector.broadcast %346 : vector<8x1xf32> to vector<8x8xf32>
    %348 = arith.subf %344, %347 : vector<8x8xf32>
    %349 = math.exp %348 : vector<8x8xf32>
    %cst_232 = arith.constant dense<0.000000e+00> : vector<8xf32>
    %350 = vector.multi_reduction <add>, %349, %cst_232 [1] : vector<8x8xf32> to vector<8xf32>
    %351 = vector.shape_cast %350 : vector<8xf32> to vector<8x1xf32>
    %352 = tpu.reciprocal %351 {approx = true} : vector<8x1xf32> -> vector<8x1xf32>
    %353 = vector.broadcast %352 : vector<8x1xf32> to vector<8x8xf32>
    %354 = arith.mulf %349, %353 : vector<8x8xf32>
    %cst_233 = arith.constant dense<0.000000e+00> : vector<8x8xf32>
    %355 = tpu.matmul %354, %341, %cst_233 {dimension_numbers = #tpu.dot_dimension_numbers<[1], [0], [0], [1], [0, 0, 1, 1], [], []>} : vector<8x8xf32>, vector<8x8xf32>, vector<8x8xf32> -> vector<8x8xf32>
    %c6_234 = arith.constant 6 : index
    %c0_235 = arith.constant 0 : index
    %c0_236 = arith.constant 0 : index
    %356 = vector.load %arg6[%c6_234, %c0_235, %c0_236] : memref<8x8x32xf32, #tpu.memory_space<vmem>>, vector<1x8x32xf32>
    %357 = vector.shape_cast %356 : vector<1x8x32xf32> to vector<8x32xf32>
    %cst_237 = arith.constant dense<0.000000e+00> : vector<8x32xf32>
    %358 = tpu.matmul %355, %357, %cst_237 {dimension_numbers = #tpu.dot_dimension_numbers<[1], [0], [0], [1], [0, 0, 1, 1], [], []>} : vector<8x8xf32>, vector<8x32xf32>, vector<8x32xf32> -> vector<8x32xf32>
    %359 = arith.addf %320, %358 : vector<8x32xf32>
    %c15 = arith.constant 15 : index
    %c0_238 = arith.constant 0 : index
    %c0_239 = arith.constant 0 : index
    %360 = vector.load %arg4[%c15, %c0_238, %c0_239] : memref<24x32x8xf32, #tpu.memory_space<vmem>>, vector<1x32x8xf32>
    %361 = vector.shape_cast %360 : vector<1x32x8xf32> to vector<32x8xf32>
    %cst_240 = arith.constant dense<0.000000e+00> : vector<8x8xf32>
    %362 = tpu.matmul %241, %361, %cst_240 {dimension_numbers = #tpu.dot_dimension_numbers<[1], [0], [0], [1], [0, 0, 1, 1], [], []>} : vector<8x32xf32>, vector<32x8xf32>, vector<8x8xf32> -> vector<8x8xf32>
    %c15_241 = arith.constant 15 : index
    %c0_242 = arith.constant 0 : index
    %c0_243 = arith.constant 0 : index
    %363 = vector.load %arg5[%c15_241, %c0_242, %c0_243] : memref<24x1x8xf32, #tpu.memory_space<vmem>>, vector<1x1x8xf32>
    %364 = vector.shape_cast %363 : vector<1x1x8xf32> to vector<1x8xf32>
    %365 = vector.broadcast %364 : vector<1x8xf32> to vector<8x8xf32>
    %366 = arith.addf %362, %365 : vector<8x8xf32>
    %c19 = arith.constant 19 : index
    %c0_244 = arith.constant 0 : index
    %c0_245 = arith.constant 0 : index
    %367 = vector.load %arg4[%c19, %c0_244, %c0_245] : memref<24x32x8xf32, #tpu.memory_space<vmem>>, vector<1x32x8xf32>
    %368 = vector.shape_cast %367 : vector<1x32x8xf32> to vector<32x8xf32>
    %cst_246 = arith.constant dense<0.000000e+00> : vector<8x8xf32>
    %369 = tpu.matmul %241, %368, %cst_246 {dimension_numbers = #tpu.dot_dimension_numbers<[1], [0], [0], [1], [0, 0, 1, 1], [], []>} : vector<8x32xf32>, vector<32x8xf32>, vector<8x8xf32> -> vector<8x8xf32>
    %c19_247 = arith.constant 19 : index
    %c0_248 = arith.constant 0 : index
    %c0_249 = arith.constant 0 : index
    %370 = vector.load %arg5[%c19_247, %c0_248, %c0_249] : memref<24x1x8xf32, #tpu.memory_space<vmem>>, vector<1x1x8xf32>
    %371 = vector.shape_cast %370 : vector<1x1x8xf32> to vector<1x8xf32>
    %372 = vector.broadcast %371 : vector<1x8xf32> to vector<8x8xf32>
    %373 = arith.addf %369, %372 : vector<8x8xf32>
    %c23 = arith.constant 23 : index
    %c0_250 = arith.constant 0 : index
    %c0_251 = arith.constant 0 : index
    %374 = vector.load %arg4[%c23, %c0_250, %c0_251] : memref<24x32x8xf32, #tpu.memory_space<vmem>>, vector<1x32x8xf32>
    %375 = vector.shape_cast %374 : vector<1x32x8xf32> to vector<32x8xf32>
    %cst_252 = arith.constant dense<0.000000e+00> : vector<8x8xf32>
    %376 = tpu.matmul %241, %375, %cst_252 {dimension_numbers = #tpu.dot_dimension_numbers<[1], [0], [0], [1], [0, 0, 1, 1], [], []>} : vector<8x32xf32>, vector<32x8xf32>, vector<8x8xf32> -> vector<8x8xf32>
    %c23_253 = arith.constant 23 : index
    %c0_254 = arith.constant 0 : index
    %c0_255 = arith.constant 0 : index
    %377 = vector.load %arg5[%c23_253, %c0_254, %c0_255] : memref<24x1x8xf32, #tpu.memory_space<vmem>>, vector<1x1x8xf32>
    %378 = vector.shape_cast %377 : vector<1x1x8xf32> to vector<1x8xf32>
    %379 = vector.broadcast %378 : vector<1x8xf32> to vector<8x8xf32>
    %380 = arith.addf %376, %379 : vector<8x8xf32>
    %cst_256 = arith.constant dense<0.000000e+00> : vector<8x8xf32>
    %381 = tpu.matmul %366, %373, %cst_256 {dimension_numbers = #tpu.dot_dimension_numbers<[1], [1], [0], [0], [0, 0, 1, 0], [], []>} : vector<8x8xf32>, vector<8x8xf32>, vector<8x8xf32> -> vector<8x8xf32>
    %cst_257 = arith.constant 0.353553385 : f32
    %382 = vector.broadcast %cst_257 : f32 to vector<8x8xf32>
    %383 = arith.mulf %381, %382 : vector<8x8xf32>
    %cst_258 = arith.constant dense<0xFF800000> : vector<8xf32>
    %384 = vector.multi_reduction <maximumf>, %383, %cst_258 [1] : vector<8x8xf32> to vector<8xf32>
    %385 = vector.shape_cast %384 : vector<8xf32> to vector<8x1xf32>
    %386 = vector.broadcast %385 : vector<8x1xf32> to vector<8x8xf32>
    %387 = arith.subf %383, %386 : vector<8x8xf32>
    %388 = math.exp %387 : vector<8x8xf32>
    %cst_259 = arith.constant dense<0.000000e+00> : vector<8xf32>
    %389 = vector.multi_reduction <add>, %388, %cst_259 [1] : vector<8x8xf32> to vector<8xf32>
    %390 = vector.shape_cast %389 : vector<8xf32> to vector<8x1xf32>
    %391 = tpu.reciprocal %390 {approx = true} : vector<8x1xf32> -> vector<8x1xf32>
    %392 = vector.broadcast %391 : vector<8x1xf32> to vector<8x8xf32>
    %393 = arith.mulf %388, %392 : vector<8x8xf32>
    %cst_260 = arith.constant dense<0.000000e+00> : vector<8x8xf32>
    %394 = tpu.matmul %393, %380, %cst_260 {dimension_numbers = #tpu.dot_dimension_numbers<[1], [0], [0], [1], [0, 0, 1, 1], [], []>} : vector<8x8xf32>, vector<8x8xf32>, vector<8x8xf32> -> vector<8x8xf32>
    %c7_261 = arith.constant 7 : index
    %c0_262 = arith.constant 0 : index
    %c0_263 = arith.constant 0 : index
    %395 = vector.load %arg6[%c7_261, %c0_262, %c0_263] : memref<8x8x32xf32, #tpu.memory_space<vmem>>, vector<1x8x32xf32>
    %396 = vector.shape_cast %395 : vector<1x8x32xf32> to vector<8x32xf32>
    %cst_264 = arith.constant dense<0.000000e+00> : vector<8x32xf32>
    %397 = tpu.matmul %394, %396, %cst_264 {dimension_numbers = #tpu.dot_dimension_numbers<[1], [0], [0], [1], [0, 0, 1, 1], [], []>} : vector<8x8xf32>, vector<8x32xf32>, vector<8x32xf32> -> vector<8x32xf32>
    %398 = arith.addf %359, %397 : vector<8x32xf32>
    %c6_265 = arith.constant 6 : index
    %c0_266 = arith.constant 0 : index
    %c0_267 = arith.constant 0 : index
    %399 = vector.load %arg7[%c6_265, %c0_266, %c0_267] : memref<12x1x32xf32, #tpu.memory_space<vmem>>, vector<1x1x32xf32>
    %400 = vector.shape_cast %399 : vector<1x1x32xf32> to vector<1x32xf32>
    %401 = vector.broadcast %400 : vector<1x32xf32> to vector<8x32xf32>
    %402 = arith.addf %398, %401 : vector<8x32xf32>
    %403 = arith.addf %241, %402 : vector<8x32xf32>
    %c7_268 = arith.constant 7 : index
    %c0_269 = arith.constant 0 : index
    %c0_270 = arith.constant 0 : index
    %404 = vector.load %arg7[%c7_268, %c0_269, %c0_270] : memref<12x1x32xf32, #tpu.memory_space<vmem>>, vector<1x1x32xf32>
    %405 = vector.shape_cast %404 : vector<1x1x32xf32> to vector<1x32xf32>
    %c8_271 = arith.constant 8 : index
    %c0_272 = arith.constant 0 : index
    %c0_273 = arith.constant 0 : index
    %406 = vector.load %arg7[%c8_271, %c0_272, %c0_273] : memref<12x1x32xf32, #tpu.memory_space<vmem>>, vector<1x1x32xf32>
    %407 = vector.shape_cast %406 : vector<1x1x32xf32> to vector<1x32xf32>
    %cst_274 = arith.constant dense<0.000000e+00> : vector<8xf32>
    %408 = vector.multi_reduction <add>, %403, %cst_274 [1] : vector<8x32xf32> to vector<8xf32>
    %409 = vector.shape_cast %408 : vector<8xf32> to vector<8x1xf32>
    %cst_275 = arith.constant 3.200000e+01 : f32
    %410 = vector.broadcast %cst_275 : f32 to vector<8x1xf32>
    %411 = arith.divf %409, %410 : vector<8x1xf32>
    %412 = vector.broadcast %411 : vector<8x1xf32> to vector<8x32xf32>
    %413 = arith.subf %403, %412 : vector<8x32xf32>
    %414 = arith.mulf %413, %413 : vector<8x32xf32>
    %cst_276 = arith.constant dense<0.000000e+00> : vector<8xf32>
    %415 = vector.multi_reduction <add>, %414, %cst_276 [1] : vector<8x32xf32> to vector<8xf32>
    %416 = vector.shape_cast %415 : vector<8xf32> to vector<8x1xf32>
    %cst_277 = arith.constant 3.200000e+01 : f32
    %417 = vector.broadcast %cst_277 : f32 to vector<8x1xf32>
    %418 = arith.divf %416, %417 : vector<8x1xf32>
    %419 = vector.broadcast %411 : vector<8x1xf32> to vector<8x32xf32>
    %420 = arith.subf %403, %419 : vector<8x32xf32>
    %cst_278 = arith.constant 9.99999974E-6 : f32
    %421 = vector.broadcast %cst_278 : f32 to vector<8x1xf32>
    %422 = arith.addf %418, %421 : vector<8x1xf32>
    %423 = math.rsqrt %422 : vector<8x1xf32>
    %424 = vector.broadcast %423 : vector<8x1xf32> to vector<8x32xf32>
    %425 = arith.mulf %420, %424 : vector<8x32xf32>
    %426 = vector.broadcast %405 : vector<1x32xf32> to vector<8x32xf32>
    %427 = arith.mulf %425, %426 : vector<8x32xf32>
    %428 = vector.broadcast %407 : vector<1x32xf32> to vector<8x32xf32>
    %429 = arith.addf %427, %428 : vector<8x32xf32>
    %c1_279 = arith.constant 1 : index
    %c0_280 = arith.constant 0 : index
    %c0_281 = arith.constant 0 : index
    %430 = vector.load %arg8[%c1_279, %c0_280, %c0_281] : memref<2x32x64xf32, #tpu.memory_space<vmem>>, vector<1x32x64xf32>
    %431 = vector.shape_cast %430 : vector<1x32x64xf32> to vector<32x64xf32>
    %cst_282 = arith.constant dense<0.000000e+00> : vector<8x64xf32>
    %432 = tpu.matmul %429, %431, %cst_282 {dimension_numbers = #tpu.dot_dimension_numbers<[1], [0], [0], [1], [0, 0, 1, 1], [], []>} : vector<8x32xf32>, vector<32x64xf32>, vector<8x64xf32> -> vector<8x64xf32>
    %c1_283 = arith.constant 1 : index
    %c0_284 = arith.constant 0 : index
    %c0_285 = arith.constant 0 : index
    %433 = vector.load %arg9[%c1_283, %c0_284, %c0_285] : memref<2x1x64xf32, #tpu.memory_space<vmem>>, vector<1x1x64xf32>
    %434 = vector.shape_cast %433 : vector<1x1x64xf32> to vector<1x64xf32>
    %435 = vector.broadcast %434 : vector<1x64xf32> to vector<8x64xf32>
    %436 = arith.addf %432, %435 : vector<8x64xf32>
    %cst_286 = arith.constant 0.000000e+00 : f32
    %437 = vector.broadcast %cst_286 : f32 to vector<8x64xf32>
    %438 = arith.maximumf %436, %437 : vector<8x64xf32>
    %c1_287 = arith.constant 1 : index
    %c0_288 = arith.constant 0 : index
    %c0_289 = arith.constant 0 : index
    %439 = vector.load %arg10[%c1_287, %c0_288, %c0_289] : memref<2x64x32xf32, #tpu.memory_space<vmem>>, vector<1x64x32xf32>
    %440 = vector.shape_cast %439 : vector<1x64x32xf32> to vector<64x32xf32>
    %cst_290 = arith.constant dense<0.000000e+00> : vector<8x32xf32>
    %441 = tpu.matmul %438, %440, %cst_290 {dimension_numbers = #tpu.dot_dimension_numbers<[1], [0], [0], [1], [0, 0, 1, 1], [], []>} : vector<8x64xf32>, vector<64x32xf32>, vector<8x32xf32> -> vector<8x32xf32>
    %c9_291 = arith.constant 9 : index
    %c0_292 = arith.constant 0 : index
    %c0_293 = arith.constant 0 : index
    %442 = vector.load %arg7[%c9_291, %c0_292, %c0_293] : memref<12x1x32xf32, #tpu.memory_space<vmem>>, vector<1x1x32xf32>
    %443 = vector.shape_cast %442 : vector<1x1x32xf32> to vector<1x32xf32>
    %444 = vector.broadcast %443 : vector<1x32xf32> to vector<8x32xf32>
    %445 = arith.addf %441, %444 : vector<8x32xf32>
    %446 = arith.addf %429, %445 : vector<8x32xf32>
    %c10_294 = arith.constant 10 : index
    %c0_295 = arith.constant 0 : index
    %c0_296 = arith.constant 0 : index
    %447 = vector.load %arg7[%c10_294, %c0_295, %c0_296] : memref<12x1x32xf32, #tpu.memory_space<vmem>>, vector<1x1x32xf32>
    %448 = vector.shape_cast %447 : vector<1x1x32xf32> to vector<1x32xf32>
    %c11_297 = arith.constant 11 : index
    %c0_298 = arith.constant 0 : index
    %c0_299 = arith.constant 0 : index
    %449 = vector.load %arg7[%c11_297, %c0_298, %c0_299] : memref<12x1x32xf32, #tpu.memory_space<vmem>>, vector<1x1x32xf32>
    %450 = vector.shape_cast %449 : vector<1x1x32xf32> to vector<1x32xf32>
    %cst_300 = arith.constant dense<0.000000e+00> : vector<8xf32>
    %451 = vector.multi_reduction <add>, %446, %cst_300 [1] : vector<8x32xf32> to vector<8xf32>
    %452 = vector.shape_cast %451 : vector<8xf32> to vector<8x1xf32>
    %cst_301 = arith.constant 3.200000e+01 : f32
    %453 = vector.broadcast %cst_301 : f32 to vector<8x1xf32>
    %454 = arith.divf %452, %453 : vector<8x1xf32>
    %455 = vector.broadcast %454 : vector<8x1xf32> to vector<8x32xf32>
    %456 = arith.subf %446, %455 : vector<8x32xf32>
    %457 = arith.mulf %456, %456 : vector<8x32xf32>
    %cst_302 = arith.constant dense<0.000000e+00> : vector<8xf32>
    %458 = vector.multi_reduction <add>, %457, %cst_302 [1] : vector<8x32xf32> to vector<8xf32>
    %459 = vector.shape_cast %458 : vector<8xf32> to vector<8x1xf32>
    %cst_303 = arith.constant 3.200000e+01 : f32
    %460 = vector.broadcast %cst_303 : f32 to vector<8x1xf32>
    %461 = arith.divf %459, %460 : vector<8x1xf32>
    %462 = vector.broadcast %454 : vector<8x1xf32> to vector<8x32xf32>
    %463 = arith.subf %446, %462 : vector<8x32xf32>
    %cst_304 = arith.constant 9.99999974E-6 : f32
    %464 = vector.broadcast %cst_304 : f32 to vector<8x1xf32>
    %465 = arith.addf %461, %464 : vector<8x1xf32>
    %466 = math.rsqrt %465 : vector<8x1xf32>
    %467 = vector.broadcast %466 : vector<8x1xf32> to vector<8x32xf32>
    %468 = arith.mulf %463, %467 : vector<8x32xf32>
    %469 = vector.broadcast %448 : vector<1x32xf32> to vector<8x32xf32>
    %470 = arith.mulf %468, %469 : vector<8x32xf32>
    %471 = vector.broadcast %450 : vector<1x32xf32> to vector<8x32xf32>
    %472 = arith.addf %470, %471 : vector<8x32xf32>
    %cst_305 = arith.constant dense<0.000000e+00> : vector<32xf32>
    %473 = vector.multi_reduction <add>, %472, %cst_305 [0] : vector<8x32xf32> to vector<32xf32>
    %474 = vector.shape_cast %473 : vector<32xf32> to vector<1x32xf32>
    %cst_306 = arith.constant 1.250000e-01 : f32
    %475 = vector.broadcast %cst_306 : f32 to vector<1x32xf32>
    %476 = arith.mulf %474, %475 : vector<1x32xf32>
    %c0_307 = arith.constant 0 : index
    %c0_308 = arith.constant 0 : index
    %477 = vector.load %arg11[%c0_307, %c0_308] : memref<32x4xf32, #tpu.memory_space<vmem>>, vector<32x4xf32>
    %cst_309 = arith.constant dense<0.000000e+00> : vector<1x4xf32>
    %478 = tpu.matmul %476, %477, %cst_309 {dimension_numbers = #tpu.dot_dimension_numbers<[1], [0], [0], [1], [0, 0, 1, 1], [], []>} : vector<1x32xf32>, vector<32x4xf32>, vector<1x4xf32> -> vector<1x4xf32>
    %c0_310 = arith.constant 0 : index
    %c0_311 = arith.constant 0 : index
    %479 = vector.load %arg12[%c0_310, %c0_311] : memref<1x4xf32, #tpu.memory_space<vmem>>, vector<1x4xf32>
    %480 = arith.addf %478, %479 : vector<1x4xf32>
    %c0_312 = arith.constant 0 : index
    %c0_313 = arith.constant 0 : index
    %c0_314 = arith.constant 0 : index
    %481 = vector.load %arg13[%c0_312, %c0_313, %c0_314] : memref<1x1x4xf32, #tpu.memory_space<vmem>>, vector<1x1x4xf32>
    %482 = vector.shape_cast %481 : vector<1x1x4xf32> to vector<1x4xf32>
    %483 = vector.shape_cast %480 : vector<1x4xf32> to vector<1x1x4xf32>
    tpu.vector_store %arg13[%c0_312, %c0_313, %c0_314], %483 {strides = array<i32>} : memref<1x1x4xf32, #tpu.memory_space<vmem>>, vector<1x1x4xf32>,
    return
  }
  func.func @transform_0(%arg0: i32) -> (i32, i32, i32) {
    %c0_i32 = arith.constant 0 : i32
    %c0_i32_0 = arith.constant 0 : i32
    %c0_i32_1 = arith.constant 0 : i32
    return %arg0, %c0_i32, %c0_i32_0 : i32, i32, i32
  }
  func.func @transform_1(%arg0: i32) -> (i32, i32) {
    %c0_i32 = arith.constant 0 : i32
    %c0_i32_0 = arith.constant 0 : i32
    %c0_i32_1 = arith.constant 0 : i32
    return %c0_i32, %c0_i32_0 : i32, i32
  }
  func.func @transform_2(%arg0: i32) -> (i32, i32) {
    %c0_i32 = arith.constant 0 : i32
    %c0_i32_0 = arith.constant 0 : i32
    %c0_i32_1 = arith.constant 0 : i32
    return %c0_i32, %c0_i32_0 : i32, i32
  }
  func.func @transform_3(%arg0: i32) -> (i32, i32, i32) {
    %c0_i32 = arith.constant 0 : i32
    %c0_i32_0 = arith.constant 0 : i32
    %c0_i32_1 = arith.constant 0 : i32
    %c0_i32_2 = arith.constant 0 : i32
    return %c0_i32, %c0_i32_0, %c0_i32_1 : i32, i32, i32
  }
  func.func @transform_4(%arg0: i32) -> (i32, i32, i32) {
    %c0_i32 = arith.constant 0 : i32
    %c0_i32_0 = arith.constant 0 : i32
    %c0_i32_1 = arith.constant 0 : i32
    %c0_i32_2 = arith.constant 0 : i32
    return %c0_i32, %c0_i32_0, %c0_i32_1 : i32, i32, i32
  }
  func.func @transform_5(%arg0: i32) -> (i32, i32, i32) {
    %c0_i32 = arith.constant 0 : i32
    %c0_i32_0 = arith.constant 0 : i32
    %c0_i32_1 = arith.constant 0 : i32
    %c0_i32_2 = arith.constant 0 : i32
    return %c0_i32, %c0_i32_0, %c0_i32_1 : i32, i32, i32
  }
  func.func @transform_6(%arg0: i32) -> (i32, i32, i32) {
    %c0_i32 = arith.constant 0 : i32
    %c0_i32_0 = arith.constant 0 : i32
    %c0_i32_1 = arith.constant 0 : i32
    %c0_i32_2 = arith.constant 0 : i32
    return %c0_i32, %c0_i32_0, %c0_i32_1 : i32, i32, i32
  }
  func.func @transform_7(%arg0: i32) -> (i32, i32, i32) {
    %c0_i32 = arith.constant 0 : i32
    %c0_i32_0 = arith.constant 0 : i32
    %c0_i32_1 = arith.constant 0 : i32
    %c0_i32_2 = arith.constant 0 : i32
    return %c0_i32, %c0_i32_0, %c0_i32_1 : i32, i32, i32
  }
  func.func @transform_8(%arg0: i32) -> (i32, i32, i32) {
    %c0_i32 = arith.constant 0 : i32
    %c0_i32_0 = arith.constant 0 : i32
    %c0_i32_1 = arith.constant 0 : i32
    %c0_i32_2 = arith.constant 0 : i32
    return %c0_i32, %c0_i32_0, %c0_i32_1 : i32, i32, i32
  }
  func.func @transform_9(%arg0: i32) -> (i32, i32, i32) {
    %c0_i32 = arith.constant 0 : i32
    %c0_i32_0 = arith.constant 0 : i32
    %c0_i32_1 = arith.constant 0 : i32
    %c0_i32_2 = arith.constant 0 : i32
    return %c0_i32, %c0_i32_0, %c0_i32_1 : i32, i32, i32
  }
  func.func @transform_10(%arg0: i32) -> (i32, i32) {
    %c0_i32 = arith.constant 0 : i32
    %c0_i32_0 = arith.constant 0 : i32
    %c0_i32_1 = arith.constant 0 : i32
    return %c0_i32, %c0_i32_0 : i32, i32
  }
  func.func @transform_11(%arg0: i32) -> (i32, i32) {
    %c0_i32 = arith.constant 0 : i32
    %c0_i32_0 = arith.constant 0 : i32
    %c0_i32_1 = arith.constant 0 : i32
    return %c0_i32, %c0_i32_0 : i32, i32
  }
  func.func @transform_12(%arg0: i32) -> (i32, i32, i32) {
    %c0_i32 = arith.constant 0 : i32
    %c0_i32_0 = arith.constant 0 : i32
    %c0_i32_1 = arith.constant 0 : i32
    return %arg0, %c0_i32, %c0_i32_0 : i32, i32, i32
  }
}

</mosaic_0001>

<llo_original>
// kernel: tpu_custom_call.1
$region0: #{tpu_custom_call.1}
  #allocation0 [shape = 'u32[]', space=smem, size = 0x4, offset = 0x4, fixed_abs, tag = 'smem constant byte address 0x4 - core index']
  #allocation1 [shape = 'u32[144,128]{1,0:T(1,128)}', space=vmem, size = 0x12000, scoped, tag = 'internal scratch']
  %s0 = inlined_call_operand.vmem [shape: s32[2,8,1], index: 0, kind: input, shape index: {}]
  %s1 = inlined_call_operand.vmem [shape: f32[32,32], index: 1, kind: input, shape index: {}]
  %s2 = inlined_call_operand.vmem [shape: f32[8,32], index: 2, kind: input, shape index: {}]
  %s3 = inlined_call_operand.vmem [shape: f32[24,32,8], index: 3, kind: input, shape index: {}]
  %s4 = inlined_call_operand.vmem [shape: f32[24,1,8], index: 4, kind: input, shape index: {}]
  %s5 = inlined_call_operand.vmem [shape: f32[8,8,32], index: 5, kind: input, shape index: {}]
  %s6 = inlined_call_operand.vmem [shape: f32[12,1,32], index: 6, kind: input, shape index: {}]
  %s7 = inlined_call_operand.vmem [shape: f32[2,32,64], index: 7, kind: input, shape index: {}]
  %s8 = inlined_call_operand.vmem [shape: f32[2,1,64], index: 8, kind: input, shape index: {}]
  %s9 = inlined_call_operand.vmem [shape: f32[2,64,32], index: 9, kind: input, shape index: {}]
  %s10 = inlined_call_operand.vmem [shape: f32[32,4], index: 10, kind: input, shape index: {}]
  %s11 = inlined_call_operand.vmem [shape: f32[1,4], index: 11, kind: input, shape index: {}]
  %s12 = inlined_call_operand.hbm [shape: f32[2,1,4], index: 12, kind: output, shape index: {}]
  %s13 = sld [smem:[#allocation0]]
  $region81: #{tpu_custom_call.1} parent=0
    _
  %s15 = ssub.s32 1, %s13
  %s16 = scalar_select 0, %s15, %s13
  $region1: #{tpu_custom_call.1} parent=0
    #allocation2 [shape = 'u8[1024]{0}', space=vmem, size = 0x400, scoped, tag = 'output window, operand 0']
    #allocation3 [shape = 's32[2]{0}', space=sflag, size = 0x8, scoped, tag = 'scoped memory for tpu_custom_call.1']
    %17 = vsyncpa [#allocation3], 0
    %s18 = scalar_lea.sflag [#allocation3], 1
    %19 = vsyncpa %s18, 0
    loop: start=0, step=1, limit=4
    $region2: #{tpu_custom_call.1} parent=1 // loop_pre_header
      _
    $region3: #{tpu_custom_call.1} parent=1 // loop_header
      %s21 = sphi 0, %s25
      %p22 = scmp.ge.s32.totalorder %s21, 4
      %s31 = sphi 0, %s33
      %s34 = sphi 0, %s31
      %s35 = sphi 0, %s34
      %s51 = sphi 0, %s35
      %s55 = sphi 0, %s55
      %s57 = sphi 0, %s55
      %s58 = sphi 0, %s57
      %s72 = sphi 0, %s58
      %s76 = sphi 0, %s76
      %s78 = sphi 0, %s76
      %s79 = sphi 0, %s78
      %s93 = sphi 0, %s79
      %s97 = sphi 0, %s97
      %s99 = sphi 0, %s97
      %s100 = sphi 0, %s99
      %s114 = sphi 0, %s100
      %s118 = sphi 0, %s118
      %s120 = sphi 0, %s118
      %s121 = sphi 0, %s120
      %s135 = sphi 0, %s121
      %s139 = sphi 0, %s139
      %s141 = sphi 0, %s139
      %s142 = sphi 0, %s141
      %s156 = sphi 0, %s142
      %s160 = sphi 0, %s160
      %s162 = sphi 0, %s160
      %s163 = sphi 0, %s162
      %s177 = sphi 0, %s163
      %s181 = sphi 0, %s181
      %s183 = sphi 0, %s181
      %s184 = sphi 0, %s183
      %s198 = sphi 0, %s184
      %s202 = sphi 0, %s202
      %s204 = sphi 0, %s202
      %s205 = sphi 0, %s204
      %s219 = sphi 0, %s205
      %s223 = sphi 0, %s223
      %s225 = sphi 0, %s223
      %s226 = sphi 0, %s225
      %s240 = sphi 0, %s226
      %s244 = sphi 0, %s244
      %s246 = sphi 0, %s244
      %s247 = sphi 0, %s246
      %s261 = sphi 0, %s247
      %s265 = sphi 0, %s265
      %s267 = sphi 0, %s265
      %s268 = sphi 0, %s267
      %s282 = sphi 0, %s268
      %s288 = sphi 0, %s290
      %s291 = sphi 0, %s288
      %s292 = sphi 0, %s291
      %s308 = sphi 0, %s292
    $region4: #{tpu_custom_call.1} parent=1 // loop_header_branch
      %24 = sbr.rel (%p22) target = $region8
    $region5: #{tpu_custom_call.1} parent=1 // loop_body
      %s26 = ssub.s32 %s21, 1
      %s27 = ssub.s32 %s21, 2
      %s28 = sadd.s32 %s21, 1
      %s29 = ssub.s32 %s21, %s28
      %p30 = scmp.eq.s32.totalorder %s29, 0
      %s32 = sadd.s32 %s31, 1
      %s33 = scalar_select %p30, %s31, %s32
      %p36 = pneg %p30
      %p37 = scmp.eq.s32.totalorder %s21, 1
      %p38 = por %p36, %p37
      %p39 = scmp.ne.s32.totalorder %s31, %s34
      %p40 = scmp.eq.s32.totalorder %s21, 0
      %p41 = por %p39, %p40
      %p42 = scmp.ne.s32.totalorder %s31, %s34
      %p43 = scmp.eq.s32.totalorder %s26, 1
      %p44 = por %p42, %p43
      %p45 = scmp.ne.s32.totalorder %s34, %s35
      %p46 = scmp.eq.s32.totalorder %s26, 0
      %p47 = por %p45, %p46
      %p48 = scmp.ne.s32.totalorder %s34, %s35
      %p49 = scmp.eq.s32.totalorder %s27, 1
      %p50 = por %p48, %p49
      %p52 = scmp.ne.s32.totalorder %s35, %s51
      %p53 = scmp.eq.s32.totalorder %s27, 0
      %p54 = por %p52, %p53
      %s56 = sadd.s32 %s55, 1
      %p59 = scmp.eq.s32.totalorder %s21, 1
      %p60 = scmp.ne.s32.totalorder %s55, %s57
      %p61 = scmp.eq.s32.totalorder %s21, 0
      %p62 = por %p60, %p61
      %p63 = scmp.ne.s32.totalorder %s55, %s57
      %p64 = scmp.eq.s32.totalorder %s26, 1
      %p65 = por %p63, %p64
      %p66 = scmp.ne.s32.totalorder %s57, %s58
      %p67 = scmp.eq.s32.totalorder %s26, 0
      %p68 = por %p66, %p67
      %p69 = scmp.ne.s32.totalorder %s57, %s58
      %p70 = scmp.eq.s32.totalorder %s27, 1
      %p71 = por %p69, %p70
      %p73 = scmp.ne.s32.totalorder %s58, %s72
      %p74 = scmp.eq.s32.totalorder %s27, 0
      %p75 = por %p73, %p74
      %s77 = sadd.s32 %s76, 1
      %p80 = scmp.eq.s32.totalorder %s21, 1
      %p81 = scmp.ne.s32.totalorder %s76, %s78
      %p82 = scmp.eq.s32.totalorder %s21, 0
      %p83 = por %p81, %p82
      %p84 = scmp.ne.s32.totalorder %s76, %s78
      %p85 = scmp.eq.s32.totalorder %s26, 1
      %p86 = por %p84, %p85
      %p87 = scmp.ne.s32.totalorder %s78, %s79
      %p88 = scmp.eq.s32.totalorder %s26, 0
      %p89 = por %p87, %p88
      %p90 = scmp.ne.s32.totalorder %s78, %s79
      %p91 = scmp.eq.s32.totalorder %s27, 1
      %p92 = por %p90, %p91
      %p94 = scmp.ne.s32.totalorder %s79, %s93
      %p95 = scmp.eq.s32.totalorder %s27, 0
      %p96 = por %p94, %p95
      %s98 = sadd.s32 %s97, 1
      %p101 = scmp.eq.s32.totalorder %s21, 1
      %p102 = scmp.ne.s32.totalorder %s97, %s99
      %p103 = scmp.eq.s32.totalorder %s21, 0
      %p104 = por %p102, %p103
      %p105 = scmp.ne.s32.totalorder %s97, %s99
      %p106 = scmp.eq.s32.totalorder %s26, 1
      %p107 = por %p105, %p106
      %p108 = scmp.ne.s32.totalorder %s99, %s100
      %p109 = scmp.eq.s32.totalorder %s26, 0
      %p110 = por %p108, %p109
      %p111 = scmp.ne.s32.totalorder %s99, %s100
      %p112 = scmp.eq.s32.totalorder %s27, 1
      %p113 = por %p111, %p112
      %p115 = scmp.ne.s32.totalorder %s100, %s114
      %p116 = scmp.eq.s32.totalorder %s27, 0
      %p117 = por %p115, %p116
      %s119 = sadd.s32 %s118, 1
      %p122 = scmp.eq.s32.totalorder %s21, 1
      %p123 = scmp.ne.s32.totalorder %s118, %s120
      %p124 = scmp.eq.s32.totalorder %s21, 0
      %p125 = por %p123, %p124
      %p126 = scmp.ne.s32.totalorder %s118, %s120
      %p127 = scmp.eq.s32.totalorder %s26, 1
      %p128 = por %p126, %p127
      %p129 = scmp.ne.s32.totalorder %s120, %s121
      %p130 = scmp.eq.s32.totalorder %s26, 0
      %p131 = por %p129, %p130
      %p132 = scmp.ne.s32.totalorder %s120, %s121
      %p133 = scmp.eq.s32.totalorder %s27, 1
      %p134 = por %p132, %p133
      %p136 = scmp.ne.s32.totalorder %s121, %s135
      %p137 = scmp.eq.s32.totalorder %s27, 0
      %p138 = por %p136, %p137
      %s140 = sadd.s32 %s139, 1
      %p143 = scmp.eq.s32.totalorder %s21, 1
      %p144 = scmp.ne.s32.totalorder %s139, %s141
      %p145 = scmp.eq.s32.totalorder %s21, 0
      %p146 = por %p144, %p145
      %p147 = scmp.ne.s32.totalorder %s139, %s141
      %p148 = scmp.eq.s32.totalorder %s26, 1
      %p149 = por %p147, %p148
      %p150 = scmp.ne.s32.totalorder %s141, %s142
      %p151 = scmp.eq.s32.totalorder %s26, 0
      %p152 = por %p150, %p151
      %p153 = scmp.ne.s32.totalorder %s141, %s142
      %p154 = scmp.eq.s32.totalorder %s27, 1
      %p155 = por %p153, %p154
      %p157 = scmp.ne.s32.totalorder %s142, %s156
      %p158 = scmp.eq.s32.totalorder %s27, 0
      %p159 = por %p157, %p158
      %s161 = sadd.s32 %s160, 1
      %p164 = scmp.eq.s32.totalorder %s21, 1
      %p165 = scmp.ne.s32.totalorder %s160, %s162
      %p166 = scmp.eq.s32.totalorder %s21, 0
      %p167 = por %p165, %p166
      %p168 = scmp.ne.s32.totalorder %s160, %s162
      %p169 = scmp.eq.s32.totalorder %s26, 1
      %p170 = por %p168, %p169
      %p171 = scmp.ne.s32.totalorder %s162, %s163
      %p172 = scmp.eq.s32.totalorder %s26, 0
      %p173 = por %p171, %p172
      %p174 = scmp.ne.s32.totalorder %s162, %s163
      %p175 = scmp.eq.s32.totalorder %s27, 1
      %p176 = por %p174, %p175
      %p178 = scmp.ne.s32.totalorder %s163, %s177
      %p179 = scmp.eq.s32.totalorder %s27, 0
      %p180 = por %p178, %p179
      %s182 = sadd.s32 %s181, 1
      %p185 = scmp.eq.s32.totalorder %s21, 1
      %p186 = scmp.ne.s32.totalorder %s181, %s183
      %p187 = scmp.eq.s32.totalorder %s21, 0
      %p188 = por %p186, %p187
      %p189 = scmp.ne.s32.totalorder %s181, %s183
      %p190 = scmp.eq.s32.totalorder %s26, 1
      %p191 = por %p189, %p190
      %p192 = scmp.ne.s32.totalorder %s183, %s184
      %p193 = scmp.eq.s32.totalorder %s26, 0
      %p194 = por %p192, %p193
      %p195 = scmp.ne.s32.totalorder %s183, %s184
      %p196 = scmp.eq.s32.totalorder %s27, 1
      %p197 = por %p195, %p196
      %p199 = scmp.ne.s32.totalorder %s184, %s198
      %p200 = scmp.eq.s32.totalorder %s27, 0
      %p201 = por %p199, %p200
      %s203 = sadd.s32 %s202, 1
      %p206 = scmp.eq.s32.totalorder %s21, 1
      %p207 = scmp.ne.s32.totalorder %s202, %s204
      %p208 = scmp.eq.s32.totalorder %s21, 0
      %p209 = por %p207, %p208
      %p210 = scmp.ne.s32.totalorder %s202, %s204
      %p211 = scmp.eq.s32.totalorder %s26, 1
      %p212 = por %p210, %p211
      %p213 = scmp.ne.s32.totalorder %s204, %s205
      %p214 = scmp.eq.s32.totalorder %s26, 0
      %p215 = por %p213, %p214
      %p216 = scmp.ne.s32.totalorder %s204, %s205
      %p217 = scmp.eq.s32.totalorder %s27, 1
      %p218 = por %p216, %p217
      %p220 = scmp.ne.s32.totalorder %s205, %s219
      %p221 = scmp.eq.s32.totalorder %s27, 0
      %p222 = por %p220, %p221
      %s224 = sadd.s32 %s223, 1
      %p227 = scmp.eq.s32.totalorder %s21, 1
      %p228 = scmp.ne.s32.totalorder %s223, %s225
      %p229 = scmp.eq.s32.totalorder %s21, 0
      %p230 = por %p228, %p229
      %p231 = scmp.ne.s32.totalorder %s223, %s225
      %p232 = scmp.eq.s32.totalorder %s26, 1
      %p233 = por %p231, %p232
      %p234 = scmp.ne.s32.totalorder %s225, %s226
      %p235 = scmp.eq.s32.totalorder %s26, 0
      %p236 = por %p234, %p235
      %p237 = scmp.ne.s32.totalorder %s225, %s226
      %p238 = scmp.eq.s32.totalorder %s27, 1
      %p239 = por %p237, %p238
      %p241 = scmp.ne.s32.totalorder %s226, %s240
      %p242 = scmp.eq.s32.totalorder %s27, 0
      %p243 = por %p241, %p242
      %s245 = sadd.s32 %s244, 1
      %p248 = scmp.eq.s32.totalorder %s21, 1
      %p249 = scmp.ne.s32.totalorder %s244, %s246
      %p250 = scmp.eq.s32.totalorder %s21, 0
      %p251 = por %p249, %p250
      %p252 = scmp.ne.s32.totalorder %s244, %s246
      %p253 = scmp.eq.s32.totalorder %s26, 1
      %p254 = por %p252, %p253
      %p255 = scmp.ne.s32.totalorder %s246, %s247
      %p256 = scmp.eq.s32.totalorder %s26, 0
      %p257 = por %p255, %p256
      %p258 = scmp.ne.s32.totalorder %s246, %s247
      %p259 = scmp.eq.s32.totalorder %s27, 1
      %p260 = por %p258, %p259
      %p262 = scmp.ne.s32.totalorder %s247, %s261
      %p263 = scmp.eq.s32.totalorder %s27, 0
      %p264 = por %p262, %p263
      %s266 = sadd.s32 %s265, 1
      %p269 = scmp.eq.s32.totalorder %s21, 1
      %p270 = scmp.ne.s32.totalorder %s265, %s267
      %p271 = scmp.eq.s32.totalorder %s21, 0
      %p272 = por %p270, %p271
      %p273 = scmp.ne.s32.totalorder %s265, %s267
      %p274 = scmp.eq.s32.totalorder %s26, 1
      %p275 = por %p273, %p274
      %p276 = scmp.ne.s32.totalorder %s267, %s268
      %p277 = scmp.eq.s32.totalorder %s26, 0
      %p278 = por %p276, %p277
      %p279 = scmp.ne.s32.totalorder %s267, %s268
      %p280 = scmp.eq.s32.totalorder %s27, 1
      %p281 = por %p279, %p280
      %p283 = scmp.ne.s32.totalorder %s268, %s282
      %p284 = scmp.eq.s32.totalorder %s27, 0
      %p285 = por %p283, %p284
      %s286 = ssub.s32 %s21, %s28
      %p287 = scmp.eq.s32.totalorder %s286, 0
      %s289 = sadd.s32 %s288, 1
      %s290 = scalar_select %p287, %s288, %s289
      %p293 = pneg %p287
      %p294 = scmp.eq.s32.totalorder %s21, 1
      %p295 = por %p293, %p294
      %p296 = scmp.ne.s32.totalorder %s288, %s291
      %p297 = scmp.eq.s32.totalorder %s21, 0
      %p298 = por %p296, %p297
      %p299 = scmp.ne.s32.totalorder %s288, %s291
      %p300 = scmp.eq.s32.totalorder %s26, 1
      %p301 = por %p299, %p300
      %p302 = scmp.ne.s32.totalorder %s291, %s292
      %p303 = scmp.eq.s32.totalorder %s26, 0
      %p304 = por %p302, %p303
      %p305 = scmp.ne.s32.totalorder %s291, %s292
      %p306 = scmp.eq.s32.totalorder %s27, 1
      %p307 = por %p305, %p306
      %p309 = scmp.ne.s32.totalorder %s292, %s308
      %p310 = scmp.eq.s32.totalorder %s27, 0
      %p311 = por %p309, %p310
      %p312 = scmp.le.s32.totalorder 1, %s21
      %p313 = scmp.lt.s32.totalorder %s21, 3
      %p314 = pnand %p312, %p313
      %p315 = pneg %p314
      // Predicated region
      $region9: #{tpu_custom_call.1} parent=5 // pred_check
        _
      $region10: #{tpu_custom_call.1} parent=5 // pred_check_branch
        %317 = sbr.rel (%p314) target = $region12
      $region11: #{tpu_custom_call.1} parent=5 // pred_region
        %s318 = ssub.s32 %s21, 1
        // Predicated region
        $region13: #{tpu_custom_call.1} parent=11 // pred_check
          %p319 = pneg %p68
        $region14: #{tpu_custom_call.1} parent=11 // pred_check_branch
          %321 = sbr.rel (%p319) target = $region16
        $region15: #{tpu_custom_call.1} parent=11 // pred_region
          _
        $region16: #{tpu_custom_call.1} parent=11 // pred_fallthru
          _
        // Predicated region
        $region17: #{tpu_custom_call.1} parent=11 // pred_check
          %p322 = pneg %p89
        $region18: #{tpu_custom_call.1} parent=11 // pred_check_branch
          %324 = sbr.rel (%p322) target = $region20
        $region19: #{tpu_custom_call.1} parent=11 // pred_region
          _
        $region20: #{tpu_custom_call.1} parent=11 // pred_fallthru
          _
        // Predicated region
        $region21: #{tpu_custom_call.1} parent=11 // pred_check
          %p325 = pneg %p110
        $region22: #{tpu_custom_call.1} parent=11 // pred_check_branch
          %327 = sbr.rel (%p325) target = $region24
        $region23: #{tpu_custom_call.1} parent=11 // pred_region
          _
        $region24: #{tpu_custom_call.1} parent=11 // pred_fallthru
          _
        // Predicated region
        $region25: #{tpu_custom_call.1} parent=11 // pred_check
          %p328 = pneg %p131
        $region26: #{tpu_custom_call.1} parent=11 // pred_check_branch
          %330 = sbr.rel (%p328) target = $region28
        $region27: #{tpu_custom_call.1} parent=11 // pred_region
          _
        $region28: #{tpu_custom_call.1} parent=11 // pred_fallthru
          _
        // Predicated region
        $region29: #{tpu_custom_call.1} parent=11 // pred_check
          %p331 = pneg %p152
        $region30: #{tpu_custom_call.1} parent=11 // pred_check_branch
          %333 = sbr.rel (%p331) target = $region32
        $region31: #{tpu_custom_call.1} parent=11 // pred_region
          _
        $region32: #{tpu_custom_call.1} parent=11 // pred_fallthru
          _
        // Predicated region
        $region33: #{tpu_custom_call.1} parent=11 // pred_check
          %p334 = pneg %p173
        $region34: #{tpu_custom_call.1} parent=11 // pred_check_branch
          %336 = sbr.rel (%p334) target = $region36
        $region35: #{tpu_custom_call.1} parent=11 // pred_region
          _
        $region36: #{tpu_custom_call.1} parent=11 // pred_fallthru
          _
        // Predicated region
        $region37: #{tpu_custom_call.1} parent=11 // pred_check
          %p337 = pneg %p194
        $region38: #{tpu_custom_call.1} parent=11 // pred_check_branch
          %339 = sbr.rel (%p337) target = $region40
        $region39: #{tpu_custom_call.1} parent=11 // pred_region
          _
        $region40: #{tpu_custom_call.1} parent=11 // pred_fallthru
          _
        // Predicated region
        $region41: #{tpu_custom_call.1} parent=11 // pred_check
          %p340 = pneg %p215
        $region42: #{tpu_custom_call.1} parent=11 // pred_check_branch
          %342 = sbr.rel (%p340) target = $region44
        $region43: #{tpu_custom_call.1} parent=11 // pred_region
          _
        $region44: #{tpu_custom_call.1} parent=11 // pred_fallthru
          _
        // Predicated region
        $region45: #{tpu_custom_call.1} parent=11 // pred_check
          %p343 = pneg %p236
        $region46: #{tpu_custom_call.1} parent=11 // pred_check_branch
          %345 = sbr.rel (%p343) target = $region48
        $region47: #{tpu_custom_call.1} parent=11 // pred_region
          _
        $region48: #{tpu_custom_call.1} parent=11 // pred_fallthru
          _
        // Predicated region
        $region49: #{tpu_custom_call.1} parent=11 // pred_check
          %p346 = pneg %p257
        $region50: #{tpu_custom_call.1} parent=11 // pred_check_branch
          %348 = sbr.rel (%p346) target = $region52
        $region51: #{tpu_custom_call.1} parent=11 // pred_region
          _
        $region52: #{tpu_custom_call.1} parent=11 // pred_fallthru
          _
        // Predicated region
        $region53: #{tpu_custom_call.1} parent=11 // pred_check
          %p349 = pneg %p278
        $region54: #{tpu_custom_call.1} parent=11 // pred_check_branch
          %351 = sbr.rel (%p349) target = $region56
        $region55: #{tpu_custom_call.1} parent=11 // pred_region
          _
        $region56: #{tpu_custom_call.1} parent=11 // pred_fallthru
          _
      $region12: #{tpu_custom_call.1} parent=5 // pred_fallthru
        _
      %p352 = scmp.lt.s32.totalorder %s21, 2
      // Predicated region
      $region57: #{tpu_custom_call.1} parent=5 // pred_check
        %p353 = pneg %p352
      $region58: #{tpu_custom_call.1} parent=5 // pred_check_branch
        %355 = sbr.rel (%p353) target = $region60
      $region59: #{tpu_custom_call.1} parent=5 // pred_region
        // Predicated region
        $region61: #{tpu_custom_call.1} parent=59 // pred_check
          %p356 = pneg %p41
        $region62: #{tpu_custom_call.1} parent=59 // pred_check_branch
          %358 = sbr.rel (%p356) target = $region64
        $region63: #{tpu_custom_call.1} parent=59 // pred_region
          %p359 = scmp.lt.s32.totalorder %s21, 1
          %s360 = scalar_select %p359, %s21, 1
          %s361 = smul.addr %s360, 8
          %s362 = scalar_lea.vmem %s0, %s361
        $region64: #{tpu_custom_call.1} parent=59 // pred_fallthru
          _
      $region60: #{tpu_custom_call.1} parent=5 // pred_fallthru
        _
      %p363 = scmp.le.s32.totalorder 1, %s21
      %p364 = scmp.lt.s32.totalorder %s21, 3
      %p365 = pnand %p363, %p364
      %p366 = pneg %p365
      // Predicated region
      $region65: #{tpu_custom_call.1} parent=5 // pred_check
        _
      $region66: #{tpu_custom_call.1} parent=5 // pred_check_branch
        %368 = sbr.rel (%p365) target = $region68
      $region67: #{tpu_custom_call.1} parent=5 // pred_region
        %s369 = ssub.s32 %s21, 1
        %p370 = scmp.lt.s32.totalorder %s26, 1
        %s371 = scalar_select %p370, %s26, 1
        %s372 = smul.addr %s371, 8
        %s373 = scalar_lea.vmem %s0, %s372
        %p374 = pneg %p47
        %p375 = pneg %p44
        %p376 = pneg %p68
        %p377 = pneg %p65
        %p378 = pneg %p89
        %p379 = pneg %p86
        %p380 = pneg %p110
        %p381 = pneg %p107
        %p382 = pneg %p131
        %p383 = pneg %p128
        %p384 = pneg %p152
        %p385 = pneg %p149
        %p386 = pneg %p173
        %p387 = pneg %p170
        %p388 = pneg %p194
        %p389 = pneg %p191
        %p390 = pneg %p215
        %p391 = pneg %p212
        %p392 = pneg %p236
        %p393 = pneg %p233
        %p394 = pneg %p257
        %p395 = pneg %p254
        %p396 = pneg %p278
        %p397 = pneg %p275
        %p398 = pneg %p304
        %p399 = pneg %p301
        %s400 = sand.u32 %s291, 1
        %s401 = scalar_lea.sflag [#allocation3], %s400
        %s402 = sand.u32 %s291, 1
        %s403 = scalar_lea.vmem [#allocation2], %s402
        %p404 = scmp.lt.s32.totalorder %s26, 1
        %s405 = scalar_select %p404, %s26, 1
        %s406 = smul.addr %s405, 8
        %s407 = scalar_lea.vmem %s0, %s406
        %v408 = vld [vmem:[%s407] sm:$0xff]
        %v409 = vlaneseq
        %v410 = vand.u32 %v409, 127
        %411 = vset.pattern.permute.xlu0 0
        %412 = vperm.xlu0 %411, %v408
        %v413 = vpop.permute.xlu0 %412
        %vm414 = vcmp.eq.s32.totalorder %v410, %v413
        %v415 = vsel %vm414, 1, 0
        %v416 = vcvt.s32.f32 %v415
        %v417 = vld [vmem:[%s1] sm:$0xff]
        %v418 = vld [vmem:[%s1 + $0x8] sm:$0xff]
        %v419 = vld [vmem:[%s1 + $0x10] sm:$0xff]
        %v420 = vld [vmem:[%s1 + $0x18] sm:$0xff]
        %v421 = vld [vmem:[%s2] sm:$0xff]
        %vm422 = vcmask 261120
        %v424 = vsel %vm422, %v416, 0
        %426 = vmatprep.subr.mxu0 0.0
        %427 = vmatpush1.msra.mxu0 0.0
        %428 = vmatprep.subr.mxu0 0.0
        %429 = vmatpush1.msra.mxu0 0.0
        %430 = vmatprep.subr.mxu0 0.0
        %431 = vmatpush1.msra.mxu0 0.0
        %432 = vmatprep.subr.mxu0 0.0
        %433 = vmatpush1.msra.mxu0 0.0
        %434 = vmatprep.subr.mxu0 0.0
        %435 = vmatpush1.msra.mxu0 0.0
        %436 = vmatprep.subr.mxu0 0.0
        %437 = vmatpush1.msra.mxu0 0.0
        %438 = vmatprep.subr.mxu0 0.0
        %439 = vmatpush1.msra.mxu0 0.0
        %440 = vmatprep.subr.mxu0 0.0
        %441 = vmatpush1.msra.mxu0 0.0
        %442 = vmatprep.subr.mxu0 0.0
        %443 = vmatpush1.msra.mxu0 0.0
        %444 = vmatprep.subr.mxu0 0.0
        %445 = vmatpush1.msra.mxu0 0.0
        %446 = vmatprep.subr.mxu0 0.0
        %447 = vmatpush1.msra.mxu0 0.0
        %448 = vmatprep.subr.mxu0 0.0
        %449 = vmatpush1.msra.mxu0 0.0
        %450 = vmatprep.subr.mxu0 0.0
        %451 = vmatpush1.msra.mxu0 %v420
        %452 = vmatprep.subr.mxu0 0.0
        %453 = vmatpush1.msra.mxu0 %v419
        %454 = vmatprep.subr.mxu0 0.0
        %455 = vmatpush1.msra.mxu0 %v418
        %456 = vmatprep.subr.mxu0 0.0
        %457 = vmatpush1.msra.mxu0 %v417
        %458 = vmatprep.subr.mxu0 0.0
        %459 = vmatpush2.msra.mxu0 0.0
        %460 = vmatprep.subr.mxu0 0.0
        %461 = vmatpush2.msra.mxu0 0.0
        %462 = vmatprep.subr.mxu0 0.0
        %463 = vmatpush2.msra.mxu0 0.0
        %464 = vmatprep.subr.mxu0 0.0
        %465 = vmatpush2.msra.mxu0 0.0
        %466 = vmatprep.subr.mxu0 0.0
        %467 = vmatpush2.msra.mxu0 0.0
        %468 = vmatprep.subr.mxu0 0.0
        %469 = vmatpush2.msra.mxu0 0.0
        %470 = vmatprep.subr.mxu0 0.0
        %471 = vmatpush2.msra.mxu0 0.0
        %472 = vmatprep.subr.mxu0 0.0
        %473 = vmatpush2.msra.mxu0 0.0
        %474 = vmatprep.subr.mxu0 0.0
        %475 = vmatpush2.msra.mxu0 0.0
        %476 = vmatprep.subr.mxu0 0.0
        %477 = vmatpush2.msra.mxu0 0.0
        %478 = vmatprep.subr.mxu0 0.0
        %479 = vmatpush2.msra.mxu0 0.0
        %480 = vmatprep.subr.mxu0 0.0
        %481 = vmatpush2.msra.mxu0 0.0
        %482 = vmatprep.subr.mxu0 0.0
        %483 = vmatpush2.msra.mxu0 0.0
        %484 = vmatprep.subr.mxu0 0.0
        %485 = vmatpush2.msra.mxu0 0.0
        %486 = vmatprep.subr.mxu0 0.0
        %487 = vmatpush2.msra.mxu0 0.0
        %488 = vmatprep.subr.mxu0 0.0
        %489 = vmatpush2.msra.mxu0 0.0
        %490 = vmatprep.mubr.f32.mxu0 0.0
        %491 = vmatmul.mubr.f32.gmra.mxu0 %v424
        %v492 = vpop.f32.mrf.mxu0
        %v493 = vadd.f32 %v421, %v492
        %v494 = vpop.f32.mrf.mxu0
        %495 = vdwg.mxu0
        %v496 = vld [vmem:[%s3] sm:$0xff]
        %v497 = vld [vmem:[%s3 + $0x8] sm:$0xff]
        %v498 = vld [vmem:[%s3 + $0x10] sm:$0xff]
        %v499 = vld [vmem:[%s3 + $0x18] sm:$0xff]
        %v500 = vld [vmem:[%s4] sm:$0x1]
        %v502 = vlaneseq
        %v503 = vshrl.u32 %v502, 7
        %v504 = vsub.s32 0, %v503
        %v505 = vrot.slane %v500, %v504
        %v508 = vsel %vm422, %v493, 0
        %510 = vmatprep.subr.mxu0 0.0
        %511 = vmatpush1.msra.mxu0 0.0
        %512 = vmatprep.subr.mxu0 0.0
        %513 = vmatpush1.msra.mxu0 0.0
        %514 = vmatprep.subr.mxu0 0.0
        %515 = vmatpush1.msra.mxu0 0.0
        %516 = vmatprep.subr.mxu0 0.0
        %517 = vmatpush1.msra.mxu0 0.0
        %518 = vmatprep.subr.mxu0 0.0
        %519 = vmatpush1.msra.mxu0 0.0
        %520 = vmatprep.subr.mxu0 0.0
        %521 = vmatpush1.msra.mxu0 0.0
        %522 = vmatprep.subr.mxu0 0.0
        %523 = vmatpush1.msra.mxu0 0.0
        %524 = vmatprep.subr.mxu0 0.0
        %525 = vmatpush1.msra.mxu0 0.0
        %526 = vmatprep.subr.mxu0 0.0
        %527 = vmatpush1.msra.mxu0 0.0
        %528 = vmatprep.subr.mxu0 0.0
        %529 = vmatpush1.msra.mxu0 0.0
        %530 = vmatprep.subr.mxu0 0.0
        %531 = vmatpush1.msra.mxu0 0.0
        %532 = vmatprep.subr.mxu0 0.0
        %533 = vmatpush1.msra.mxu0 0.0
        %534 = vmatprep.subr.mxu0 0.0
        %535 = vmatpush1.msra.mxu0 %v499
        %536 = vmatprep.subr.mxu0 0.0
        %537 = vmatpush1.msra.mxu0 %v498
        %538 = vmatprep.subr.mxu0 0.0
        %539 = vmatpush1.msra.mxu0 %v497
        %540 = vmatprep.subr.mxu0 0.0
        %541 = vmatpush1.msra.mxu0 %v496
        %542 = vmatprep.subr.mxu0 0.0
        %543 = vmatpush2.msra.mxu0 0.0
        %544 = vmatprep.subr.mxu0 0.0
        %545 = vmatpush2.msra.mxu0 0.0
        %546 = vmatprep.subr.mxu0 0.0
        %547 = vmatpush2.msra.mxu0 0.0
        %548 = vmatprep.subr.mxu0 0.0
        %549 = vmatpush2.msra.mxu0 0.0
        %550 = vmatprep.subr.mxu0 0.0
        %551 = vmatpush2.msra.mxu0 0.0
        %552 = vmatprep.subr.mxu0 0.0
        %553 = vmatpush2.msra.mxu0 0.0
        %554 = vmatprep.subr.mxu0 0.0
        %555 = vmatpush2.msra.mxu0 0.0
        %556 = vmatprep.subr.mxu0 0.0
        %557 = vmatpush2.msra.mxu0 0.0
        %558 = vmatprep.subr.mxu0 0.0
        %559 = vmatpush2.msra.mxu0 0.0
        %560 = vmatprep.subr.mxu0 0.0
        %561 = vmatpush2.msra.mxu0 0.0
        %562 = vmatprep.subr.mxu0 0.0
        %563 = vmatpush2.msra.mxu0 0.0
        %564 = vmatprep.subr.mxu0 0.0
        %565 = vmatpush2.msra.mxu0 0.0
        %566 = vmatprep.subr.mxu0 0.0
        %567 = vmatpush2.msra.mxu0 0.0
        %568 = vmatprep.subr.mxu0 0.0
        %569 = vmatpush2.msra.mxu0 0.0
        %570 = vmatprep.subr.mxu0 0.0
        %571 = vmatpush2.msra.mxu0 0.0
        %572 = vmatprep.subr.mxu0 0.0
        %573 = vmatpush2.msra.mxu0 0.0
        %574 = vmatprep.mubr.f32.mxu0 0.0
        %575 = vmatmul.mubr.f32.gmra.mxu0 %v508
        %v576 = vpop.f32.mrf.mxu0
        %v577 = vadd.f32 %v505, %v576
        %v578 = vpop.f32.mrf.mxu0
        %579 = vdwg.mxu0
        %s580 = scalar_lea.vmem %s3, 128
        %v581 = vld [vmem:[%s580] sm:$0xff]
        %v582 = vld [vmem:[%s580 + $0x8] sm:$0xff]
        %v583 = vld [vmem:[%s580 + $0x10] sm:$0xff]
        %v584 = vld [vmem:[%s580 + $0x18] sm:$0xff]
        %s585 = scalar_lea.vmem %s4, 4
        %v586 = vld [vmem:[%s585] sm:$0x1]
        %v588 = vlaneseq
        %v589 = vshrl.u32 %v588, 7
        %v590 = vsub.s32 0, %v589
        %v591 = vrot.slane %v586, %v590
        %593 = vmatprep.subr.mxu0 0.0
        %594 = vmatpush1.msra.mxu0 0.0
        %595 = vmatprep.subr.mxu0 0.0
        %596 = vmatpush1.msra.mxu0 0.0
        %597 = vmatprep.subr.mxu0 0.0
        %598 = vmatpush1.msra.mxu0 0.0
        %599 = vmatprep.subr.mxu0 0.0
        %600 = vmatpush1.msra.mxu0 0.0
        %601 = vmatprep.subr.mxu0 0.0
        %602 = vmatpush1.msra.mxu0 0.0
        %603 = vmatprep.subr.mxu0 0.0
        %604 = vmatpush1.msra.mxu0 0.0
        %605 = vmatprep.subr.mxu0 0.0
        %606 = vmatpush1.msra.mxu0 0.0
        %607 = vmatprep.subr.mxu0 0.0
        %608 = vmatpush1.msra.mxu0 0.0
        %609 = vmatprep.subr.mxu0 0.0
        %610 = vmatpush1.msra.mxu0 0.0
        %611 = vmatprep.subr.mxu0 0.0
        %612 = vmatpush1.msra.mxu0 0.0
        %613 = vmatprep.subr.mxu0 0.0
        %614 = vmatpush1.msra.mxu0 0.0
        %615 = vmatprep.subr.mxu0 0.0
        %616 = vmatpush1.msra.mxu0 0.0
        %617 = vmatprep.subr.mxu0 0.0
        %618 = vmatpush1.msra.mxu0 %v584
        %619 = vmatprep.subr.mxu0 0.0
        %620 = vmatpush1.msra.mxu0 %v583
        %621 = vmatprep.subr.mxu0 0.0
        %622 = vmatpush1.msra.mxu0 %v582
        %623 = vmatprep.subr.mxu0 0.0
        %624 = vmatpush1.msra.mxu0 %v581
        %625 = vmatprep.subr.mxu0 0.0
        %626 = vmatpush2.msra.mxu0 0.0
        %627 = vmatprep.subr.mxu0 0.0
        %628 = vmatpush2.msra.mxu0 0.0
        %629 = vmatprep.subr.mxu0 0.0
        %630 = vmatpush2.msra.mxu0 0.0
        %631 = vmatprep.subr.mxu0 0.0
        %632 = vmatpush2.msra.mxu0 0.0
        %633 = vmatprep.subr.mxu0 0.0
        %634 = vmatpush2.msra.mxu0 0.0
        %635 = vmatprep.subr.mxu0 0.0
        %636 = vmatpush2.msra.mxu0 0.0
        %637 = vmatprep.subr.mxu0 0.0
        %638 = vmatpush2.msra.mxu0 0.0
        %639 = vmatprep.subr.mxu0 0.0
        %640 = vmatpush2.msra.mxu0 0.0
        %641 = vmatprep.subr.mxu0 0.0
        %642 = vmatpush2.msra.mxu0 0.0
        %643 = vmatprep.subr.mxu0 0.0
        %644 = vmatpush2.msra.mxu0 0.0
        %645 = vmatprep.subr.mxu0 0.0
        %646 = vmatpush2.msra.mxu0 0.0
        %647 = vmatprep.subr.mxu0 0.0
        %648 = vmatpush2.msra.mxu0 0.0
        %649 = vmatprep.subr.mxu0 0.0
        %650 = vmatpush2.msra.mxu0 0.0
        %651 = vmatprep.subr.mxu0 0.0
        %652 = vmatpush2.msra.mxu0 0.0
        %653 = vmatprep.subr.mxu0 0.0
        %654 = vmatpush2.msra.mxu0 0.0
        %655 = vmatprep.subr.mxu0 0.0
        %656 = vmatpush2.msra.mxu0 0.0
        %657 = vmatprep.mubr.f32.mxu0 0.0
        %658 = vmatmul.mubr.f32.gmra.mxu0 %v508
        %v659 = vpop.f32.mrf.mxu0
        %v660 = vadd.f32 %v591, %v659
        %v661 = vpop.f32.mrf.mxu0
        %662 = vdwg.mxu0
        %s663 = scalar_lea.vmem %s3, 256
        %v664 = vld [vmem:[%s663] sm:$0xff]
        %v665 = vld [vmem:[%s663 + $0x8] sm:$0xff]
        %v666 = vld [vmem:[%s663 + $0x10] sm:$0xff]
        %v667 = vld [vmem:[%s663 + $0x18] sm:$0xff]
        %s668 = scalar_lea.vmem %s4, 8
        %v669 = vld [vmem:[%s668] sm:$0x1]
        %v671 = vlaneseq
        %v672 = vshrl.u32 %v671, 7
        %v673 = vsub.s32 0, %v672
        %v674 = vrot.slane %v669, %v673
        %676 = vmatprep.subr.mxu0 0.0
        %677 = vmatpush1.msra.mxu0 0.0
        %678 = vmatprep.subr.mxu0 0.0
        %679 = vmatpush1.msra.mxu0 0.0
        %680 = vmatprep.subr.mxu0 0.0
        %681 = vmatpush1.msra.mxu0 0.0
        %682 = vmatprep.subr.mxu0 0.0
        %683 = vmatpush1.msra.mxu0 0.0
        %684 = vmatprep.subr.mxu0 0.0
        %685 = vmatpush1.msra.mxu0 0.0
        %686 = vmatprep.subr.mxu0 0.0
        %687 = vmatpush1.msra.mxu0 0.0
        %688 = vmatprep.subr.mxu0 0.0
        %689 = vmatpush1.msra.mxu0 0.0
        %690 = vmatprep.subr.mxu0 0.0
        %691 = vmatpush1.msra.mxu0 0.0
        %692 = vmatprep.subr.mxu0 0.0
        %693 = vmatpush1.msra.mxu0 0.0
        %694 = vmatprep.subr.mxu0 0.0
        %695 = vmatpush1.msra.mxu0 0.0
        %696 = vmatprep.subr.mxu0 0.0
        %697 = vmatpush1.msra.mxu0 0.0
        %698 = vmatprep.subr.mxu0 0.0
        %699 = vmatpush1.msra.mxu0 0.0
        %700 = vmatprep.subr.mxu0 0.0
        %701 = vmatpush1.msra.mxu0 %v667
        %702 = vmatprep.subr.mxu0 0.0
        %703 = vmatpush1.msra.mxu0 %v666
        %704 = vmatprep.subr.mxu0 0.0
        %705 = vmatpush1.msra.mxu0 %v665
        %706 = vmatprep.subr.mxu0 0.0
        %707 = vmatpush1.msra.mxu0 %v664
        %708 = vmatprep.subr.mxu0 0.0
        %709 = vmatpush2.msra.mxu0 0.0
        %710 = vmatprep.subr.mxu0 0.0
        %711 = vmatpush2.msra.mxu0 0.0
        %712 = vmatprep.subr.mxu0 0.0
        %713 = vmatpush2.msra.mxu0 0.0
        %714 = vmatprep.subr.mxu0 0.0
        %715 = vmatpush2.msra.mxu0 0.0
        %716 = vmatprep.subr.mxu0 0.0
        %717 = vmatpush2.msra.mxu0 0.0
        %718 = vmatprep.subr.mxu0 0.0
        %719 = vmatpush2.msra.mxu0 0.0
        %720 = vmatprep.subr.mxu0 0.0
        %721 = vmatpush2.msra.mxu0 0.0
        %722 = vmatprep.subr.mxu0 0.0
        %723 = vmatpush2.msra.mxu0 0.0
        %724 = vmatprep.subr.mxu0 0.0
        %725 = vmatpush2.msra.mxu0 0.0
        %726 = vmatprep.subr.mxu0 0.0
        %727 = vmatpush2.msra.mxu0 0.0
        %728 = vmatprep.subr.mxu0 0.0
        %729 = vmatpush2.msra.mxu0 0.0
        %730 = vmatprep.subr.mxu0 0.0
        %731 = vmatpush2.msra.mxu0 0.0
        %732 = vmatprep.subr.mxu0 0.0
        %733 = vmatpush2.msra.mxu0 0.0
        %734 = vmatprep.subr.mxu0 0.0
        %735 = vmatpush2.msra.mxu0 0.0
        %736 = vmatprep.subr.mxu0 0.0
        %737 = vmatpush2.msra.mxu0 0.0
        %738 = vmatprep.subr.mxu0 0.0
        %739 = vmatpush2.msra.mxu0 0.0
        %740 = vmatprep.mubr.f32.mxu0 0.0
        %741 = vmatmul.mubr.f32.gmra.mxu0 %v508
        %v742 = vpop.f32.mrf.mxu0
        %v743 = vadd.f32 %v674, %v742
        %v744 = vpop.f32.mrf.mxu0
        %745 = vdwg.mxu0
        %vm746 = vcmask 64512
        %v748 = vsel %vm746, %v577, 0
        %v751 = vsel %vm746, %v660, 0
        %753 = vmatprep.subr.mxu0 0.0
        %754 = vmatpush1.xpose.msra.mxu0 0.0
        %755 = vmatprep.subr.mxu0 0.0
        %756 = vmatpush1.xpose.msra.mxu0 0.0
        %757 = vmatprep.subr.mxu0 0.0
        %758 = vmatpush1.xpose.msra.mxu0 0.0
        %759 = vmatprep.subr.mxu0 0.0
        %760 = vmatpush1.xpose.msra.mxu0 0.0
        %761 = vmatprep.subr.mxu0 0.0
        %762 = vmatpush1.xpose.msra.mxu0 0.0
        %763 = vmatprep.subr.mxu0 0.0
        %764 = vmatpush1.xpose.msra.mxu0 0.0
        %765 = vmatprep.subr.mxu0 0.0
        %766 = vmatpush1.xpose.msra.mxu0 0.0
        %767 = vmatprep.subr.mxu0 0.0
        %768 = vmatpush1.xpose.msra.mxu0 0.0
        %769 = vmatprep.subr.mxu0 0.0
        %770 = vmatpush1.xpose.msra.mxu0 0.0
        %771 = vmatprep.subr.mxu0 0.0
        %772 = vmatpush1.xpose.msra.mxu0 0.0
        %773 = vmatprep.subr.mxu0 0.0
        %774 = vmatpush1.xpose.msra.mxu0 0.0
        %775 = vmatprep.subr.mxu0 0.0
        %776 = vmatpush1.xpose.msra.mxu0 0.0
        %777 = vmatprep.subr.mxu0 0.0
        %778 = vmatpush1.xpose.msra.mxu0 0.0
        %779 = vmatprep.subr.mxu0 0.0
        %780 = vmatpush1.xpose.msra.mxu0 0.0
        %781 = vmatprep.subr.mxu0 0.0
        %782 = vmatpush1.xpose.msra.mxu0 0.0
        %783 = vmatprep.subr.mxu0 0.0
        %784 = vmatpush1.xpose.msra.mxu0 %v751
        %785 = vmatprep.subr.mxu0 0.0
        %786 = vmatpush2.xpose.msra.mxu0 0.0
        %787 = vmatprep.subr.mxu0 0.0
        %788 = vmatpush2.xpose.msra.mxu0 0.0
        %789 = vmatprep.subr.mxu0 0.0
        %790 = vmatpush2.xpose.msra.mxu0 0.0
        %791 = vmatprep.subr.mxu0 0.0
        %792 = vmatpush2.xpose.msra.mxu0 0.0
        %793 = vmatprep.subr.mxu0 0.0
        %794 = vmatpush2.xpose.msra.mxu0 0.0
        %795 = vmatprep.subr.mxu0 0.0
        %796 = vmatpush2.xpose.msra.mxu0 0.0
        %797 = vmatprep.subr.mxu0 0.0
        %798 = vmatpush2.xpose.msra.mxu0 0.0
        %799 = vmatprep.subr.mxu0 0.0
        %800 = vmatpush2.xpose.msra.mxu0 0.0
        %801 = vmatprep.subr.mxu0 0.0
        %802 = vmatpush2.xpose.msra.mxu0 0.0
        %803 = vmatprep.subr.mxu0 0.0
        %804 = vmatpush2.xpose.msra.mxu0 0.0
        %805 = vmatprep.subr.mxu0 0.0
        %806 = vmatpush2.xpose.msra.mxu0 0.0
        %807 = vmatprep.subr.mxu0 0.0
        %808 = vmatpush2.xpose.msra.mxu0 0.0
        %809 = vmatprep.subr.mxu0 0.0
        %810 = vmatpush2.xpose.msra.mxu0 0.0
        %811 = vmatprep.subr.mxu0 0.0
        %812 = vmatpush2.xpose.msra.mxu0 0.0
        %813 = vmatprep.subr.mxu0 0.0
        %814 = vmatpush2.xpose.msra.mxu0 0.0
        %815 = vmatprep.subr.mxu0 0.0
        %816 = vmatpush2.xpose.msra.mxu0 0.0
        %817 = vmatprep.mubr.f32.mxu0 0.0
        %818 = vmatmul.mubr.f32.gmra.mxu0 %v748
        %v819 = vpop.f32.mrf.mxu0
        %v820 = vadd.f32 0.0, %v819
        %v821 = vpop.f32.mrf.mxu0
        %822 = vdwg.mxu0
        %v823 = vmul.f32 %v820, 0.35355338
        %v824 = vsel %vm746, %v823, -inf
        %825 = vmax.xlane.f32.xlu0 %v824
        %v826 = vpop.xlane.xlu0 %825
        %v827 = vsub.f32 %v823, %v826
        %v828 = vmul.f32 %v827, 1.442695
        %v829 = vpow.pop %v828
        %v830 = vsel %vm746, %v829, 0.0
        %831 = vadd.xlane.f32.xlu0 %v830
        %v832 = vpop.xlane.xlu0 %831
        %v833 = vrcp.pop %v832
        %v834 = vmul.f32 %v829, %v833
        %v836 = vsel %vm746, %v834, 0
        %838 = vmatprep.subr.mxu0 0.0
        %839 = vmatpush1.msra.mxu0 0.0
        %840 = vmatprep.subr.mxu0 0.0
        %841 = vmatpush1.msra.mxu0 0.0
        %842 = vmatprep.subr.mxu0 0.0
        %843 = vmatpush1.msra.mxu0 0.0
        %844 = vmatprep.subr.mxu0 0.0
        %845 = vmatpush1.msra.mxu0 0.0
        %846 = vmatprep.subr.mxu0 0.0
        %847 = vmatpush1.msra.mxu0 0.0
        %848 = vmatprep.subr.mxu0 0.0
        %849 = vmatpush1.msra.mxu0 0.0
        %850 = vmatprep.subr.mxu0 0.0
        %851 = vmatpush1.msra.mxu0 0.0
        %852 = vmatprep.subr.mxu0 0.0
        %853 = vmatpush1.msra.mxu0 0.0
        %854 = vmatprep.subr.mxu0 0.0
        %855 = vmatpush1.msra.mxu0 0.0
        %856 = vmatprep.subr.mxu0 0.0
        %857 = vmatpush1.msra.mxu0 0.0
        %858 = vmatprep.subr.mxu0 0.0
        %859 = vmatpush1.msra.mxu0 0.0
        %860 = vmatprep.subr.mxu0 0.0
        %861 = vmatpush1.msra.mxu0 0.0
        %862 = vmatprep.subr.mxu0 0.0
        %863 = vmatpush1.msra.mxu0 0.0
        %864 = vmatprep.subr.mxu0 0.0
        %865 = vmatpush1.msra.mxu0 0.0
        %866 = vmatprep.subr.mxu0 0.0
        %867 = vmatpush1.msra.mxu0 0.0
        %868 = vmatprep.subr.mxu0 0.0
        %869 = vmatpush1.msra.mxu0 %v743
        %870 = vmatprep.subr.mxu0 0.0
        %871 = vmatpush2.msra.mxu0 0.0
        %872 = vmatprep.subr.mxu0 0.0
        %873 = vmatpush2.msra.mxu0 0.0
        %874 = vmatprep.subr.mxu0 0.0
        %875 = vmatpush2.msra.mxu0 0.0
        %876 = vmatprep.subr.mxu0 0.0
        %877 = vmatpush2.msra.mxu0 0.0
        %878 = vmatprep.subr.mxu0 0.0
        %879 = vmatpush2.msra.mxu0 0.0
        %880 = vmatprep.subr.mxu0 0.0
        %881 = vmatpush2.msra.mxu0 0.0
        %882 = vmatprep.subr.mxu0 0.0
        %883 = vmatpush2.msra.mxu0 0.0
        %884 = vmatprep.subr.mxu0 0.0
        %885 = vmatpush2.msra.mxu0 0.0
        %886 = vmatprep.subr.mxu0 0.0
        %887 = vmatpush2.msra.mxu0 0.0
        %888 = vmatprep.subr.mxu0 0.0
        %889 = vmatpush2.msra.mxu0 0.0
        %890 = vmatprep.subr.mxu0 0.0
        %891 = vmatpush2.msra.mxu0 0.0
        %892 = vmatprep.subr.mxu0 0.0
        %893 = vmatpush2.msra.mxu0 0.0
        %894 = vmatprep.subr.mxu0 0.0
        %895 = vmatpush2.msra.mxu0 0.0
        %896 = vmatprep.subr.mxu0 0.0
        %897 = vmatpush2.msra.mxu0 0.0
        %898 = vmatprep.subr.mxu0 0.0
        %899 = vmatpush2.msra.mxu0 0.0
        %900 = vmatprep.subr.mxu0 0.0
        %901 = vmatpush2.msra.mxu0 0.0
        %902 = vmatprep.mubr.f32.mxu0 0.0
        %903 = vmatmul.mubr.f32.gmra.mxu0 %v836
        %v904 = vpop.f32.mrf.mxu0
        %v905 = vadd.f32 0.0, %v904
        %v906 = vpop.f32.mrf.mxu0
        %907 = vdwg.mxu0
        %v908 = vld [vmem:[%s5] sm:$0xff]
        %s909 = scalar_lea.vmem %s3, 32
        %v910 = vld [vmem:[%s909] sm:$0xff]
        %v911 = vld [vmem:[%s909 + $0x8] sm:$0xff]
        %v912 = vld [vmem:[%s909 + $0x10] sm:$0xff]
        %v913 = vld [vmem:[%s909 + $0x18] sm:$0xff]
        %s914 = scalar_lea.vmem %s4, 1
        %v915 = vld [vmem:[%s914] sm:$0x1]
        %v917 = vlaneseq
        %v918 = vshrl.u32 %v917, 7
        %v919 = vsub.s32 0, %v918
        %v920 = vrot.slane %v915, %v919
        %922 = vmatprep.subr.mxu0 0.0
        %923 = vmatpush1.msra.mxu0 0.0
        %924 = vmatprep.subr.mxu0 0.0
        %925 = vmatpush1.msra.mxu0 0.0
        %926 = vmatprep.subr.mxu0 0.0
        %927 = vmatpush1.msra.mxu0 0.0
        %928 = vmatprep.subr.mxu0 0.0
        %929 = vmatpush1.msra.mxu0 0.0
        %930 = vmatprep.subr.mxu0 0.0
        %931 = vmatpush1.msra.mxu0 0.0
        %932 = vmatprep.subr.mxu0 0.0
        %933 = vmatpush1.msra.mxu0 0.0
        %934 = vmatprep.subr.mxu0 0.0
        %935 = vmatpush1.msra.mxu0 0.0
        %936 = vmatprep.subr.mxu0 0.0
        %937 = vmatpush1.msra.mxu0 0.0
        %938 = vmatprep.subr.mxu0 0.0
        %939 = vmatpush1.msra.mxu0 0.0
        %940 = vmatprep.subr.mxu0 0.0
        %941 = vmatpush1.msra.mxu0 0.0
        %942 = vmatprep.subr.mxu0 0.0
        %943 = vmatpush1.msra.mxu0 0.0
        %944 = vmatprep.subr.mxu0 0.0
        %945 = vmatpush1.msra.mxu0 0.0
        %946 = vmatprep.subr.mxu0 0.0
        %947 = vmatpush1.msra.mxu0 %v913
        %948 = vmatprep.subr.mxu0 0.0
        %949 = vmatpush1.msra.mxu0 %v912
        %950 = vmatprep.subr.mxu0 0.0
        %951 = vmatpush1.msra.mxu0 %v911
        %952 = vmatprep.subr.mxu0 0.0
        %953 = vmatpush1.msra.mxu0 %v910
        %954 = vmatprep.subr.mxu0 0.0
        %955 = vmatpush2.msra.mxu0 0.0
        %956 = vmatprep.subr.mxu0 0.0
        %957 = vmatpush2.msra.mxu0 0.0
        %958 = vmatprep.subr.mxu0 0.0
        %959 = vmatpush2.msra.mxu0 0.0
        %960 = vmatprep.subr.mxu0 0.0
        %961 = vmatpush2.msra.mxu0 0.0
        %962 = vmatprep.subr.mxu0 0.0
        %963 = vmatpush2.msra.mxu0 0.0
        %964 = vmatprep.subr.mxu0 0.0
        %965 = vmatpush2.msra.mxu0 0.0
        %966 = vmatprep.subr.mxu0 0.0
        %967 = vmatpush2.msra.mxu0 0.0
        %968 = vmatprep.subr.mxu0 0.0
        %969 = vmatpush2.msra.mxu0 0.0
        %970 = vmatprep.subr.mxu0 0.0
        %971 = vmatpush2.msra.mxu0 0.0
        %972 = vmatprep.subr.mxu0 0.0
        %973 = vmatpush2.msra.mxu0 0.0
        %974 = vmatprep.subr.mxu0 0.0
        %975 = vmatpush2.msra.mxu0 0.0
        %976 = vmatprep.subr.mxu0 0.0
        %977 = vmatpush2.msra.mxu0 0.0
        %978 = vmatprep.subr.mxu0 0.0
        %979 = vmatpush2.msra.mxu0 0.0
        %980 = vmatprep.subr.mxu0 0.0
        %981 = vmatpush2.msra.mxu0 0.0
        %982 = vmatprep.subr.mxu0 0.0
        %983 = vmatpush2.msra.mxu0 0.0
        %984 = vmatprep.subr.mxu0 0.0
        %985 = vmatpush2.msra.mxu0 0.0
        %986 = vmatprep.mubr.f32.mxu0 0.0
        %987 = vmatmul.mubr.f32.gmra.mxu0 %v508
        %v988 = vpop.f32.mrf.mxu0
        %v989 = vadd.f32 %v920, %v988
        %v990 = vpop.f32.mrf.mxu0
        %991 = vdwg.mxu0
        %s992 = scalar_lea.vmem %s3, 160
        %v993 = vld [vmem:[%s992] sm:$0xff]
        %v994 = vld [vmem:[%s992 + $0x8] sm:$0xff]
        %v995 = vld [vmem:[%s992 + $0x10] sm:$0xff]
        %v996 = vld [vmem:[%s992 + $0x18] sm:$0xff]
        %s997 = scalar_lea.vmem %s4, 5
        %v998 = vld [vmem:[%s997] sm:$0x1]
        %v1000 = vlaneseq
        %v1001 = vshrl.u32 %v1000, 7
        %v1002 = vsub.s32 0, %v1001
        %v1003 = vrot.slane %v998, %v1002
        %1005 = vmatprep.subr.mxu0 0.0
        %1006 = vmatpush1.msra.mxu0 0.0
        %1007 = vmatprep.subr.mxu0 0.0
        %1008 = vmatpush1.msra.mxu0 0.0
        %1009 = vmatprep.subr.mxu0 0.0
        %1010 = vmatpush1.msra.mxu0 0.0
        %1011 = vmatprep.subr.mxu0 0.0
        %1012 = vmatpush1.msra.mxu0 0.0
        %1013 = vmatprep.subr.mxu0 0.0
        %1014 = vmatpush1.msra.mxu0 0.0
        %1015 = vmatprep.subr.mxu0 0.0
        %1016 = vmatpush1.msra.mxu0 0.0
        %1017 = vmatprep.subr.mxu0 0.0
        %1018 = vmatpush1.msra.mxu0 0.0
        %1019 = vmatprep.subr.mxu0 0.0
        %1020 = vmatpush1.msra.mxu0 0.0
        %1021 = vmatprep.subr.mxu0 0.0
        %1022 = vmatpush1.msra.mxu0 0.0
        %1023 = vmatprep.subr.mxu0 0.0
        %1024 = vmatpush1.msra.mxu0 0.0
        %1025 = vmatprep.subr.mxu0 0.0
        %1026 = vmatpush1.msra.mxu0 0.0
        %1027 = vmatprep.subr.mxu0 0.0
        %1028 = vmatpush1.msra.mxu0 0.0
        %1029 = vmatprep.subr.mxu0 0.0
        %1030 = vmatpush1.msra.mxu0 %v996
        %1031 = vmatprep.subr.mxu0 0.0
        %1032 = vmatpush1.msra.mxu0 %v995
        %1033 = vmatprep.subr.mxu0 0.0
        %1034 = vmatpush1.msra.mxu0 %v994
        %1035 = vmatprep.subr.mxu0 0.0
        %1036 = vmatpush1.msra.mxu0 %v993
        %1037 = vmatprep.subr.mxu0 0.0
        %1038 = vmatpush2.msra.mxu0 0.0
        %1039 = vmatprep.subr.mxu0 0.0
        %1040 = vmatpush2.msra.mxu0 0.0
        %1041 = vmatprep.subr.mxu0 0.0
        %1042 = vmatpush2.msra.mxu0 0.0
        %1043 = vmatprep.subr.mxu0 0.0
        %1044 = vmatpush2.msra.mxu0 0.0
        %1045 = vmatprep.subr.mxu0 0.0
        %1046 = vmatpush2.msra.mxu0 0.0
        %1047 = vmatprep.subr.mxu0 0.0
        %1048 = vmatpush2.msra.mxu0 0.0
        %1049 = vmatprep.subr.mxu0 0.0
        %1050 = vmatpush2.msra.mxu0 0.0
        %1051 = vmatprep.subr.mxu0 0.0
        %1052 = vmatpush2.msra.mxu0 0.0
        %1053 = vmatprep.subr.mxu0 0.0
        %1054 = vmatpush2.msra.mxu0 0.0
        %1055 = vmatprep.subr.mxu0 0.0
        %1056 = vmatpush2.msra.mxu0 0.0
        %1057 = vmatprep.subr.mxu0 0.0
        %1058 = vmatpush2.msra.mxu0 0.0
        %1059 = vmatprep.subr.mxu0 0.0
        %1060 = vmatpush2.msra.mxu0 0.0
        %1061 = vmatprep.subr.mxu0 0.0
        %1062 = vmatpush2.msra.mxu0 0.0
        %1063 = vmatprep.subr.mxu0 0.0
        %1064 = vmatpush2.msra.mxu0 0.0
        %1065 = vmatprep.subr.mxu0 0.0
        %1066 = vmatpush2.msra.mxu0 0.0
        %1067 = vmatprep.subr.mxu0 0.0
        %1068 = vmatpush2.msra.mxu0 0.0
        %1069 = vmatprep.mubr.f32.mxu0 0.0
        %1070 = vmatmul.mubr.f32.gmra.mxu0 %v508
        %v1071 = vpop.f32.mrf.mxu0
        %v1072 = vadd.f32 %v1003, %v1071
        %v1073 = vpop.f32.mrf.mxu0
        %1074 = vdwg.mxu0
        %s1075 = scalar_lea.vmem %s3, 288
        %v1076 = vld [vmem:[%s1075] sm:$0xff]
        %v1077 = vld [vmem:[%s1075 + $0x8] sm:$0xff]
        %v1078 = vld [vmem:[%s1075 + $0x10] sm:$0xff]
        %v1079 = vld [vmem:[%s1075 + $0x18] sm:$0xff]
        %s1080 = scalar_lea.vmem %s4, 9
        %v1081 = vld [vmem:[%s1080] sm:$0x1]
        %v1083 = vlaneseq
        %v1084 = vshrl.u32 %v1083, 7
        %v1085 = vsub.s32 0, %v1084
        %v1086 = vrot.slane %v1081, %v1085
        %1088 = vmatprep.subr.mxu0 0.0
        %1089 = vmatpush1.msra.mxu0 0.0
        %1090 = vmatprep.subr.mxu0 0.0
        %1091 = vmatpush1.msra.mxu0 0.0
        %1092 = vmatprep.subr.mxu0 0.0
        %1093 = vmatpush1.msra.mxu0 0.0
        %1094 = vmatprep.subr.mxu0 0.0
        %1095 = vmatpush1.msra.mxu0 0.0
        %1096 = vmatprep.subr.mxu0 0.0
        %1097 = vmatpush1.msra.mxu0 0.0
        %1098 = vmatprep.subr.mxu0 0.0
        %1099 = vmatpush1.msra.mxu0 0.0
        %1100 = vmatprep.subr.mxu0 0.0
        %1101 = vmatpush1.msra.mxu0 0.0
        %1102 = vmatprep.subr.mxu0 0.0
        %1103 = vmatpush1.msra.mxu0 0.0
        %1104 = vmatprep.subr.mxu0 0.0
        %1105 = vmatpush1.msra.mxu0 0.0
        %1106 = vmatprep.subr.mxu0 0.0
        %1107 = vmatpush1.msra.mxu0 0.0
        %1108 = vmatprep.subr.mxu0 0.0
        %1109 = vmatpush1.msra.mxu0 0.0
        %1110 = vmatprep.subr.mxu0 0.0
        %1111 = vmatpush1.msra.mxu0 0.0
        %1112 = vmatprep.subr.mxu0 0.0
        %1113 = vmatpush1.msra.mxu0 %v1079
        %1114 = vmatprep.subr.mxu0 0.0
        %1115 = vmatpush1.msra.mxu0 %v1078
        %1116 = vmatprep.subr.mxu0 0.0
        %1117 = vmatpush1.msra.mxu0 %v1077
        %1118 = vmatprep.subr.mxu0 0.0
        %1119 = vmatpush1.msra.mxu0 %v1076
        %1120 = vmatprep.subr.mxu0 0.0
        %1121 = vmatpush2.msra.mxu0 0.0
        %1122 = vmatprep.subr.mxu0 0.0
        %1123 = vmatpush2.msra.mxu0 0.0
        %1124 = vmatprep.subr.mxu0 0.0
        %1125 = vmatpush2.msra.mxu0 0.0
        %1126 = vmatprep.subr.mxu0 0.0
        %1127 = vmatpush2.msra.mxu0 0.0
        %1128 = vmatprep.subr.mxu0 0.0
        %1129 = vmatpush2.msra.mxu0 0.0
        %1130 = vmatprep.subr.mxu0 0.0
        %1131 = vmatpush2.msra.mxu0 0.0
        %1132 = vmatprep.subr.mxu0 0.0
        %1133 = vmatpush2.msra.mxu0 0.0
        %1134 = vmatprep.subr.mxu0 0.0
        %1135 = vmatpush2.msra.mxu0 0.0
        %1136 = vmatprep.subr.mxu0 0.0
        %1137 = vmatpush2.msra.mxu0 0.0
        %1138 = vmatprep.subr.mxu0 0.0
        %1139 = vmatpush2.msra.mxu0 0.0
        %1140 = vmatprep.subr.mxu0 0.0
        %1141 = vmatpush2.msra.mxu0 0.0
        %1142 = vmatprep.subr.mxu0 0.0
        %1143 = vmatpush2.msra.mxu0 0.0
        %1144 = vmatprep.subr.mxu0 0.0
        %1145 = vmatpush2.msra.mxu0 0.0
        %1146 = vmatprep.subr.mxu0 0.0
        %1147 = vmatpush2.msra.mxu0 0.0
        %1148 = vmatprep.subr.mxu0 0.0
        %1149 = vmatpush2.msra.mxu0 0.0
        %1150 = vmatprep.subr.mxu0 0.0
        %1151 = vmatpush2.msra.mxu0 0.0
        %1152 = vmatprep.mubr.f32.mxu0 0.0
        %1153 = vmatmul.mubr.f32.gmra.mxu0 %v508
        %v1154 = vpop.f32.mrf.mxu0
        %v1155 = vadd.f32 %v1086, %v1154
        %v1156 = vpop.f32.mrf.mxu0
        %1157 = vdwg.mxu0
        %v1159 = vsel %vm746, %v989, 0
        %v1162 = vsel %vm746, %v1072, 0
        %1164 = vmatprep.subr.mxu0 0.0
        %1165 = vmatpush1.xpose.msra.mxu0 0.0
        %1166 = vmatprep.subr.mxu0 0.0
        %1167 = vmatpush1.xpose.msra.mxu0 0.0
        %1168 = vmatprep.subr.mxu0 0.0
        %1169 = vmatpush1.xpose.msra.mxu0 0.0
        %1170 = vmatprep.subr.mxu0 0.0
        %1171 = vmatpush1.xpose.msra.mxu0 0.0
        %1172 = vmatprep.subr.mxu0 0.0
        %1173 = vmatpush1.xpose.msra.mxu0 0.0
        %1174 = vmatprep.subr.mxu0 0.0
        %1175 = vmatpush1.xpose.msra.mxu0 0.0
        %1176 = vmatprep.subr.mxu0 0.0
        %1177 = vmatpush1.xpose.msra.mxu0 0.0
        %1178 = vmatprep.subr.mxu0 0.0
        %1179 = vmatpush1.xpose.msra.mxu0 0.0
        %1180 = vmatprep.subr.mxu0 0.0
        %1181 = vmatpush1.xpose.msra.mxu0 0.0
        %1182 = vmatprep.subr.mxu0 0.0
        %1183 = vmatpush1.xpose.msra.mxu0 0.0
        %1184 = vmatprep.subr.mxu0 0.0
        %1185 = vmatpush1.xpose.msra.mxu0 0.0
        %1186 = vmatprep.subr.mxu0 0.0
        %1187 = vmatpush1.xpose.msra.mxu0 0.0
        %1188 = vmatprep.subr.mxu0 0.0
        %1189 = vmatpush1.xpose.msra.mxu0 0.0
        %1190 = vmatprep.subr.mxu0 0.0
        %1191 = vmatpush1.xpose.msra.mxu0 0.0
        %1192 = vmatprep.subr.mxu0 0.0
        %1193 = vmatpush1.xpose.msra.mxu0 0.0
        %1194 = vmatprep.subr.mxu0 0.0
        %1195 = vmatpush1.xpose.msra.mxu0 %v1162
        %1196 = vmatprep.subr.mxu0 0.0
        %1197 = vmatpush2.xpose.msra.mxu0 0.0
        %1198 = vmatprep.subr.mxu0 0.0
        %1199 = vmatpush2.xpose.msra.mxu0 0.0
        %1200 = vmatprep.subr.mxu0 0.0
        %1201 = vmatpush2.xpose.msra.mxu0 0.0
        %1202 = vmatprep.subr.mxu0 0.0
        %1203 = vmatpush2.xpose.msra.mxu0 0.0
        %1204 = vmatprep.subr.mxu0 0.0
        %1205 = vmatpush2.xpose.msra.mxu0 0.0
        %1206 = vmatprep.subr.mxu0 0.0
        %1207 = vmatpush2.xpose.msra.mxu0 0.0
        %1208 = vmatprep.subr.mxu0 0.0
        %1209 = vmatpush2.xpose.msra.mxu0 0.0
        %1210 = vmatprep.subr.mxu0 0.0
        %1211 = vmatpush2.xpose.msra.mxu0 0.0
        %1212 = vmatprep.subr.mxu0 0.0
        %1213 = vmatpush2.xpose.msra.mxu0 0.0
        %1214 = vmatprep.subr.mxu0 0.0
        %1215 = vmatpush2.xpose.msra.mxu0 0.0
        %1216 = vmatprep.subr.mxu0 0.0
        %1217 = vmatpush2.xpose.msra.mxu0 0.0
        %1218 = vmatprep.subr.mxu0 0.0
        %1219 = vmatpush2.xpose.msra.mxu0 0.0
        %1220 = vmatprep.subr.mxu0 0.0
        %1221 = vmatpush2.xpose.msra.mxu0 0.0
        %1222 = vmatprep.subr.mxu0 0.0
        %1223 = vmatpush2.xpose.msra.mxu0 0.0
        %1224 = vmatprep.subr.mxu0 0.0
        %1225 = vmatpush2.xpose.msra.mxu0 0.0
        %1226 = vmatprep.subr.mxu0 0.0
        %1227 = vmatpush2.xpose.msra.mxu0 0.0
        %1228 = vmatprep.mubr.f32.mxu0 0.0
        %1229 = vmatmul.mubr.f32.gmra.mxu0 %v1159
        %v1230 = vpop.f32.mrf.mxu0
        %v1231 = vadd.f32 0.0, %v1230
        %v1232 = vpop.f32.mrf.mxu0
        %1233 = vdwg.mxu0
        %v1234 = vmul.f32 %v1231, 0.35355338
        %v1235 = vsel %vm746, %v1234, -inf
        %1236 = vmax.xlane.f32.xlu0 %v1235
        %v1237 = vpop.xlane.xlu0 %1236
        %v1238 = vsub.f32 %v1234, %v1237
        %v1239 = vmul.f32 %v1238, 1.442695
        %v1240 = vpow.pop %v1239
        %v1241 = vsel %vm746, %v1240, 0.0
        %1242 = vadd.xlane.f32.xlu0 %v1241
        %v1243 = vpop.xlane.xlu0 %1242
        %v1244 = vrcp.pop %v1243
        %v1245 = vmul.f32 %v1240, %v1244
        %v1247 = vsel %vm746, %v1245, 0
        %1249 = vmatprep.subr.mxu0 0.0
        %1250 = vmatpush1.msra.mxu0 0.0
        %1251 = vmatprep.subr.mxu0 0.0
        %1252 = vmatpush1.msra.mxu0 0.0
        %1253 = vmatprep.subr.mxu0 0.0
        %1254 = vmatpush1.msra.mxu0 0.0
        %1255 = vmatprep.subr.mxu0 0.0
        %1256 = vmatpush1.msra.mxu0 0.0
        %1257 = vmatprep.subr.mxu0 0.0
        %1258 = vmatpush1.msra.mxu0 0.0
        %1259 = vmatprep.subr.mxu0 0.0
        %1260 = vmatpush1.msra.mxu0 0.0
        %1261 = vmatprep.subr.mxu0 0.0
        %1262 = vmatpush1.msra.mxu0 0.0
        %1263 = vmatprep.subr.mxu0 0.0
        %1264 = vmatpush1.msra.mxu0 0.0
        %1265 = vmatprep.subr.mxu0 0.0
        %1266 = vmatpush1.msra.mxu0 0.0
        %1267 = vmatprep.subr.mxu0 0.0
        %1268 = vmatpush1.msra.mxu0 0.0
        %1269 = vmatprep.subr.mxu0 0.0
        %1270 = vmatpush1.msra.mxu0 0.0
        %1271 = vmatprep.subr.mxu0 0.0
        %1272 = vmatpush1.msra.mxu0 0.0
        %1273 = vmatprep.subr.mxu0 0.0
        %1274 = vmatpush1.msra.mxu0 0.0
        %1275 = vmatprep.subr.mxu0 0.0
        %1276 = vmatpush1.msra.mxu0 0.0
        %1277 = vmatprep.subr.mxu0 0.0
        %1278 = vmatpush1.msra.mxu0 0.0
        %1279 = vmatprep.subr.mxu0 0.0
        %1280 = vmatpush1.msra.mxu0 %v1155
        %1281 = vmatprep.subr.mxu0 0.0
        %1282 = vmatpush2.msra.mxu0 0.0
        %1283 = vmatprep.subr.mxu0 0.0
        %1284 = vmatpush2.msra.mxu0 0.0
        %1285 = vmatprep.subr.mxu0 0.0
        %1286 = vmatpush2.msra.mxu0 0.0
        %1287 = vmatprep.subr.mxu0 0.0
        %1288 = vmatpush2.msra.mxu0 0.0
        %1289 = vmatprep.subr.mxu0 0.0
        %1290 = vmatpush2.msra.mxu0 0.0
        %1291 = vmatprep.subr.mxu0 0.0
        %1292 = vmatpush2.msra.mxu0 0.0
        %1293 = vmatprep.subr.mxu0 0.0
        %1294 = vmatpush2.msra.mxu0 0.0
        %1295 = vmatprep.subr.mxu0 0.0
        %1296 = vmatpush2.msra.mxu0 0.0
        %1297 = vmatprep.subr.mxu0 0.0
        %1298 = vmatpush2.msra.mxu0 0.0
        %1299 = vmatprep.subr.mxu0 0.0
        %1300 = vmatpush2.msra.mxu0 0.0
        %1301 = vmatprep.subr.mxu0 0.0
        %1302 = vmatpush2.msra.mxu0 0.0
        %1303 = vmatprep.subr.mxu0 0.0
        %1304 = vmatpush2.msra.mxu0 0.0
        %1305 = vmatprep.subr.mxu0 0.0
        %1306 = vmatpush2.msra.mxu0 0.0
        %1307 = vmatprep.subr.mxu0 0.0
        %1308 = vmatpush2.msra.mxu0 0.0
        %1309 = vmatprep.subr.mxu0 0.0
        %1310 = vmatpush2.msra.mxu0 0.0
        %1311 = vmatprep.subr.mxu0 0.0
        %1312 = vmatpush2.msra.mxu0 0.0
        %1313 = vmatprep.mubr.f32.mxu0 0.0
        %1314 = vmatmul.mubr.f32.gmra.mxu0 %v1247
        %v1315 = vpop.f32.mrf.mxu0
        %v1316 = vadd.f32 0.0, %v1315
        %v1317 = vpop.f32.mrf.mxu0
        %1318 = vdwg.mxu0
        %s1319 = scalar_lea.vmem %s5, 8
        %v1320 = vld [vmem:[%s1319] sm:$0xff]
        %v1322 = vsel %vm746, %v1316, 0
        %1324 = vmatprep.subr.mxu0 0.0
        %1325 = vmatpush1.msra.mxu0 0.0
        %1326 = vmatprep.subr.mxu0 0.0
        %1327 = vmatpush1.msra.mxu0 0.0
        %1328 = vmatprep.subr.mxu0 0.0
        %1329 = vmatpush1.msra.mxu0 0.0
        %1330 = vmatprep.subr.mxu0 0.0
        %1331 = vmatpush1.msra.mxu0 0.0
        %1332 = vmatprep.subr.mxu0 0.0
        %1333 = vmatpush1.msra.mxu0 0.0
        %1334 = vmatprep.subr.mxu0 0.0
        %1335 = vmatpush1.msra.mxu0 0.0
        %1336 = vmatprep.subr.mxu0 0.0
        %1337 = vmatpush1.msra.mxu0 0.0
        %1338 = vmatprep.subr.mxu0 0.0
        %1339 = vmatpush1.msra.mxu0 0.0
        %1340 = vmatprep.subr.mxu0 0.0
        %1341 = vmatpush1.msra.mxu0 0.0
        %1342 = vmatprep.subr.mxu0 0.0
        %1343 = vmatpush1.msra.mxu0 0.0
        %1344 = vmatprep.subr.mxu0 0.0
        %1345 = vmatpush1.msra.mxu0 0.0
        %1346 = vmatprep.subr.mxu0 0.0
        %1347 = vmatpush1.msra.mxu0 0.0
        %1348 = vmatprep.subr.mxu0 0.0
        %1349 = vmatpush1.msra.mxu0 0.0
        %1350 = vmatprep.subr.mxu0 0.0
        %1351 = vmatpush1.msra.mxu0 0.0
        %1352 = vmatprep.subr.mxu0 0.0
        %1353 = vmatpush1.msra.mxu0 0.0
        %1354 = vmatprep.subr.mxu0 0.0
        %1355 = vmatpush1.msra.mxu0 %v1320
        %1356 = vmatprep.subr.mxu0 0.0
        %1357 = vmatpush2.msra.mxu0 0.0
        %1358 = vmatprep.subr.mxu0 0.0
        %1359 = vmatpush2.msra.mxu0 0.0
        %1360 = vmatprep.subr.mxu0 0.0
        %1361 = vmatpush2.msra.mxu0 0.0
        %1362 = vmatprep.subr.mxu0 0.0
        %1363 = vmatpush2.msra.mxu0 0.0
        %1364 = vmatprep.subr.mxu0 0.0
        %1365 = vmatpush2.msra.mxu0 0.0
        %1366 = vmatprep.subr.mxu0 0.0
        %1367 = vmatpush2.msra.mxu0 0.0
        %1368 = vmatprep.subr.mxu0 0.0
        %1369 = vmatpush2.msra.mxu0 0.0
        %1370 = vmatprep.subr.mxu0 0.0
        %1371 = vmatpush2.msra.mxu0 0.0
        %1372 = vmatprep.subr.mxu0 0.0
        %1373 = vmatpush2.msra.mxu0 0.0
        %1374 = vmatprep.subr.mxu0 0.0
        %1375 = vmatpush2.msra.mxu0 0.0
        %1376 = vmatprep.subr.mxu0 0.0
        %1377 = vmatpush2.msra.mxu0 0.0
        %1378 = vmatprep.subr.mxu0 0.0
        %1379 = vmatpush2.msra.mxu0 0.0
        %1380 = vmatprep.subr.mxu0 0.0
        %1381 = vmatpush2.msra.mxu0 0.0
        %1382 = vmatprep.subr.mxu0 0.0
        %1383 = vmatpush2.msra.mxu0 0.0
        %1384 = vmatprep.subr.mxu0 0.0
        %1385 = vmatpush2.msra.mxu0 0.0
        %1386 = vmatprep.subr.mxu0 0.0
        %1387 = vmatpush2.msra.mxu0 0.0
        %1388 = vmatprep.mubr.f32.mxu0 0.0
        %1389 = vmatmul.mubr.f32.gmra.mxu0 %v1322
        %v1390 = vpop.f32.mrf.mxu0
        %v1391 = vadd.f32 0.0, %v1390
        %v1392 = vpop.f32.mrf.mxu0
        %1393 = vdwg.mxu0
        %v1395 = vsel %vm746, %v905, 0
        %1397 = vmatprep.subr.mxu0 0.0
        %1398 = vmatpush1.msra.mxu0 0.0
        %1399 = vmatprep.subr.mxu0 0.0
        %1400 = vmatpush1.msra.mxu0 0.0
        %1401 = vmatprep.subr.mxu0 0.0
        %1402 = vmatpush1.msra.mxu0 0.0
        %1403 = vmatprep.subr.mxu0 0.0
        %1404 = vmatpush1.msra.mxu0 0.0
        %1405 = vmatprep.subr.mxu0 0.0
        %1406 = vmatpush1.msra.mxu0 0.0
        %1407 = vmatprep.subr.mxu0 0.0
        %1408 = vmatpush1.msra.mxu0 0.0
        %1409 = vmatprep.subr.mxu0 0.0
        %1410 = vmatpush1.msra.mxu0 0.0
        %1411 = vmatprep.subr.mxu0 0.0
        %1412 = vmatpush1.msra.mxu0 0.0
        %1413 = vmatprep.subr.mxu0 0.0
        %1414 = vmatpush1.msra.mxu0 0.0
        %1415 = vmatprep.subr.mxu0 0.0
        %1416 = vmatpush1.msra.mxu0 0.0
        %1417 = vmatprep.subr.mxu0 0.0
        %1418 = vmatpush1.msra.mxu0 0.0
        %1419 = vmatprep.subr.mxu0 0.0
        %1420 = vmatpush1.msra.mxu0 0.0
        %1421 = vmatprep.subr.mxu0 0.0
        %1422 = vmatpush1.msra.mxu0 0.0
        %1423 = vmatprep.subr.mxu0 0.0
        %1424 = vmatpush1.msra.mxu0 0.0
        %1425 = vmatprep.subr.mxu0 0.0
        %1426 = vmatpush1.msra.mxu0 0.0
        %1427 = vmatprep.subr.mxu0 0.0
        %1428 = vmatpush1.msra.mxu0 %v908
        %1429 = vmatprep.subr.mxu0 0.0
        %1430 = vmatpush2.msra.mxu0 0.0
        %1431 = vmatprep.subr.mxu0 0.0
        %1432 = vmatpush2.msra.mxu0 0.0
        %1433 = vmatprep.subr.mxu0 0.0
        %1434 = vmatpush2.msra.mxu0 0.0
        %1435 = vmatprep.subr.mxu0 0.0
        %1436 = vmatpush2.msra.mxu0 0.0
        %1437 = vmatprep.subr.mxu0 0.0
        %1438 = vmatpush2.msra.mxu0 0.0
        %1439 = vmatprep.subr.mxu0 0.0
        %1440 = vmatpush2.msra.mxu0 0.0
        %1441 = vmatprep.subr.mxu0 0.0
        %1442 = vmatpush2.msra.mxu0 0.0
        %1443 = vmatprep.subr.mxu0 0.0
        %1444 = vmatpush2.msra.mxu0 0.0
        %1445 = vmatprep.subr.mxu0 0.0
        %1446 = vmatpush2.msra.mxu0 0.0
        %1447 = vmatprep.subr.mxu0 0.0
        %1448 = vmatpush2.msra.mxu0 0.0
        %1449 = vmatprep.subr.mxu0 0.0
        %1450 = vmatpush2.msra.mxu0 0.0
        %1451 = vmatprep.subr.mxu0 0.0
        %1452 = vmatpush2.msra.mxu0 0.0
        %1453 = vmatprep.subr.mxu0 0.0
        %1454 = vmatpush2.msra.mxu0 0.0
        %1455 = vmatprep.subr.mxu0 0.0
        %1456 = vmatpush2.msra.mxu0 0.0
        %1457 = vmatprep.subr.mxu0 0.0
        %1458 = vmatpush2.msra.mxu0 0.0
        %1459 = vmatprep.subr.mxu0 0.0
        %1460 = vmatpush2.msra.mxu0 0.0
        %1461 = vmatprep.mubr.f32.mxu0 0.0
        %1462 = vmatmul.mubr.f32.gmra.mxu0 %v1395
        %v1463 = vpop.f32.mrf.mxu0
        %v1464 = vadd.f32 %v1391, %v1463
        %v1465 = vpop.f32.mrf.mxu0
        %1466 = vdwg.mxu0
        %s1467 = scalar_lea.vmem %s3, 64
        %v1468 = vld [vmem:[%s1467] sm:$0xff]
        %v1469 = vld [vmem:[%s1467 + $0x8] sm:$0xff]
        %v1470 = vld [vmem:[%s1467 + $0x10] sm:$0xff]
        %v1471 = vld [vmem:[%s1467 + $0x18] sm:$0xff]
        %s1472 = scalar_lea.vmem %s4, 2
        %v1473 = vld [vmem:[%s1472] sm:$0x1]
        %v1475 = vlaneseq
        %v1476 = vshrl.u32 %v1475, 7
        %v1477 = vsub.s32 0, %v1476
        %v1478 = vrot.slane %v1473, %v1477
        %1480 = vmatprep.subr.mxu0 0.0
        %1481 = vmatpush1.msra.mxu0 0.0
        %1482 = vmatprep.subr.mxu0 0.0
        %1483 = vmatpush1.msra.mxu0 0.0
        %1484 = vmatprep.subr.mxu0 0.0
        %1485 = vmatpush1.msra.mxu0 0.0
        %1486 = vmatprep.subr.mxu0 0.0
        %1487 = vmatpush1.msra.mxu0 0.0
        %1488 = vmatprep.subr.mxu0 0.0
        %1489 = vmatpush1.msra.mxu0 0.0
        %1490 = vmatprep.subr.mxu0 0.0
        %1491 = vmatpush1.msra.mxu0 0.0
        %1492 = vmatprep.subr.mxu0 0.0
        %1493 = vmatpush1.msra.mxu0 0.0
        %1494 = vmatprep.subr.mxu0 0.0
        %1495 = vmatpush1.msra.mxu0 0.0
        %1496 = vmatprep.subr.mxu0 0.0
        %1497 = vmatpush1.msra.mxu0 0.0
        %1498 = vmatprep.subr.mxu0 0.0
        %1499 = vmatpush1.msra.mxu0 0.0
        %1500 = vmatprep.subr.mxu0 0.0
        %1501 = vmatpush1.msra.mxu0 0.0
        %1502 = vmatprep.subr.mxu0 0.0
        %1503 = vmatpush1.msra.mxu0 0.0
        %1504 = vmatprep.subr.mxu0 0.0
        %1505 = vmatpush1.msra.mxu0 %v1471
        %1506 = vmatprep.subr.mxu0 0.0
        %1507 = vmatpush1.msra.mxu0 %v1470
        %1508 = vmatprep.subr.mxu0 0.0
        %1509 = vmatpush1.msra.mxu0 %v1469
        %1510 = vmatprep.subr.mxu0 0.0
        %1511 = vmatpush1.msra.mxu0 %v1468
        %1512 = vmatprep.subr.mxu0 0.0
        %1513 = vmatpush2.msra.mxu0 0.0
        %1514 = vmatprep.subr.mxu0 0.0
        %1515 = vmatpush2.msra.mxu0 0.0
        %1516 = vmatprep.subr.mxu0 0.0
        %1517 = vmatpush2.msra.mxu0 0.0
        %1518 = vmatprep.subr.mxu0 0.0
        %1519 = vmatpush2.msra.mxu0 0.0
        %1520 = vmatprep.subr.mxu0 0.0
        %1521 = vmatpush2.msra.mxu0 0.0
        %1522 = vmatprep.subr.mxu0 0.0
        %1523 = vmatpush2.msra.mxu0 0.0
        %1524 = vmatprep.subr.mxu0 0.0
        %1525 = vmatpush2.msra.mxu0 0.0
        %1526 = vmatprep.subr.mxu0 0.0
        %1527 = vmatpush2.msra.mxu0 0.0
        %1528 = vmatprep.subr.mxu0 0.0
        %1529 = vmatpush2.msra.mxu0 0.0
        %1530 = vmatprep.subr.mxu0 0.0
        %1531 = vmatpush2.msra.mxu0 0.0
        %1532 = vmatprep.subr.mxu0 0.0
        %1533 = vmatpush2.msra.mxu0 0.0
        %1534 = vmatprep.subr.mxu0 0.0
        %1535 = vmatpush2.msra.mxu0 0.0
        %1536 = vmatprep.subr.mxu0 0.0
        %1537 = vmatpush2.msra.mxu0 0.0
        %1538 = vmatprep.subr.mxu0 0.0
        %1539 = vmatpush2.msra.mxu0 0.0
        %1540 = vmatprep.subr.mxu0 0.0
        %1541 = vmatpush2.msra.mxu0 0.0
        %1542 = vmatprep.subr.mxu0 0.0
        %1543 = vmatpush2.msra.mxu0 0.0
        %1544 = vmatprep.mubr.f32.mxu0 0.0
        %1545 = vmatmul.mubr.f32.gmra.mxu0 %v508
        %v1546 = vpop.f32.mrf.mxu0
        %v1547 = vadd.f32 %v1478, %v1546
        %v1548 = vpop.f32.mrf.mxu0
        %1549 = vdwg.mxu0
        %s1550 = scalar_lea.vmem %s3, 192
        %v1551 = vld [vmem:[%s1550] sm:$0xff]
        %v1552 = vld [vmem:[%s1550 + $0x8] sm:$0xff]
        %v1553 = vld [vmem:[%s1550 + $0x10] sm:$0xff]
        %v1554 = vld [vmem:[%s1550 + $0x18] sm:$0xff]
        %s1555 = scalar_lea.vmem %s4, 6
        %v1556 = vld [vmem:[%s1555] sm:$0x1]
        %v1558 = vlaneseq
        %v1559 = vshrl.u32 %v1558, 7
        %v1560 = vsub.s32 0, %v1559
        %v1561 = vrot.slane %v1556, %v1560
        %1563 = vmatprep.subr.mxu0 0.0
        %1564 = vmatpush1.msra.mxu0 0.0
        %1565 = vmatprep.subr.mxu0 0.0
        %1566 = vmatpush1.msra.mxu0 0.0
        %1567 = vmatprep.subr.mxu0 0.0
        %1568 = vmatpush1.msra.mxu0 0.0
        %1569 = vmatprep.subr.mxu0 0.0
        %1570 = vmatpush1.msra.mxu0 0.0
        %1571 = vmatprep.subr.mxu0 0.0
        %1572 = vmatpush1.msra.mxu0 0.0
        %1573 = vmatprep.subr.mxu0 0.0
        %1574 = vmatpush1.msra.mxu0 0.0
        %1575 = vmatprep.subr.mxu0 0.0
        %1576 = vmatpush1.msra.mxu0 0.0
        %1577 = vmatprep.subr.mxu0 0.0
        %1578 = vmatpush1.msra.mxu0 0.0
        %1579 = vmatprep.subr.mxu0 0.0
        %1580 = vmatpush1.msra.mxu0 0.0
        %1581 = vmatprep.subr.mxu0 0.0
        %1582 = vmatpush1.msra.mxu0 0.0
        %1583 = vmatprep.subr.mxu0 0.0
        %1584 = vmatpush1.msra.mxu0 0.0
        %1585 = vmatprep.subr.mxu0 0.0
        %1586 = vmatpush1.msra.mxu0 0.0
        %1587 = vmatprep.subr.mxu0 0.0
        %1588 = vmatpush1.msra.mxu0 %v1554
        %1589 = vmatprep.subr.mxu0 0.0
        %1590 = vmatpush1.msra.mxu0 %v1553
        %1591 = vmatprep.subr.mxu0 0.0
        %1592 = vmatpush1.msra.mxu0 %v1552
        %1593 = vmatprep.subr.mxu0 0.0
        %1594 = vmatpush1.msra.mxu0 %v1551
        %1595 = vmatprep.subr.mxu0 0.0
        %1596 = vmatpush2.msra.mxu0 0.0
        %1597 = vmatprep.subr.mxu0 0.0
        %1598 = vmatpush2.msra.mxu0 0.0
        %1599 = vmatprep.subr.mxu0 0.0
        %1600 = vmatpush2.msra.mxu0 0.0
        %1601 = vmatprep.subr.mxu0 0.0
        %1602 = vmatpush2.msra.mxu0 0.0
        %1603 = vmatprep.subr.mxu0 0.0
        %1604 = vmatpush2.msra.mxu0 0.0
        %1605 = vmatprep.subr.mxu0 0.0
        %1606 = vmatpush2.msra.mxu0 0.0
        %1607 = vmatprep.subr.mxu0 0.0
        %1608 = vmatpush2.msra.mxu0 0.0
        %1609 = vmatprep.subr.mxu0 0.0
        %1610 = vmatpush2.msra.mxu0 0.0
        %1611 = vmatprep.subr.mxu0 0.0
        %1612 = vmatpush2.msra.mxu0 0.0
        %1613 = vmatprep.subr.mxu0 0.0
        %1614 = vmatpush2.msra.mxu0 0.0
        %1615 = vmatprep.subr.mxu0 0.0
        %1616 = vmatpush2.msra.mxu0 0.0
        %1617 = vmatprep.subr.mxu0 0.0
        %1618 = vmatpush2.msra.mxu0 0.0
        %1619 = vmatprep.subr.mxu0 0.0
        %1620 = vmatpush2.msra.mxu0 0.0
        %1621 = vmatprep.subr.mxu0 0.0
        %1622 = vmatpush2.msra.mxu0 0.0
        %1623 = vmatprep.subr.mxu0 0.0
        %1624 = vmatpush2.msra.mxu0 0.0
        %1625 = vmatprep.subr.mxu0 0.0
        %1626 = vmatpush2.msra.mxu0 0.0
        %1627 = vmatprep.mubr.f32.mxu0 0.0
        %1628 = vmatmul.mubr.f32.gmra.mxu0 %v508
        %v1629 = vpop.f32.mrf.mxu0
        %v1630 = vadd.f32 %v1561, %v1629
        %v1631 = vpop.f32.mrf.mxu0
        %1632 = vdwg.mxu0
        %s1633 = scalar_lea.vmem %s3, 320
        %v1634 = vld [vmem:[%s1633] sm:$0xff]
        %v1635 = vld [vmem:[%s1633 + $0x8] sm:$0xff]
        %v1636 = vld [vmem:[%s1633 + $0x10] sm:$0xff]
        %v1637 = vld [vmem:[%s1633 + $0x18] sm:$0xff]
        %s1638 = scalar_lea.vmem %s4, 10
        %v1639 = vld [vmem:[%s1638] sm:$0x1]
        %v1641 = vlaneseq
        %v1642 = vshrl.u32 %v1641, 7
        %v1643 = vsub.s32 0, %v1642
        %v1644 = vrot.slane %v1639, %v1643
        %1646 = vmatprep.subr.mxu0 0.0
        %1647 = vmatpush1.msra.mxu0 0.0
        %1648 = vmatprep.subr.mxu0 0.0
        %1649 = vmatpush1.msra.mxu0 0.0
        %1650 = vmatprep.subr.mxu0 0.0
        %1651 = vmatpush1.msra.mxu0 0.0
        %1652 = vmatprep.subr.mxu0 0.0
        %1653 = vmatpush1.msra.mxu0 0.0
        %1654 = vmatprep.subr.mxu0 0.0
        %1655 = vmatpush1.msra.mxu0 0.0
        %1656 = vmatprep.subr.mxu0 0.0
        %1657 = vmatpush1.msra.mxu0 0.0
        %1658 = vmatprep.subr.mxu0 0.0
        %1659 = vmatpush1.msra.mxu0 0.0
        %1660 = vmatprep.subr.mxu0 0.0
        %1661 = vmatpush1.msra.mxu0 0.0
        %1662 = vmatprep.subr.mxu0 0.0
        %1663 = vmatpush1.msra.mxu0 0.0
        %1664 = vmatprep.subr.mxu0 0.0
        %1665 = vmatpush1.msra.mxu0 0.0
        %1666 = vmatprep.subr.mxu0 0.0
        %1667 = vmatpush1.msra.mxu0 0.0
        %1668 = vmatprep.subr.mxu0 0.0
        %1669 = vmatpush1.msra.mxu0 0.0
        %1670 = vmatprep.subr.mxu0 0.0
        %1671 = vmatpush1.msra.mxu0 %v1637
        %1672 = vmatprep.subr.mxu0 0.0
        %1673 = vmatpush1.msra.mxu0 %v1636
        %1674 = vmatprep.subr.mxu0 0.0
        %1675 = vmatpush1.msra.mxu0 %v1635
        %1676 = vmatprep.subr.mxu0 0.0
        %1677 = vmatpush1.msra.mxu0 %v1634
        %1678 = vmatprep.subr.mxu0 0.0
        %1679 = vmatpush2.msra.mxu0 0.0
        %1680 = vmatprep.subr.mxu0 0.0
        %1681 = vmatpush2.msra.mxu0 0.0
        %1682 = vmatprep.subr.mxu0 0.0
        %1683 = vmatpush2.msra.mxu0 0.0
        %1684 = vmatprep.subr.mxu0 0.0
        %1685 = vmatpush2.msra.mxu0 0.0
        %1686 = vmatprep.subr.mxu0 0.0
        %1687 = vmatpush2.msra.mxu0 0.0
        %1688 = vmatprep.subr.mxu0 0.0
        %1689 = vmatpush2.msra.mxu0 0.0
        %1690 = vmatprep.subr.mxu0 0.0
        %1691 = vmatpush2.msra.mxu0 0.0
        %1692 = vmatprep.subr.mxu0 0.0
        %1693 = vmatpush2.msra.mxu0 0.0
        %1694 = vmatprep.subr.mxu0 0.0
        %1695 = vmatpush2.msra.mxu0 0.0
        %1696 = vmatprep.subr.mxu0 0.0
        %1697 = vmatpush2.msra.mxu0 0.0
        %1698 = vmatprep.subr.mxu0 0.0
        %1699 = vmatpush2.msra.mxu0 0.0
        %1700 = vmatprep.subr.mxu0 0.0
        %1701 = vmatpush2.msra.mxu0 0.0
        %1702 = vmatprep.subr.mxu0 0.0
        %1703 = vmatpush2.msra.mxu0 0.0
        %1704 = vmatprep.subr.mxu0 0.0
        %1705 = vmatpush2.msra.mxu0 0.0
        %1706 = vmatprep.subr.mxu0 0.0
        %1707 = vmatpush2.msra.mxu0 0.0
        %1708 = vmatprep.subr.mxu0 0.0
        %1709 = vmatpush2.msra.mxu0 0.0
        %1710 = vmatprep.mubr.f32.mxu0 0.0
        %1711 = vmatmul.mubr.f32.gmra.mxu0 %v508
        %v1712 = vpop.f32.mrf.mxu0
        %v1713 = vadd.f32 %v1644, %v1712
        %v1714 = vpop.f32.mrf.mxu0
        %1715 = vdwg.mxu0
        %v1717 = vsel %vm746, %v1547, 0
        %v1720 = vsel %vm746, %v1630, 0
        %1722 = vmatprep.subr.mxu0 0.0
        %1723 = vmatpush1.xpose.msra.mxu0 0.0
        %1724 = vmatprep.subr.mxu0 0.0
        %1725 = vmatpush1.xpose.msra.mxu0 0.0
        %1726 = vmatprep.subr.mxu0 0.0
        %1727 = vmatpush1.xpose.msra.mxu0 0.0
        %1728 = vmatprep.subr.mxu0 0.0
        %1729 = vmatpush1.xpose.msra.mxu0 0.0
        %1730 = vmatprep.subr.mxu0 0.0
        %1731 = vmatpush1.xpose.msra.mxu0 0.0
        %1732 = vmatprep.subr.mxu0 0.0
        %1733 = vmatpush1.xpose.msra.mxu0 0.0
        %1734 = vmatprep.subr.mxu0 0.0
        %1735 = vmatpush1.xpose.msra.mxu0 0.0
        %1736 = vmatprep.subr.mxu0 0.0
        %1737 = vmatpush1.xpose.msra.mxu0 0.0
        %1738 = vmatprep.subr.mxu0 0.0
        %1739 = vmatpush1.xpose.msra.mxu0 0.0
        %1740 = vmatprep.subr.mxu0 0.0
        %1741 = vmatpush1.xpose.msra.mxu0 0.0
        %1742 = vmatprep.subr.mxu0 0.0
        %1743 = vmatpush1.xpose.msra.mxu0 0.0
        %1744 = vmatprep.subr.mxu0 0.0
        %1745 = vmatpush1.xpose.msra.mxu0 0.0
        %1746 = vmatprep.subr.mxu0 0.0
        %1747 = vmatpush1.xpose.msra.mxu0 0.0
        %1748 = vmatprep.subr.mxu0 0.0
        %1749 = vmatpush1.xpose.msra.mxu0 0.0
        %1750 = vmatprep.subr.mxu0 0.0
        %1751 = vmatpush1.xpose.msra.mxu0 0.0
        %1752 = vmatprep.subr.mxu0 0.0
        %1753 = vmatpush1.xpose.msra.mxu0 %v1720
        %1754 = vmatprep.subr.mxu0 0.0
        %1755 = vmatpush2.xpose.msra.mxu0 0.0
        %1756 = vmatprep.subr.mxu0 0.0
        %1757 = vmatpush2.xpose.msra.mxu0 0.0
        %1758 = vmatprep.subr.mxu0 0.0
        %1759 = vmatpush2.xpose.msra.mxu0 0.0
        %1760 = vmatprep.subr.mxu0 0.0
        %1761 = vmatpush2.xpose.msra.mxu0 0.0
        %1762 = vmatprep.subr.mxu0 0.0
        %1763 = vmatpush2.xpose.msra.mxu0 0.0
        %1764 = vmatprep.subr.mxu0 0.0
        %1765 = vmatpush2.xpose.msra.mxu0 0.0
        %1766 = vmatprep.subr.mxu0 0.0
        %1767 = vmatpush2.xpose.msra.mxu0 0.0
        %1768 = vmatprep.subr.mxu0 0.0
        %1769 = vmatpush2.xpose.msra.mxu0 0.0
        %1770 = vmatprep.subr.mxu0 0.0
        %1771 = vmatpush2.xpose.msra.mxu0 0.0
        %1772 = vmatprep.subr.mxu0 0.0
        %1773 = vmatpush2.xpose.msra.mxu0 0.0
        %1774 = vmatprep.subr.mxu0 0.0
        %1775 = vmatpush2.xpose.msra.mxu0 0.0
        %1776 = vmatprep.subr.mxu0 0.0
        %1777 = vmatpush2.xpose.msra.mxu0 0.0
        %1778 = vmatprep.subr.mxu0 0.0
        %1779 = vmatpush2.xpose.msra.mxu0 0.0
        %1780 = vmatprep.subr.mxu0 0.0
        %1781 = vmatpush2.xpose.msra.mxu0 0.0
        %1782 = vmatprep.subr.mxu0 0.0
        %1783 = vmatpush2.xpose.msra.mxu0 0.0
        %1784 = vmatprep.subr.mxu0 0.0
        %1785 = vmatpush2.xpose.msra.mxu0 0.0
        %1786 = vmatprep.mubr.f32.mxu0 0.0
        %1787 = vmatmul.mubr.f32.gmra.mxu0 %v1717
        %v1788 = vpop.f32.mrf.mxu0
        %v1789 = vadd.f32 0.0, %v1788
        %v1790 = vpop.f32.mrf.mxu0
        %1791 = vdwg.mxu0
        %v1792 = vmul.f32 %v1789, 0.35355338
        %v1793 = vsel %vm746, %v1792, -inf
        %1794 = vmax.xlane.f32.xlu0 %v1793
        %v1795 = vpop.xlane.xlu0 %1794
        %v1796 = vsub.f32 %v1792, %v1795
        %v1797 = vmul.f32 %v1796, 1.442695
        %v1798 = vpow.pop %v1797
        %v1799 = vsel %vm746, %v1798, 0.0
        %1800 = vadd.xlane.f32.xlu0 %v1799
        %v1801 = vpop.xlane.xlu0 %1800
        %v1802 = vrcp.pop %v1801
        %v1803 = vmul.f32 %v1798, %v1802
        %v1805 = vsel %vm746, %v1803, 0
        %1807 = vmatprep.subr.mxu0 0.0
        %1808 = vmatpush1.msra.mxu0 0.0
        %1809 = vmatprep.subr.mxu0 0.0
        %1810 = vmatpush1.msra.mxu0 0.0
        %1811 = vmatprep.subr.mxu0 0.0
        %1812 = vmatpush1.msra.mxu0 0.0
        %1813 = vmatprep.subr.mxu0 0.0
        %1814 = vmatpush1.msra.mxu0 0.0
        %1815 = vmatprep.subr.mxu0 0.0
        %1816 = vmatpush1.msra.mxu0 0.0
        %1817 = vmatprep.subr.mxu0 0.0
        %1818 = vmatpush1.msra.mxu0 0.0
        %1819 = vmatprep.subr.mxu0 0.0
        %1820 = vmatpush1.msra.mxu0 0.0
        %1821 = vmatprep.subr.mxu0 0.0
        %1822 = vmatpush1.msra.mxu0 0.0
        %1823 = vmatprep.subr.mxu0 0.0
        %1824 = vmatpush1.msra.mxu0 0.0
        %1825 = vmatprep.subr.mxu0 0.0
        %1826 = vmatpush1.msra.mxu0 0.0
        %1827 = vmatprep.subr.mxu0 0.0
        %1828 = vmatpush1.msra.mxu0 0.0
        %1829 = vmatprep.subr.mxu0 0.0
        %1830 = vmatpush1.msra.mxu0 0.0
        %1831 = vmatprep.subr.mxu0 0.0
        %1832 = vmatpush1.msra.mxu0 0.0
        %1833 = vmatprep.subr.mxu0 0.0
        %1834 = vmatpush1.msra.mxu0 0.0
        %1835 = vmatprep.subr.mxu0 0.0
        %1836 = vmatpush1.msra.mxu0 0.0
        %1837 = vmatprep.subr.mxu0 0.0
        %1838 = vmatpush1.msra.mxu0 %v1713
        %1839 = vmatprep.subr.mxu0 0.0
        %1840 = vmatpush2.msra.mxu0 0.0
        %1841 = vmatprep.subr.mxu0 0.0
        %1842 = vmatpush2.msra.mxu0 0.0
        %1843 = vmatprep.subr.mxu0 0.0
        %1844 = vmatpush2.msra.mxu0 0.0
        %1845 = vmatprep.subr.mxu0 0.0
        %1846 = vmatpush2.msra.mxu0 0.0
        %1847 = vmatprep.subr.mxu0 0.0
        %1848 = vmatpush2.msra.mxu0 0.0
        %1849 = vmatprep.subr.mxu0 0.0
        %1850 = vmatpush2.msra.mxu0 0.0
        %1851 = vmatprep.subr.mxu0 0.0
        %1852 = vmatpush2.msra.mxu0 0.0
        %1853 = vmatprep.subr.mxu0 0.0
        %1854 = vmatpush2.msra.mxu0 0.0
        %1855 = vmatprep.subr.mxu0 0.0
        %1856 = vmatpush2.msra.mxu0 0.0
        %1857 = vmatprep.subr.mxu0 0.0
        %1858 = vmatpush2.msra.mxu0 0.0
        %1859 = vmatprep.subr.mxu0 0.0
        %1860 = vmatpush2.msra.mxu0 0.0
        %1861 = vmatprep.subr.mxu0 0.0
        %1862 = vmatpush2.msra.mxu0 0.0
        %1863 = vmatprep.subr.mxu0 0.0
        %1864 = vmatpush2.msra.mxu0 0.0
        %1865 = vmatprep.subr.mxu0 0.0
        %1866 = vmatpush2.msra.mxu0 0.0
        %1867 = vmatprep.subr.mxu0 0.0
        %1868 = vmatpush2.msra.mxu0 0.0
        %1869 = vmatprep.subr.mxu0 0.0
        %1870 = vmatpush2.msra.mxu0 0.0
        %1871 = vmatprep.mubr.f32.mxu0 0.0
        %1872 = vmatmul.mubr.f32.gmra.mxu0 %v1805
        %v1873 = vpop.f32.mrf.mxu0
        %v1874 = vadd.f32 0.0, %v1873
        %v1875 = vpop.f32.mrf.mxu0
        %1876 = vdwg.mxu0
        %s1877 = scalar_lea.vmem %s5, 16
        %v1878 = vld [vmem:[%s1877] sm:$0xff]
        %v1880 = vsel %vm746, %v1874, 0
        %1882 = vmatprep.subr.mxu0 0.0
        %1883 = vmatpush1.msra.mxu0 0.0
        %1884 = vmatprep.subr.mxu0 0.0
        %1885 = vmatpush1.msra.mxu0 0.0
        %1886 = vmatprep.subr.mxu0 0.0
        %1887 = vmatpush1.msra.mxu0 0.0
        %1888 = vmatprep.subr.mxu0 0.0
        %1889 = vmatpush1.msra.mxu0 0.0
        %1890 = vmatprep.subr.mxu0 0.0
        %1891 = vmatpush1.msra.mxu0 0.0
        %1892 = vmatprep.subr.mxu0 0.0
        %1893 = vmatpush1.msra.mxu0 0.0
        %1894 = vmatprep.subr.mxu0 0.0
        %1895 = vmatpush1.msra.mxu0 0.0
        %1896 = vmatprep.subr.mxu0 0.0
        %1897 = vmatpush1.msra.mxu0 0.0
        %1898 = vmatprep.subr.mxu0 0.0
        %1899 = vmatpush1.msra.mxu0 0.0
        %1900 = vmatprep.subr.mxu0 0.0
        %1901 = vmatpush1.msra.mxu0 0.0
        %1902 = vmatprep.subr.mxu0 0.0
        %1903 = vmatpush1.msra.mxu0 0.0
        %1904 = vmatprep.subr.mxu0 0.0
        %1905 = vmatpush1.msra.mxu0 0.0
        %1906 = vmatprep.subr.mxu0 0.0
        %1907 = vmatpush1.msra.mxu0 0.0
        %1908 = vmatprep.subr.mxu0 0.0
        %1909 = vmatpush1.msra.mxu0 0.0
        %1910 = vmatprep.subr.mxu0 0.0
        %1911 = vmatpush1.msra.mxu0 0.0
        %1912 = vmatprep.subr.mxu0 0.0
        %1913 = vmatpush1.msra.mxu0 %v1878
        %1914 = vmatprep.subr.mxu0 0.0
        %1915 = vmatpush2.msra.mxu0 0.0
        %1916 = vmatprep.subr.mxu0 0.0
        %1917 = vmatpush2.msra.mxu0 0.0
        %1918 = vmatprep.subr.mxu0 0.0
        %1919 = vmatpush2.msra.mxu0 0.0
        %1920 = vmatprep.subr.mxu0 0.0
        %1921 = vmatpush2.msra.mxu0 0.0
        %1922 = vmatprep.subr.mxu0 0.0
        %1923 = vmatpush2.msra.mxu0 0.0
        %1924 = vmatprep.subr.mxu0 0.0
        %1925 = vmatpush2.msra.mxu0 0.0
        %1926 = vmatprep.subr.mxu0 0.0
        %1927 = vmatpush2.msra.mxu0 0.0
        %1928 = vmatprep.subr.mxu0 0.0
        %1929 = vmatpush2.msra.mxu0 0.0
        %1930 = vmatprep.subr.mxu0 0.0
        %1931 = vmatpush2.msra.mxu0 0.0
        %1932 = vmatprep.subr.mxu0 0.0
        %1933 = vmatpush2.msra.mxu0 0.0
        %1934 = vmatprep.subr.mxu0 0.0
        %1935 = vmatpush2.msra.mxu0 0.0
        %1936 = vmatprep.subr.mxu0 0.0
        %1937 = vmatpush2.msra.mxu0 0.0
        %1938 = vmatprep.subr.mxu0 0.0
        %1939 = vmatpush2.msra.mxu0 0.0
        %1940 = vmatprep.subr.mxu0 0.0
        %1941 = vmatpush2.msra.mxu0 0.0
        %1942 = vmatprep.subr.mxu0 0.0
        %1943 = vmatpush2.msra.mxu0 0.0
        %1944 = vmatprep.subr.mxu0 0.0
        %1945 = vmatpush2.msra.mxu0 0.0
        %1946 = vmatprep.mubr.f32.mxu0 0.0
        %1947 = vmatmul.mubr.f32.gmra.mxu0 %v1880
        %v1948 = vpop.f32.mrf.mxu0
        %v1949 = vadd.f32 0.0, %v1948
        %v1950 = vpop.f32.mrf.mxu0
        %1951 = vdwg.mxu0
        %v1952 = vadd.f32 %v1464, %v1949
        %s1953 = scalar_lea.vmem %s3, 96
        %v1954 = vld [vmem:[%s1953] sm:$0xff]
        %v1955 = vld [vmem:[%s1953 + $0x8] sm:$0xff]
        %v1956 = vld [vmem:[%s1953 + $0x10] sm:$0xff]
        %v1957 = vld [vmem:[%s1953 + $0x18] sm:$0xff]
        %s1958 = scalar_lea.vmem %s4, 3
        %v1959 = vld [vmem:[%s1958] sm:$0x1]
        %v1961 = vlaneseq
        %v1962 = vshrl.u32 %v1961, 7
        %v1963 = vsub.s32 0, %v1962
        %v1964 = vrot.slane %v1959, %v1963
        %1966 = vmatprep.subr.mxu0 0.0
        %1967 = vmatpush1.msra.mxu0 0.0
        %1968 = vmatprep.subr.mxu0 0.0
        %1969 = vmatpush1.msra.mxu0 0.0
        %1970 = vmatprep.subr.mxu0 0.0
        %1971 = vmatpush1.msra.mxu0 0.0
        %1972 = vmatprep.subr.mxu0 0.0
        %1973 = vmatpush1.msra.mxu0 0.0
        %1974 = vmatprep.subr.mxu0 0.0
        %1975 = vmatpush1.msra.mxu0 0.0
        %1976 = vmatprep.subr.mxu0 0.0
        %1977 = vmatpush1.msra.mxu0 0.0
        %1978 = vmatprep.subr.mxu0 0.0
        %1979 = vmatpush1.msra.mxu0 0.0
        %1980 = vmatprep.subr.mxu0 0.0
        %1981 = vmatpush1.msra.mxu0 0.0
        %1982 = vmatprep.subr.mxu0 0.0
        %1983 = vmatpush1.msra.mxu0 0.0
        %1984 = vmatprep.subr.mxu0 0.0
        %1985 = vmatpush1.msra.mxu0 0.0
        %1986 = vmatprep.subr.mxu0 0.0
        %1987 = vmatpush1.msra.mxu0 0.0
        %1988 = vmatprep.subr.mxu0 0.0
        %1989 = vmatpush1.msra.mxu0 0.0
        %1990 = vmatprep.subr.mxu0 0.0
        %1991 = vmatpush1.msra.mxu0 %v1957
        %1992 = vmatprep.subr.mxu0 0.0
        %1993 = vmatpush1.msra.mxu0 %v1956
        %1994 = vmatprep.subr.mxu0 0.0
        %1995 = vmatpush1.msra.mxu0 %v1955
        %1996 = vmatprep.subr.mxu0 0.0
        %1997 = vmatpush1.msra.mxu0 %v1954
        %1998 = vmatprep.subr.mxu0 0.0
        %1999 = vmatpush2.msra.mxu0 0.0
        %2000 = vmatprep.subr.mxu0 0.0
        %2001 = vmatpush2.msra.mxu0 0.0
        %2002 = vmatprep.subr.mxu0 0.0
        %2003 = vmatpush2.msra.mxu0 0.0
        %2004 = vmatprep.subr.mxu0 0.0
        %2005 = vmatpush2.msra.mxu0 0.0
        %2006 = vmatprep.subr.mxu0 0.0
        %2007 = vmatpush2.msra.mxu0 0.0
        %2008 = vmatprep.subr.mxu0 0.0
        %2009 = vmatpush2.msra.mxu0 0.0
        %2010 = vmatprep.subr.mxu0 0.0
        %2011 = vmatpush2.msra.mxu0 0.0
        %2012 = vmatprep.subr.mxu0 0.0
        %2013 = vmatpush2.msra.mxu0 0.0
        %2014 = vmatprep.subr.mxu0 0.0
        %2015 = vmatpush2.msra.mxu0 0.0
        %2016 = vmatprep.subr.mxu0 0.0
        %2017 = vmatpush2.msra.mxu0 0.0
        %2018 = vmatprep.subr.mxu0 0.0
        %2019 = vmatpush2.msra.mxu0 0.0
        %2020 = vmatprep.subr.mxu0 0.0
        %2021 = vmatpush2.msra.mxu0 0.0
        %2022 = vmatprep.subr.mxu0 0.0
        %2023 = vmatpush2.msra.mxu0 0.0
        %2024 = vmatprep.subr.mxu0 0.0
        %2025 = vmatpush2.msra.mxu0 0.0
        %2026 = vmatprep.subr.mxu0 0.0
        %2027 = vmatpush2.msra.mxu0 0.0
        %2028 = vmatprep.subr.mxu0 0.0
        %2029 = vmatpush2.msra.mxu0 0.0
        %2030 = vmatprep.mubr.f32.mxu0 0.0
        %2031 = vmatmul.mubr.f32.gmra.mxu0 %v508
        %v2032 = vpop.f32.mrf.mxu0
        %v2033 = vadd.f32 %v1964, %v2032
        %v2034 = vpop.f32.mrf.mxu0
        %2035 = vdwg.mxu0
        %s2036 = scalar_lea.vmem %s3, 224
        %v2037 = vld [vmem:[%s2036] sm:$0xff]
        %v2038 = vld [vmem:[%s2036 + $0x8] sm:$0xff]
        %v2039 = vld [vmem:[%s2036 + $0x10] sm:$0xff]
        %v2040 = vld [vmem:[%s2036 + $0x18] sm:$0xff]
        %s2041 = scalar_lea.vmem %s4, 7
        %v2042 = vld [vmem:[%s2041] sm:$0x1]
        %v2044 = vlaneseq
        %v2045 = vshrl.u32 %v2044, 7
        %v2046 = vsub.s32 0, %v2045
        %v2047 = vrot.slane %v2042, %v2046
        %2049 = vmatprep.subr.mxu0 0.0
        %2050 = vmatpush1.msra.mxu0 0.0
        %2051 = vmatprep.subr.mxu0 0.0
        %2052 = vmatpush1.msra.mxu0 0.0
        %2053 = vmatprep.subr.mxu0 0.0
        %2054 = vmatpush1.msra.mxu0 0.0
        %2055 = vmatprep.subr.mxu0 0.0
        %2056 = vmatpush1.msra.mxu0 0.0
        %2057 = vmatprep.subr.mxu0 0.0
        %2058 = vmatpush1.msra.mxu0 0.0
        %2059 = vmatprep.subr.mxu0 0.0
        %2060 = vmatpush1.msra.mxu0 0.0
        %2061 = vmatprep.subr.mxu0 0.0
        %2062 = vmatpush1.msra.mxu0 0.0
        %2063 = vmatprep.subr.mxu0 0.0
        %2064 = vmatpush1.msra.mxu0 0.0
        %2065 = vmatprep.subr.mxu0 0.0
        %2066 = vmatpush1.msra.mxu0 0.0
        %2067 = vmatprep.subr.mxu0 0.0
        %2068 = vmatpush1.msra.mxu0 0.0
        %2069 = vmatprep.subr.mxu0 0.0
        %2070 = vmatpush1.msra.mxu0 0.0
        %2071 = vmatprep.subr.mxu0 0.0
        %2072 = vmatpush1.msra.mxu0 0.0
        %2073 = vmatprep.subr.mxu0 0.0
        %2074 = vmatpush1.msra.mxu0 %v2040
        %2075 = vmatprep.subr.mxu0 0.0
        %2076 = vmatpush1.msra.mxu0 %v2039
        %2077 = vmatprep.subr.mxu0 0.0
        %2078 = vmatpush1.msra.mxu0 %v2038
        %2079 = vmatprep.subr.mxu0 0.0
        %2080 = vmatpush1.msra.mxu0 %v2037
        %2081 = vmatprep.subr.mxu0 0.0
        %2082 = vmatpush2.msra.mxu0 0.0
        %2083 = vmatprep.subr.mxu0 0.0
        %2084 = vmatpush2.msra.mxu0 0.0
        %2085 = vmatprep.subr.mxu0 0.0
        %2086 = vmatpush2.msra.mxu0 0.0
        %2087 = vmatprep.subr.mxu0 0.0
        %2088 = vmatpush2.msra.mxu0 0.0
        %2089 = vmatprep.subr.mxu0 0.0
        %2090 = vmatpush2.msra.mxu0 0.0
        %2091 = vmatprep.subr.mxu0 0.0
        %2092 = vmatpush2.msra.mxu0 0.0
        %2093 = vmatprep.subr.mxu0 0.0
        %2094 = vmatpush2.msra.mxu0 0.0
        %2095 = vmatprep.subr.mxu0 0.0
        %2096 = vmatpush2.msra.mxu0 0.0
        %2097 = vmatprep.subr.mxu0 0.0
        %2098 = vmatpush2.msra.mxu0 0.0
        %2099 = vmatprep.subr.mxu0 0.0
        %2100 = vmatpush2.msra.mxu0 0.0
        %2101 = vmatprep.subr.mxu0 0.0
        %2102 = vmatpush2.msra.mxu0 0.0
        %2103 = vmatprep.subr.mxu0 0.0
        %2104 = vmatpush2.msra.mxu0 0.0
        %2105 = vmatprep.subr.mxu0 0.0
        %2106 = vmatpush2.msra.mxu0 0.0
        %2107 = vmatprep.subr.mxu0 0.0
        %2108 = vmatpush2.msra.mxu0 0.0
        %2109 = vmatprep.subr.mxu0 0.0
        %2110 = vmatpush2.msra.mxu0 0.0
        %2111 = vmatprep.subr.mxu0 0.0
        %2112 = vmatpush2.msra.mxu0 0.0
        %2113 = vmatprep.mubr.f32.mxu0 0.0
        %2114 = vmatmul.mubr.f32.gmra.mxu0 %v508
        %v2115 = vpop.f32.mrf.mxu0
        %v2116 = vadd.f32 %v2047, %v2115
        %v2117 = vpop.f32.mrf.mxu0
        %2118 = vdwg.mxu0
        %s2119 = scalar_lea.vmem %s3, 352
        %v2120 = vld [vmem:[%s2119] sm:$0xff]
        %v2121 = vld [vmem:[%s2119 + $0x8] sm:$0xff]
        %v2122 = vld [vmem:[%s2119 + $0x10] sm:$0xff]
        %v2123 = vld [vmem:[%s2119 + $0x18] sm:$0xff]
        %s2124 = scalar_lea.vmem %s4, 11
        %v2125 = vld [vmem:[%s2124] sm:$0x1]
        %v2127 = vlaneseq
        %v2128 = vshrl.u32 %v2127, 7
        %v2129 = vsub.s32 0, %v2128
        %v2130 = vrot.slane %v2125, %v2129
        %2132 = vmatprep.subr.mxu0 0.0
        %2133 = vmatpush1.msra.mxu0 0.0
        %2134 = vmatprep.subr.mxu0 0.0
        %2135 = vmatpush1.msra.mxu0 0.0
        %2136 = vmatprep.subr.mxu0 0.0
        %2137 = vmatpush1.msra.mxu0 0.0
        %2138 = vmatprep.subr.mxu0 0.0
        %2139 = vmatpush1.msra.mxu0 0.0
        %2140 = vmatprep.subr.mxu0 0.0
        %2141 = vmatpush1.msra.mxu0 0.0
        %2142 = vmatprep.subr.mxu0 0.0
        %2143 = vmatpush1.msra.mxu0 0.0
        %2144 = vmatprep.subr.mxu0 0.0
        %2145 = vmatpush1.msra.mxu0 0.0
        %2146 = vmatprep.subr.mxu0 0.0
        %2147 = vmatpush1.msra.mxu0 0.0
        %2148 = vmatprep.subr.mxu0 0.0
        %2149 = vmatpush1.msra.mxu0 0.0
        %2150 = vmatprep.subr.mxu0 0.0
        %2151 = vmatpush1.msra.mxu0 0.0
        %2152 = vmatprep.subr.mxu0 0.0
        %2153 = vmatpush1.msra.mxu0 0.0
        %2154 = vmatprep.subr.mxu0 0.0
        %2155 = vmatpush1.msra.mxu0 0.0
        %2156 = vmatprep.subr.mxu0 0.0
        %2157 = vmatpush1.msra.mxu0 %v2123
        %2158 = vmatprep.subr.mxu0 0.0
        %2159 = vmatpush1.msra.mxu0 %v2122
        %2160 = vmatprep.subr.mxu0 0.0
        %2161 = vmatpush1.msra.mxu0 %v2121
        %2162 = vmatprep.subr.mxu0 0.0
        %2163 = vmatpush1.msra.mxu0 %v2120
        %2164 = vmatprep.subr.mxu0 0.0
        %2165 = vmatpush2.msra.mxu0 0.0
        %2166 = vmatprep.subr.mxu0 0.0
        %2167 = vmatpush2.msra.mxu0 0.0
        %2168 = vmatprep.subr.mxu0 0.0
        %2169 = vmatpush2.msra.mxu0 0.0
        %2170 = vmatprep.subr.mxu0 0.0
        %2171 = vmatpush2.msra.mxu0 0.0
        %2172 = vmatprep.subr.mxu0 0.0
        %2173 = vmatpush2.msra.mxu0 0.0
        %2174 = vmatprep.subr.mxu0 0.0
        %2175 = vmatpush2.msra.mxu0 0.0
        %2176 = vmatprep.subr.mxu0 0.0
        %2177 = vmatpush2.msra.mxu0 0.0
        %2178 = vmatprep.subr.mxu0 0.0
        %2179 = vmatpush2.msra.mxu0 0.0
        %2180 = vmatprep.subr.mxu0 0.0
        %2181 = vmatpush2.msra.mxu0 0.0
        %2182 = vmatprep.subr.mxu0 0.0
        %2183 = vmatpush2.msra.mxu0 0.0
        %2184 = vmatprep.subr.mxu0 0.0
        %2185 = vmatpush2.msra.mxu0 0.0
        %2186 = vmatprep.subr.mxu0 0.0
        %2187 = vmatpush2.msra.mxu0 0.0
        %2188 = vmatprep.subr.mxu0 0.0
        %2189 = vmatpush2.msra.mxu0 0.0
        %2190 = vmatprep.subr.mxu0 0.0
        %2191 = vmatpush2.msra.mxu0 0.0
        %2192 = vmatprep.subr.mxu0 0.0
        %2193 = vmatpush2.msra.mxu0 0.0
        %2194 = vmatprep.subr.mxu0 0.0
        %2195 = vmatpush2.msra.mxu0 0.0
        %2196 = vmatprep.mubr.f32.mxu0 0.0
        %2197 = vmatmul.mubr.f32.gmra.mxu0 %v508
        %v2198 = vpop.f32.mrf.mxu0
        %v2199 = vadd.f32 %v2130, %v2198
        %v2200 = vpop.f32.mrf.mxu0
        %2201 = vdwg.mxu0
        %v2203 = vsel %vm746, %v2033, 0
        %v2206 = vsel %vm746, %v2116, 0
        %2208 = vmatprep.subr.mxu0 0.0
        %2209 = vmatpush1.xpose.msra.mxu0 0.0
        %2210 = vmatprep.subr.mxu0 0.0
        %2211 = vmatpush1.xpose.msra.mxu0 0.0
        %2212 = vmatprep.subr.mxu0 0.0
        %2213 = vmatpush1.xpose.msra.mxu0 0.0
        %2214 = vmatprep.subr.mxu0 0.0
        %2215 = vmatpush1.xpose.msra.mxu0 0.0
        %2216 = vmatprep.subr.mxu0 0.0
        %2217 = vmatpush1.xpose.msra.mxu0 0.0
        %2218 = vmatprep.subr.mxu0 0.0
        %2219 = vmatpush1.xpose.msra.mxu0 0.0
        %2220 = vmatprep.subr.mxu0 0.0
        %2221 = vmatpush1.xpose.msra.mxu0 0.0
        %2222 = vmatprep.subr.mxu0 0.0
        %2223 = vmatpush1.xpose.msra.mxu0 0.0
        %2224 = vmatprep.subr.mxu0 0.0
        %2225 = vmatpush1.xpose.msra.mxu0 0.0
        %2226 = vmatprep.subr.mxu0 0.0
        %2227 = vmatpush1.xpose.msra.mxu0 0.0
        %2228 = vmatprep.subr.mxu0 0.0
        %2229 = vmatpush1.xpose.msra.mxu0 0.0
        %2230 = vmatprep.subr.mxu0 0.0
        %2231 = vmatpush1.xpose.msra.mxu0 0.0
        %2232 = vmatprep.subr.mxu0 0.0
        %2233 = vmatpush1.xpose.msra.mxu0 0.0
        %2234 = vmatprep.subr.mxu0 0.0
        %2235 = vmatpush1.xpose.msra.mxu0 0.0
        %2236 = vmatprep.subr.mxu0 0.0
        %2237 = vmatpush1.xpose.msra.mxu0 0.0
        %2238 = vmatprep.subr.mxu0 0.0
        %2239 = vmatpush1.xpose.msra.mxu0 %v2206
        %2240 = vmatprep.subr.mxu0 0.0
        %2241 = vmatpush2.xpose.msra.mxu0 0.0
        %2242 = vmatprep.subr.mxu0 0.0
        %2243 = vmatpush2.xpose.msra.mxu0 0.0
        %2244 = vmatprep.subr.mxu0 0.0
        %2245 = vmatpush2.xpose.msra.mxu0 0.0
        %2246 = vmatprep.subr.mxu0 0.0
        %2247 = vmatpush2.xpose.msra.mxu0 0.0
        %2248 = vmatprep.subr.mxu0 0.0
        %2249 = vmatpush2.xpose.msra.mxu0 0.0
        %2250 = vmatprep.subr.mxu0 0.0
        %2251 = vmatpush2.xpose.msra.mxu0 0.0
        %2252 = vmatprep.subr.mxu0 0.0
        %2253 = vmatpush2.xpose.msra.mxu0 0.0
        %2254 = vmatprep.subr.mxu0 0.0
        %2255 = vmatpush2.xpose.msra.mxu0 0.0
        %2256 = vmatprep.subr.mxu0 0.0
        %2257 = vmatpush2.xpose.msra.mxu0 0.0
        %2258 = vmatprep.subr.mxu0 0.0
        %2259 = vmatpush2.xpose.msra.mxu0 0.0
        %2260 = vmatprep.subr.mxu0 0.0
        %2261 = vmatpush2.xpose.msra.mxu0 0.0
        %2262 = vmatprep.subr.mxu0 0.0
        %2263 = vmatpush2.xpose.msra.mxu0 0.0
        %2264 = vmatprep.subr.mxu0 0.0
        %2265 = vmatpush2.xpose.msra.mxu0 0.0
        %2266 = vmatprep.subr.mxu0 0.0
        %2267 = vmatpush2.xpose.msra.mxu0 0.0
        %2268 = vmatprep.subr.mxu0 0.0
        %2269 = vmatpush2.xpose.msra.mxu0 0.0
        %2270 = vmatprep.subr.mxu0 0.0
        %2271 = vmatpush2.xpose.msra.mxu0 0.0
        %2272 = vmatprep.mubr.f32.mxu0 0.0
        %2273 = vmatmul.mubr.f32.gmra.mxu0 %v2203
        %v2274 = vpop.f32.mrf.mxu0
        %v2275 = vadd.f32 0.0, %v2274
        %v2276 = vpop.f32.mrf.mxu0
        %2277 = vdwg.mxu0
        %v2278 = vmul.f32 %v2275, 0.35355338
        %v2279 = vsel %vm746, %v2278, -inf
        %2280 = vmax.xlane.f32.xlu0 %v2279
        %v2281 = vpop.xlane.xlu0 %2280
        %v2282 = vsub.f32 %v2278, %v2281
        %v2283 = vmul.f32 %v2282, 1.442695
        %v2284 = vpow.pop %v2283
        %v2285 = vsel %vm746, %v2284, 0.0
        %2286 = vadd.xlane.f32.xlu0 %v2285
        %v2287 = vpop.xlane.xlu0 %2286
        %v2288 = vrcp.pop %v2287
        %v2289 = vmul.f32 %v2284, %v2288
        %v2291 = vsel %vm746, %v2289, 0
        %2293 = vmatprep.subr.mxu0 0.0
        %2294 = vmatpush1.msra.mxu0 0.0
        %2295 = vmatprep.subr.mxu0 0.0
        %2296 = vmatpush1.msra.mxu0 0.0
        %2297 = vmatprep.subr.mxu0 0.0
        %2298 = vmatpush1.msra.mxu0 0.0
        %2299 = vmatprep.subr.mxu0 0.0
        %2300 = vmatpush1.msra.mxu0 0.0
        %2301 = vmatprep.subr.mxu0 0.0
        %2302 = vmatpush1.msra.mxu0 0.0
        %2303 = vmatprep.subr.mxu0 0.0
        %2304 = vmatpush1.msra.mxu0 0.0
        %2305 = vmatprep.subr.mxu0 0.0
        %2306 = vmatpush1.msra.mxu0 0.0
        %2307 = vmatprep.subr.mxu0 0.0
        %2308 = vmatpush1.msra.mxu0 0.0
        %2309 = vmatprep.subr.mxu0 0.0
        %2310 = vmatpush1.msra.mxu0 0.0
        %2311 = vmatprep.subr.mxu0 0.0
        %2312 = vmatpush1.msra.mxu0 0.0
        %2313 = vmatprep.subr.mxu0 0.0
        %2314 = vmatpush1.msra.mxu0 0.0
        %2315 = vmatprep.subr.mxu0 0.0
        %2316 = vmatpush1.msra.mxu0 0.0
        %2317 = vmatprep.subr.mxu0 0.0
        %2318 = vmatpush1.msra.mxu0 0.0
        %2319 = vmatprep.subr.mxu0 0.0
        %2320 = vmatpush1.msra.mxu0 0.0
        %2321 = vmatprep.subr.mxu0 0.0
        %2322 = vmatpush1.msra.mxu0 0.0
        %2323 = vmatprep.subr.mxu0 0.0
        %2324 = vmatpush1.msra.mxu0 %v2199
        %2325 = vmatprep.subr.mxu0 0.0
        %2326 = vmatpush2.msra.mxu0 0.0
        %2327 = vmatprep.subr.mxu0 0.0
        %2328 = vmatpush2.msra.mxu0 0.0
        %2329 = vmatprep.subr.mxu0 0.0
        %2330 = vmatpush2.msra.mxu0 0.0
        %2331 = vmatprep.subr.mxu0 0.0
        %2332 = vmatpush2.msra.mxu0 0.0
        %2333 = vmatprep.subr.mxu0 0.0
        %2334 = vmatpush2.msra.mxu0 0.0
        %2335 = vmatprep.subr.mxu0 0.0
        %2336 = vmatpush2.msra.mxu0 0.0
        %2337 = vmatprep.subr.mxu0 0.0
        %2338 = vmatpush2.msra.mxu0 0.0
        %2339 = vmatprep.subr.mxu0 0.0
        %2340 = vmatpush2.msra.mxu0 0.0
        %2341 = vmatprep.subr.mxu0 0.0
        %2342 = vmatpush2.msra.mxu0 0.0
        %2343 = vmatprep.subr.mxu0 0.0
        %2344 = vmatpush2.msra.mxu0 0.0
        %2345 = vmatprep.subr.mxu0 0.0
        %2346 = vmatpush2.msra.mxu0 0.0
        %2347 = vmatprep.subr.mxu0 0.0
        %2348 = vmatpush2.msra.mxu0 0.0
        %2349 = vmatprep.subr.mxu0 0.0
        %2350 = vmatpush2.msra.mxu0 0.0
        %2351 = vmatprep.subr.mxu0 0.0
        %2352 = vmatpush2.msra.mxu0 0.0
        %2353 = vmatprep.subr.mxu0 0.0
        %2354 = vmatpush2.msra.mxu0 0.0
        %2355 = vmatprep.subr.mxu0 0.0
        %2356 = vmatpush2.msra.mxu0 0.0
        %2357 = vmatprep.mubr.f32.mxu0 0.0
        %2358 = vmatmul.mubr.f32.gmra.mxu0 %v2291
        %v2359 = vpop.f32.mrf.mxu0
        %v2360 = vadd.f32 0.0, %v2359
        %v2361 = vpop.f32.mrf.mxu0
        %2362 = vdwg.mxu0
        %s2363 = scalar_lea.vmem %s5, 24
        %v2364 = vld [vmem:[%s2363] sm:$0xff]
        %v2366 = vsel %vm746, %v2360, 0
        %2368 = vmatprep.subr.mxu0 0.0
        %2369 = vmatpush1.msra.mxu0 0.0
        %2370 = vmatprep.subr.mxu0 0.0
        %2371 = vmatpush1.msra.mxu0 0.0
        %2372 = vmatprep.subr.mxu0 0.0
        %2373 = vmatpush1.msra.mxu0 0.0
        %2374 = vmatprep.subr.mxu0 0.0
        %2375 = vmatpush1.msra.mxu0 0.0
        %2376 = vmatprep.subr.mxu0 0.0
        %2377 = vmatpush1.msra.mxu0 0.0
        %2378 = vmatprep.subr.mxu0 0.0
        %2379 = vmatpush1.msra.mxu0 0.0
        %2380 = vmatprep.subr.mxu0 0.0
        %2381 = vmatpush1.msra.mxu0 0.0
        %2382 = vmatprep.subr.mxu0 0.0
        %2383 = vmatpush1.msra.mxu0 0.0
        %2384 = vmatprep.subr.mxu0 0.0
        %2385 = vmatpush1.msra.mxu0 0.0
        %2386 = vmatprep.subr.mxu0 0.0
        %2387 = vmatpush1.msra.mxu0 0.0
        %2388 = vmatprep.subr.mxu0 0.0
        %2389 = vmatpush1.msra.mxu0 0.0
        %2390 = vmatprep.subr.mxu0 0.0
        %2391 = vmatpush1.msra.mxu0 0.0
        %2392 = vmatprep.subr.mxu0 0.0
        %2393 = vmatpush1.msra.mxu0 0.0
        %2394 = vmatprep.subr.mxu0 0.0
        %2395 = vmatpush1.msra.mxu0 0.0
        %2396 = vmatprep.subr.mxu0 0.0
        %2397 = vmatpush1.msra.mxu0 0.0
        %2398 = vmatprep.subr.mxu0 0.0
        %2399 = vmatpush1.msra.mxu0 %v2364
        %2400 = vmatprep.subr.mxu0 0.0
        %2401 = vmatpush2.msra.mxu0 0.0
        %2402 = vmatprep.subr.mxu0 0.0
        %2403 = vmatpush2.msra.mxu0 0.0
        %2404 = vmatprep.subr.mxu0 0.0
        %2405 = vmatpush2.msra.mxu0 0.0
        %2406 = vmatprep.subr.mxu0 0.0
        %2407 = vmatpush2.msra.mxu0 0.0
        %2408 = vmatprep.subr.mxu0 0.0
        %2409 = vmatpush2.msra.mxu0 0.0
        %2410 = vmatprep.subr.mxu0 0.0
        %2411 = vmatpush2.msra.mxu0 0.0
        %2412 = vmatprep.subr.mxu0 0.0
        %2413 = vmatpush2.msra.mxu0 0.0
        %2414 = vmatprep.subr.mxu0 0.0
        %2415 = vmatpush2.msra.mxu0 0.0
        %2416 = vmatprep.subr.mxu0 0.0
        %2417 = vmatpush2.msra.mxu0 0.0
        %2418 = vmatprep.subr.mxu0 0.0
        %2419 = vmatpush2.msra.mxu0 0.0
        %2420 = vmatprep.subr.mxu0 0.0
        %2421 = vmatpush2.msra.mxu0 0.0
        %2422 = vmatprep.subr.mxu0 0.0
        %2423 = vmatpush2.msra.mxu0 0.0
        %2424 = vmatprep.subr.mxu0 0.0
        %2425 = vmatpush2.msra.mxu0 0.0
        %2426 = vmatprep.subr.mxu0 0.0
        %2427 = vmatpush2.msra.mxu0 0.0
        %2428 = vmatprep.subr.mxu0 0.0
        %2429 = vmatpush2.msra.mxu0 0.0
        %2430 = vmatprep.subr.mxu0 0.0
        %2431 = vmatpush2.msra.mxu0 0.0
        %2432 = vmatprep.mubr.f32.mxu0 0.0
        %2433 = vmatmul.mubr.f32.gmra.mxu0 %v2366
        %v2434 = vpop.f32.mrf.mxu0
        %v2435 = vadd.f32 0.0, %v2434
        %v2436 = vpop.f32.mrf.mxu0
        %2437 = vdwg.mxu0
        %v2438 = vadd.f32 %v1952, %v2435
        %v2439 = vld [vmem:[%s6] sm:$0x1]
        %v2441 = vlaneseq
        %v2442 = vshrl.u32 %v2441, 7
        %v2443 = vsub.s32 0, %v2442
        %v2444 = vrot.slane %v2439, %v2443
        %v2446 = vadd.f32 %v2438, %v2444
        %v2447 = vadd.f32 %v493, %v2446
        %s2448 = scalar_lea.vmem %s6, 1
        %v2449 = vld [vmem:[%s2448] sm:$0x1]
        %s2450 = scalar_lea.vmem %s6, 2
        %v2451 = vld [vmem:[%s2450] sm:$0x1]
        %v2452 = vsel %vm422, %v2447, 0.0
        %2453 = vadd.xlane.f32.xlu0 %v2452
        %v2454 = vpop.xlane.xlu0 %2453
        %v2455 = vrcp.pop 32.0
        %v2456 = vmul.f32 %v2454, %v2455
        %v2457 = vsub.f32 %v2447, %v2456
        %v2458 = vmul.f32 %v2457, %v2457
        %v2459 = vsel %vm422, %v2458, 0.0
        %2460 = vadd.xlane.f32.xlu0 %v2459
        %v2461 = vpop.xlane.xlu0 %2460
        %v2462 = vmul.f32 %v2461, %v2455
        %v2463 = vadd.f32 %v2462, 1e-05
        %v2464 = vrsqrt.pop %v2463
        %v2465 = vmul.f32 %v2457, %v2464
        %v2467 = vlaneseq
        %v2468 = vshrl.u32 %v2467, 7
        %v2469 = vsub.s32 0, %v2468
        %v2470 = vrot.slane %v2449, %v2469
        %v2472 = vmul.f32 %v2465, %v2470
        %v2474 = vlaneseq
        %v2475 = vshrl.u32 %v2474, 7
        %v2476 = vsub.s32 0, %v2475
        %v2477 = vrot.slane %v2451, %v2476
        %v2479 = vadd.f32 %v2472, %v2477
        %v2480 = vld [vmem:[%s7] sm:$0xff]
        %v2481 = vld [vmem:[%s7 + $0x8] sm:$0xff]
        %v2482 = vld [vmem:[%s7 + $0x10] sm:$0xff]
        %v2483 = vld [vmem:[%s7 + $0x18] sm:$0xff]
        %v2484 = vld [vmem:[%s8] sm:$0x1]
        %v2486 = vlaneseq
        %v2487 = vshrl.u32 %v2486, 7
        %v2488 = vsub.s32 0, %v2487
        %v2489 = vrot.slane %v2484, %v2488
        %v2492 = vsel %vm422, %v2479, 0
        %2494 = vmatprep.subr.mxu0 0.0
        %2495 = vmatpush1.msra.mxu0 0.0
        %2496 = vmatprep.subr.mxu0 0.0
        %2497 = vmatpush1.msra.mxu0 0.0
        %2498 = vmatprep.subr.mxu0 0.0
        %2499 = vmatpush1.msra.mxu0 0.0
        %2500 = vmatprep.subr.mxu0 0.0
        %2501 = vmatpush1.msra.mxu0 0.0
        %2502 = vmatprep.subr.mxu0 0.0
        %2503 = vmatpush1.msra.mxu0 0.0
        %2504 = vmatprep.subr.mxu0 0.0
        %2505 = vmatpush1.msra.mxu0 0.0
        %2506 = vmatprep.subr.mxu0 0.0
        %2507 = vmatpush1.msra.mxu0 0.0
        %2508 = vmatprep.subr.mxu0 0.0
        %2509 = vmatpush1.msra.mxu0 0.0
        %2510 = vmatprep.subr.mxu0 0.0
        %2511 = vmatpush1.msra.mxu0 0.0
        %2512 = vmatprep.subr.mxu0 0.0
        %2513 = vmatpush1.msra.mxu0 0.0
        %2514 = vmatprep.subr.mxu0 0.0
        %2515 = vmatpush1.msra.mxu0 0.0
        %2516 = vmatprep.subr.mxu0 0.0
        %2517 = vmatpush1.msra.mxu0 0.0
        %2518 = vmatprep.subr.mxu0 0.0
        %2519 = vmatpush1.msra.mxu0 %v2483
        %2520 = vmatprep.subr.mxu0 0.0
        %2521 = vmatpush1.msra.mxu0 %v2482
        %2522 = vmatprep.subr.mxu0 0.0
        %2523 = vmatpush1.msra.mxu0 %v2481
        %2524 = vmatprep.subr.mxu0 0.0
        %2525 = vmatpush1.msra.mxu0 %v2480
        %2526 = vmatprep.subr.mxu0 0.0
        %2527 = vmatpush2.msra.mxu0 0.0
        %2528 = vmatprep.subr.mxu0 0.0
        %2529 = vmatpush2.msra.mxu0 0.0
        %2530 = vmatprep.subr.mxu0 0.0
        %2531 = vmatpush2.msra.mxu0 0.0
        %2532 = vmatprep.subr.mxu0 0.0
        %2533 = vmatpush2.msra.mxu0 0.0
        %2534 = vmatprep.subr.mxu0 0.0
        %2535 = vmatpush2.msra.mxu0 0.0
        %2536 = vmatprep.subr.mxu0 0.0
        %2537 = vmatpush2.msra.mxu0 0.0
        %2538 = vmatprep.subr.mxu0 0.0
        %2539 = vmatpush2.msra.mxu0 0.0
        %2540 = vmatprep.subr.mxu0 0.0
        %2541 = vmatpush2.msra.mxu0 0.0
        %2542 = vmatprep.subr.mxu0 0.0
        %2543 = vmatpush2.msra.mxu0 0.0
        %2544 = vmatprep.subr.mxu0 0.0
        %2545 = vmatpush2.msra.mxu0 0.0
        %2546 = vmatprep.subr.mxu0 0.0
        %2547 = vmatpush2.msra.mxu0 0.0
        %2548 = vmatprep.subr.mxu0 0.0
        %2549 = vmatpush2.msra.mxu0 0.0
        %2550 = vmatprep.subr.mxu0 0.0
        %2551 = vmatpush2.msra.mxu0 0.0
        %2552 = vmatprep.subr.mxu0 0.0
        %2553 = vmatpush2.msra.mxu0 0.0
        %2554 = vmatprep.subr.mxu0 0.0
        %2555 = vmatpush2.msra.mxu0 0.0
        %2556 = vmatprep.subr.mxu0 0.0
        %2557 = vmatpush2.msra.mxu0 0.0
        %2558 = vmatprep.mubr.f32.mxu0 0.0
        %2559 = vmatmul.mubr.f32.gmra.mxu0 %v2492
        %v2560 = vpop.f32.mrf.mxu0
        %v2561 = vadd.f32 %v2489, %v2560
        %v2562 = vpop.f32.mrf.mxu0
        %2563 = vdwg.mxu0
        %v2564 = vmax.f32 %v2561, 0.0
        %v2565 = vld [vmem:[%s9] sm:$0xff]
        %v2566 = vld [vmem:[%s9 + $0x8] sm:$0xff]
        %v2567 = vld [vmem:[%s9 + $0x10] sm:$0xff]
        %v2568 = vld [vmem:[%s9 + $0x18] sm:$0xff]
        %v2569 = vld [vmem:[%s9 + $0x20] sm:$0xff]
        %v2570 = vld [vmem:[%s9 + $0x28] sm:$0xff]
        %v2571 = vld [vmem:[%s9 + $0x30] sm:$0xff]
        %v2572 = vld [vmem:[%s9 + $0x38] sm:$0xff]
        %s2573 = scalar_lea.vmem %s6, 3
        %v2574 = vld [vmem:[%s2573] sm:$0x1]
        %v2576 = vlaneseq
        %v2577 = vshrl.u32 %v2576, 7
        %v2578 = vsub.s32 0, %v2577
        %v2579 = vrot.slane %v2574, %v2578
        %vm2581 = vcmask 523264
        %v2583 = vsel %vm2581, %v2564, 0
        %2585 = vmatprep.subr.mxu0 0.0
        %2586 = vmatpush1.msra.mxu0 0.0
        %2587 = vmatprep.subr.mxu0 0.0
        %2588 = vmatpush1.msra.mxu0 0.0
        %2589 = vmatprep.subr.mxu0 0.0
        %2590 = vmatpush1.msra.mxu0 0.0
        %2591 = vmatprep.subr.mxu0 0.0
        %2592 = vmatpush1.msra.mxu0 0.0
        %2593 = vmatprep.subr.mxu0 0.0
        %2594 = vmatpush1.msra.mxu0 0.0
        %2595 = vmatprep.subr.mxu0 0.0
        %2596 = vmatpush1.msra.mxu0 0.0
        %2597 = vmatprep.subr.mxu0 0.0
        %2598 = vmatpush1.msra.mxu0 0.0
        %2599 = vmatprep.subr.mxu0 0.0
        %2600 = vmatpush1.msra.mxu0 0.0
        %2601 = vmatprep.subr.mxu0 0.0
        %2602 = vmatpush1.msra.mxu0 %v2572
        %2603 = vmatprep.subr.mxu0 0.0
        %2604 = vmatpush1.msra.mxu0 %v2571
        %2605 = vmatprep.subr.mxu0 0.0
        %2606 = vmatpush1.msra.mxu0 %v2570
        %2607 = vmatprep.subr.mxu0 0.0
        %2608 = vmatpush1.msra.mxu0 %v2569
        %2609 = vmatprep.subr.mxu0 0.0
        %2610 = vmatpush1.msra.mxu0 %v2568
        %2611 = vmatprep.subr.mxu0 0.0
        %2612 = vmatpush1.msra.mxu0 %v2567
        %2613 = vmatprep.subr.mxu0 0.0
        %2614 = vmatpush1.msra.mxu0 %v2566
        %2615 = vmatprep.subr.mxu0 0.0
        %2616 = vmatpush1.msra.mxu0 %v2565
        %2617 = vmatprep.subr.mxu0 0.0
        %2618 = vmatpush2.msra.mxu0 0.0
        %2619 = vmatprep.subr.mxu0 0.0
        %2620 = vmatpush2.msra.mxu0 0.0
        %2621 = vmatprep.subr.mxu0 0.0
        %2622 = vmatpush2.msra.mxu0 0.0
        %2623 = vmatprep.subr.mxu0 0.0
        %2624 = vmatpush2.msra.mxu0 0.0
        %2625 = vmatprep.subr.mxu0 0.0
        %2626 = vmatpush2.msra.mxu0 0.0
        %2627 = vmatprep.subr.mxu0 0.0
        %2628 = vmatpush2.msra.mxu0 0.0
        %2629 = vmatprep.subr.mxu0 0.0
        %2630 = vmatpush2.msra.mxu0 0.0
        %2631 = vmatprep.subr.mxu0 0.0
        %2632 = vmatpush2.msra.mxu0 0.0
        %2633 = vmatprep.subr.mxu0 0.0
        %2634 = vmatpush2.msra.mxu0 0.0
        %2635 = vmatprep.subr.mxu0 0.0
        %2636 = vmatpush2.msra.mxu0 0.0
        %2637 = vmatprep.subr.mxu0 0.0
        %2638 = vmatpush2.msra.mxu0 0.0
        %2639 = vmatprep.subr.mxu0 0.0
        %2640 = vmatpush2.msra.mxu0 0.0
        %2641 = vmatprep.subr.mxu0 0.0
        %2642 = vmatpush2.msra.mxu0 0.0
        %2643 = vmatprep.subr.mxu0 0.0
        %2644 = vmatpush2.msra.mxu0 0.0
        %2645 = vmatprep.subr.mxu0 0.0
        %2646 = vmatpush2.msra.mxu0 0.0
        %2647 = vmatprep.subr.mxu0 0.0
        %2648 = vmatpush2.msra.mxu0 0.0
        %2649 = vmatprep.mubr.f32.mxu0 0.0
        %2650 = vmatmul.mubr.f32.gmra.mxu0 %v2583
        %v2651 = vpop.f32.mrf.mxu0
        %v2652 = vadd.f32 %v2579, %v2651
        %v2653 = vpop.f32.mrf.mxu0
        %2654 = vdwg.mxu0
        %v2655 = vadd.f32 %v2479, %v2652
        %s2656 = scalar_lea.vmem %s6, 4
        %v2657 = vld [vmem:[%s2656] sm:$0x1]
        %s2658 = scalar_lea.vmem %s6, 5
        %v2659 = vld [vmem:[%s2658] sm:$0x1]
        %v2660 = vsel %vm422, %v2655, 0.0
        %2661 = vadd.xlane.f32.xlu0 %v2660
        %v2662 = vpop.xlane.xlu0 %2661
        %v2663 = vmul.f32 %v2662, %v2455
        %v2664 = vsub.f32 %v2655, %v2663
        %v2665 = vmul.f32 %v2664, %v2664
        %v2666 = vsel %vm422, %v2665, 0.0
        %2667 = vadd.xlane.f32.xlu0 %v2666
        %v2668 = vpop.xlane.xlu0 %2667
        %v2669 = vmul.f32 %v2668, %v2455
        %v2670 = vadd.f32 %v2669, 1e-05
        %v2671 = vrsqrt.pop %v2670
        %v2672 = vmul.f32 %v2664, %v2671
        %v2674 = vlaneseq
        %v2675 = vshrl.u32 %v2674, 7
        %v2676 = vsub.s32 0, %v2675
        %v2677 = vrot.slane %v2657, %v2676
        %v2679 = vmul.f32 %v2672, %v2677
        %v2681 = vlaneseq
        %v2682 = vshrl.u32 %v2681, 7
        %v2683 = vsub.s32 0, %v2682
        %v2684 = vrot.slane %v2659, %v2683
        %v2686 = vadd.f32 %v2679, %v2684
        %s2687 = scalar_lea.vmem %s3, 384
        %v2688 = vld [vmem:[%s2687] sm:$0xff]
        %v2689 = vld [vmem:[%s2687 + $0x8] sm:$0xff]
        %v2690 = vld [vmem:[%s2687 + $0x10] sm:$0xff]
        %v2691 = vld [vmem:[%s2687 + $0x18] sm:$0xff]
        %s2692 = scalar_lea.vmem %s4, 12
        %v2693 = vld [vmem:[%s2692] sm:$0x1]
        %v2695 = vlaneseq
        %v2696 = vshrl.u32 %v2695, 7
        %v2697 = vsub.s32 0, %v2696
        %v2698 = vrot.slane %v2693, %v2697
        %v2701 = vsel %vm422, %v2686, 0
        %2703 = vmatprep.subr.mxu0 0.0
        %2704 = vmatpush1.msra.mxu0 0.0
        %2705 = vmatprep.subr.mxu0 0.0
        %2706 = vmatpush1.msra.mxu0 0.0
        %2707 = vmatprep.subr.mxu0 0.0
        %2708 = vmatpush1.msra.mxu0 0.0
        %2709 = vmatprep.subr.mxu0 0.0
        %2710 = vmatpush1.msra.mxu0 0.0
        %2711 = vmatprep.subr.mxu0 0.0
        %2712 = vmatpush1.msra.mxu0 0.0
        %2713 = vmatprep.subr.mxu0 0.0
        %2714 = vmatpush1.msra.mxu0 0.0
        %2715 = vmatprep.subr.mxu0 0.0
        %2716 = vmatpush1.msra.mxu0 0.0
        %2717 = vmatprep.subr.mxu0 0.0
        %2718 = vmatpush1.msra.mxu0 0.0
        %2719 = vmatprep.subr.mxu0 0.0
        %2720 = vmatpush1.msra.mxu0 0.0
        %2721 = vmatprep.subr.mxu0 0.0
        %2722 = vmatpush1.msra.mxu0 0.0
        %2723 = vmatprep.subr.mxu0 0.0
        %2724 = vmatpush1.msra.mxu0 0.0
        %2725 = vmatprep.subr.mxu0 0.0
        %2726 = vmatpush1.msra.mxu0 0.0
        %2727 = vmatprep.subr.mxu0 0.0
        %2728 = vmatpush1.msra.mxu0 %v2691
        %2729 = vmatprep.subr.mxu0 0.0
        %2730 = vmatpush1.msra.mxu0 %v2690
        %2731 = vmatprep.subr.mxu0 0.0
        %2732 = vmatpush1.msra.mxu0 %v2689
        %2733 = vmatprep.subr.mxu0 0.0
        %2734 = vmatpush1.msra.mxu0 %v2688
        %2735 = vmatprep.subr.mxu0 0.0
        %2736 = vmatpush2.msra.mxu0 0.0
        %2737 = vmatprep.subr.mxu0 0.0
        %2738 = vmatpush2.msra.mxu0 0.0
        %2739 = vmatprep.subr.mxu0 0.0
        %2740 = vmatpush2.msra.mxu0 0.0
        %2741 = vmatprep.subr.mxu0 0.0
        %2742 = vmatpush2.msra.mxu0 0.0
        %2743 = vmatprep.subr.mxu0 0.0
        %2744 = vmatpush2.msra.mxu0 0.0
        %2745 = vmatprep.subr.mxu0 0.0
        %2746 = vmatpush2.msra.mxu0 0.0
        %2747 = vmatprep.subr.mxu0 0.0
        %2748 = vmatpush2.msra.mxu0 0.0
        %2749 = vmatprep.subr.mxu0 0.0
        %2750 = vmatpush2.msra.mxu0 0.0
        %2751 = vmatprep.subr.mxu0 0.0
        %2752 = vmatpush2.msra.mxu0 0.0
        %2753 = vmatprep.subr.mxu0 0.0
        %2754 = vmatpush2.msra.mxu0 0.0
        %2755 = vmatprep.subr.mxu0 0.0
        %2756 = vmatpush2.msra.mxu0 0.0
        %2757 = vmatprep.subr.mxu0 0.0
        %2758 = vmatpush2.msra.mxu0 0.0
        %2759 = vmatprep.subr.mxu0 0.0
        %2760 = vmatpush2.msra.mxu0 0.0
        %2761 = vmatprep.subr.mxu0 0.0
        %2762 = vmatpush2.msra.mxu0 0.0
        %2763 = vmatprep.subr.mxu0 0.0
        %2764 = vmatpush2.msra.mxu0 0.0
        %2765 = vmatprep.subr.mxu0 0.0
        %2766 = vmatpush2.msra.mxu0 0.0
        %2767 = vmatprep.mubr.f32.mxu0 0.0
        %2768 = vmatmul.mubr.f32.gmra.mxu0 %v2701
        %v2769 = vpop.f32.mrf.mxu0
        %v2770 = vadd.f32 %v2698, %v2769
        %v2771 = vpop.f32.mrf.mxu0
        %2772 = vdwg.mxu0
        %s2773 = scalar_lea.vmem %s3, 512
        %v2774 = vld [vmem:[%s2773] sm:$0xff]
        %v2775 = vld [vmem:[%s2773 + $0x8] sm:$0xff]
        %v2776 = vld [vmem:[%s2773 + $0x10] sm:$0xff]
        %v2777 = vld [vmem:[%s2773 + $0x18] sm:$0xff]
        %s2778 = scalar_lea.vmem %s4, 16
        %v2779 = vld [vmem:[%s2778] sm:$0x1]
        %v2781 = vlaneseq
        %v2782 = vshrl.u32 %v2781, 7
        %v2783 = vsub.s32 0, %v2782
        %v2784 = vrot.slane %v2779, %v2783
        %2786 = vmatprep.subr.mxu0 0.0
        %2787 = vmatpush1.msra.mxu0 0.0
        %2788 = vmatprep.subr.mxu0 0.0
        %2789 = vmatpush1.msra.mxu0 0.0
        %2790 = vmatprep.subr.mxu0 0.0
        %2791 = vmatpush1.msra.mxu0 0.0
        %2792 = vmatprep.subr.mxu0 0.0
        %2793 = vmatpush1.msra.mxu0 0.0
        %2794 = vmatprep.subr.mxu0 0.0
        %2795 = vmatpush1.msra.mxu0 0.0
        %2796 = vmatprep.subr.mxu0 0.0
        %2797 = vmatpush1.msra.mxu0 0.0
        %2798 = vmatprep.subr.mxu0 0.0
        %2799 = vmatpush1.msra.mxu0 0.0
        %2800 = vmatprep.subr.mxu0 0.0
        %2801 = vmatpush1.msra.mxu0 0.0
        %2802 = vmatprep.subr.mxu0 0.0
        %2803 = vmatpush1.msra.mxu0 0.0
        %2804 = vmatprep.subr.mxu0 0.0
        %2805 = vmatpush1.msra.mxu0 0.0
        %2806 = vmatprep.subr.mxu0 0.0
        %2807 = vmatpush1.msra.mxu0 0.0
        %2808 = vmatprep.subr.mxu0 0.0
        %2809 = vmatpush1.msra.mxu0 0.0
        %2810 = vmatprep.subr.mxu0 0.0
        %2811 = vmatpush1.msra.mxu0 %v2777
        %2812 = vmatprep.subr.mxu0 0.0
        %2813 = vmatpush1.msra.mxu0 %v2776
        %2814 = vmatprep.subr.mxu0 0.0
        %2815 = vmatpush1.msra.mxu0 %v2775
        %2816 = vmatprep.subr.mxu0 0.0
        %2817 = vmatpush1.msra.mxu0 %v2774
        %2818 = vmatprep.subr.mxu0 0.0
        %2819 = vmatpush2.msra.mxu0 0.0
        %2820 = vmatprep.subr.mxu0 0.0
        %2821 = vmatpush2.msra.mxu0 0.0
        %2822 = vmatprep.subr.mxu0 0.0
        %2823 = vmatpush2.msra.mxu0 0.0
        %2824 = vmatprep.subr.mxu0 0.0
        %2825 = vmatpush2.msra.mxu0 0.0
        %2826 = vmatprep.subr.mxu0 0.0
        %2827 = vmatpush2.msra.mxu0 0.0
        %2828 = vmatprep.subr.mxu0 0.0
        %2829 = vmatpush2.msra.mxu0 0.0
        %2830 = vmatprep.subr.mxu0 0.0
        %2831 = vmatpush2.msra.mxu0 0.0
        %2832 = vmatprep.subr.mxu0 0.0
        %2833 = vmatpush2.msra.mxu0 0.0
        %2834 = vmatprep.subr.mxu0 0.0
        %2835 = vmatpush2.msra.mxu0 0.0
        %2836 = vmatprep.subr.mxu0 0.0
        %2837 = vmatpush2.msra.mxu0 0.0
        %2838 = vmatprep.subr.mxu0 0.0
        %2839 = vmatpush2.msra.mxu0 0.0
        %2840 = vmatprep.subr.mxu0 0.0
        %2841 = vmatpush2.msra.mxu0 0.0
        %2842 = vmatprep.subr.mxu0 0.0
        %2843 = vmatpush2.msra.mxu0 0.0
        %2844 = vmatprep.subr.mxu0 0.0
        %2845 = vmatpush2.msra.mxu0 0.0
        %2846 = vmatprep.subr.mxu0 0.0
        %2847 = vmatpush2.msra.mxu0 0.0
        %2848 = vmatprep.subr.mxu0 0.0
        %2849 = vmatpush2.msra.mxu0 0.0
        %2850 = vmatprep.mubr.f32.mxu0 0.0
        %2851 = vmatmul.mubr.f32.gmra.mxu0 %v2701
        %v2852 = vpop.f32.mrf.mxu0
        %v2853 = vadd.f32 %v2784, %v2852
        %v2854 = vpop.f32.mrf.mxu0
        %2855 = vdwg.mxu0
        %s2856 = scalar_lea.vmem %s3, 640
        %v2857 = vld [vmem:[%s2856] sm:$0xff]
        %v2858 = vld [vmem:[%s2856 + $0x8] sm:$0xff]
        %v2859 = vld [vmem:[%s2856 + $0x10] sm:$0xff]
        %v2860 = vld [vmem:[%s2856 + $0x18] sm:$0xff]
        %s2861 = scalar_lea.vmem %s4, 20
        %v2862 = vld [vmem:[%s2861] sm:$0x1]
        %v2864 = vlaneseq
        %v2865 = vshrl.u32 %v2864, 7
        %v2866 = vsub.s32 0, %v2865
        %v2867 = vrot.slane %v2862, %v2866
        %2869 = vmatprep.subr.mxu0 0.0
        %2870 = vmatpush1.msra.mxu0 0.0
        %2871 = vmatprep.subr.mxu0 0.0
        %2872 = vmatpush1.msra.mxu0 0.0
        %2873 = vmatprep.subr.mxu0 0.0
        %2874 = vmatpush1.msra.mxu0 0.0
        %2875 = vmatprep.subr.mxu0 0.0
        %2876 = vmatpush1.msra.mxu0 0.0
        %2877 = vmatprep.subr.mxu0 0.0
        %2878 = vmatpush1.msra.mxu0 0.0
        %2879 = vmatprep.subr.mxu0 0.0
        %2880 = vmatpush1.msra.mxu0 0.0
        %2881 = vmatprep.subr.mxu0 0.0
        %2882 = vmatpush1.msra.mxu0 0.0
        %2883 = vmatprep.subr.mxu0 0.0
        %2884 = vmatpush1.msra.mxu0 0.0
        %2885 = vmatprep.subr.mxu0 0.0
        %2886 = vmatpush1.msra.mxu0 0.0
        %2887 = vmatprep.subr.mxu0 0.0
        %2888 = vmatpush1.msra.mxu0 0.0
        %2889 = vmatprep.subr.mxu0 0.0
        %2890 = vmatpush1.msra.mxu0 0.0
        %2891 = vmatprep.subr.mxu0 0.0
        %2892 = vmatpush1.msra.mxu0 0.0
        %2893 = vmatprep.subr.mxu0 0.0
        %2894 = vmatpush1.msra.mxu0 %v2860
        %2895 = vmatprep.subr.mxu0 0.0
        %2896 = vmatpush1.msra.mxu0 %v2859
        %2897 = vmatprep.subr.mxu0 0.0
        %2898 = vmatpush1.msra.mxu0 %v2858
        %2899 = vmatprep.subr.mxu0 0.0
        %2900 = vmatpush1.msra.mxu0 %v2857
        %2901 = vmatprep.subr.mxu0 0.0
        %2902 = vmatpush2.msra.mxu0 0.0
        %2903 = vmatprep.subr.mxu0 0.0
        %2904 = vmatpush2.msra.mxu0 0.0
        %2905 = vmatprep.subr.mxu0 0.0
        %2906 = vmatpush2.msra.mxu0 0.0
        %2907 = vmatprep.subr.mxu0 0.0
        %2908 = vmatpush2.msra.mxu0 0.0
        %2909 = vmatprep.subr.mxu0 0.0
        %2910 = vmatpush2.msra.mxu0 0.0
        %2911 = vmatprep.subr.mxu0 0.0
        %2912 = vmatpush2.msra.mxu0 0.0
        %2913 = vmatprep.subr.mxu0 0.0
        %2914 = vmatpush2.msra.mxu0 0.0
        %2915 = vmatprep.subr.mxu0 0.0
        %2916 = vmatpush2.msra.mxu0 0.0
        %2917 = vmatprep.subr.mxu0 0.0
        %2918 = vmatpush2.msra.mxu0 0.0
        %2919 = vmatprep.subr.mxu0 0.0
        %2920 = vmatpush2.msra.mxu0 0.0
        %2921 = vmatprep.subr.mxu0 0.0
        %2922 = vmatpush2.msra.mxu0 0.0
        %2923 = vmatprep.subr.mxu0 0.0
        %2924 = vmatpush2.msra.mxu0 0.0
        %2925 = vmatprep.subr.mxu0 0.0
        %2926 = vmatpush2.msra.mxu0 0.0
        %2927 = vmatprep.subr.mxu0 0.0
        %2928 = vmatpush2.msra.mxu0 0.0
        %2929 = vmatprep.subr.mxu0 0.0
        %2930 = vmatpush2.msra.mxu0 0.0
        %2931 = vmatprep.subr.mxu0 0.0
        %2932 = vmatpush2.msra.mxu0 0.0
        %2933 = vmatprep.mubr.f32.mxu0 0.0
        %2934 = vmatmul.mubr.f32.gmra.mxu0 %v2701
        %v2935 = vpop.f32.mrf.mxu0
        %v2936 = vadd.f32 %v2867, %v2935
        %v2937 = vpop.f32.mrf.mxu0
        %2938 = vdwg.mxu0
        %v2940 = vsel %vm746, %v2770, 0
        %v2943 = vsel %vm746, %v2853, 0
        %2945 = vmatprep.subr.mxu0 0.0
        %2946 = vmatpush1.xpose.msra.mxu0 0.0
        %2947 = vmatprep.subr.mxu0 0.0
        %2948 = vmatpush1.xpose.msra.mxu0 0.0
        %2949 = vmatprep.subr.mxu0 0.0
        %2950 = vmatpush1.xpose.msra.mxu0 0.0
        %2951 = vmatprep.subr.mxu0 0.0
        %2952 = vmatpush1.xpose.msra.mxu0 0.0
        %2953 = vmatprep.subr.mxu0 0.0
        %2954 = vmatpush1.xpose.msra.mxu0 0.0
        %2955 = vmatprep.subr.mxu0 0.0
        %2956 = vmatpush1.xpose.msra.mxu0 0.0
        %2957 = vmatprep.subr.mxu0 0.0
        %2958 = vmatpush1.xpose.msra.mxu0 0.0
        %2959 = vmatprep.subr.mxu0 0.0
        %2960 = vmatpush1.xpose.msra.mxu0 0.0
        %2961 = vmatprep.subr.mxu0 0.0
        %2962 = vmatpush1.xpose.msra.mxu0 0.0
        %2963 = vmatprep.subr.mxu0 0.0
        %2964 = vmatpush1.xpose.msra.mxu0 0.0
        %2965 = vmatprep.subr.mxu0 0.0
        %2966 = vmatpush1.xpose.msra.mxu0 0.0
        %2967 = vmatprep.subr.mxu0 0.0
        %2968 = vmatpush1.xpose.msra.mxu0 0.0
        %2969 = vmatprep.subr.mxu0 0.0
        %2970 = vmatpush1.xpose.msra.mxu0 0.0
        %2971 = vmatprep.subr.mxu0 0.0
        %2972 = vmatpush1.xpose.msra.mxu0 0.0
        %2973 = vmatprep.subr.mxu0 0.0
        %2974 = vmatpush1.xpose.msra.mxu0 0.0
        %2975 = vmatprep.subr.mxu0 0.0
        %2976 = vmatpush1.xpose.msra.mxu0 %v2943
        %2977 = vmatprep.subr.mxu0 0.0
        %2978 = vmatpush2.xpose.msra.mxu0 0.0
        %2979 = vmatprep.subr.mxu0 0.0
        %2980 = vmatpush2.xpose.msra.mxu0 0.0
        %2981 = vmatprep.subr.mxu0 0.0
        %2982 = vmatpush2.xpose.msra.mxu0 0.0
        %2983 = vmatprep.subr.mxu0 0.0
        %2984 = vmatpush2.xpose.msra.mxu0 0.0
        %2985 = vmatprep.subr.mxu0 0.0
        %2986 = vmatpush2.xpose.msra.mxu0 0.0
        %2987 = vmatprep.subr.mxu0 0.0
        %2988 = vmatpush2.xpose.msra.mxu0 0.0
        %2989 = vmatprep.subr.mxu0 0.0
        %2990 = vmatpush2.xpose.msra.mxu0 0.0
        %2991 = vmatprep.subr.mxu0 0.0
        %2992 = vmatpush2.xpose.msra.mxu0 0.0
        %2993 = vmatprep.subr.mxu0 0.0
        %2994 = vmatpush2.xpose.msra.mxu0 0.0
        %2995 = vmatprep.subr.mxu0 0.0
        %2996 = vmatpush2.xpose.msra.mxu0 0.0
        %2997 = vmatprep.subr.mxu0 0.0
        %2998 = vmatpush2.xpose.msra.mxu0 0.0
        %2999 = vmatprep.subr.mxu0 0.0
        %3000 = vmatpush2.xpose.msra.mxu0 0.0
        %3001 = vmatprep.subr.mxu0 0.0
        %3002 = vmatpush2.xpose.msra.mxu0 0.0
        %3003 = vmatprep.subr.mxu0 0.0
        %3004 = vmatpush2.xpose.msra.mxu0 0.0
        %3005 = vmatprep.subr.mxu0 0.0
        %3006 = vmatpush2.xpose.msra.mxu0 0.0
        %3007 = vmatprep.subr.mxu0 0.0
        %3008 = vmatpush2.xpose.msra.mxu0 0.0
        %3009 = vmatprep.mubr.f32.mxu0 0.0
        %3010 = vmatmul.mubr.f32.gmra.mxu0 %v2940
        %v3011 = vpop.f32.mrf.mxu0
        %v3012 = vadd.f32 0.0, %v3011
        %v3013 = vpop.f32.mrf.mxu0
        %3014 = vdwg.mxu0
        %v3015 = vmul.f32 %v3012, 0.35355338
        %v3016 = vsel %vm746, %v3015, -inf
        %3017 = vmax.xlane.f32.xlu0 %v3016
        %v3018 = vpop.xlane.xlu0 %3017
        %v3019 = vsub.f32 %v3015, %v3018
        %v3020 = vmul.f32 %v3019, 1.442695
        %v3021 = vpow.pop %v3020
        %v3022 = vsel %vm746, %v3021, 0.0
        %3023 = vadd.xlane.f32.xlu0 %v3022
        %v3024 = vpop.xlane.xlu0 %3023
        %v3025 = vrcp.pop %v3024
        %v3026 = vmul.f32 %v3021, %v3025
        %v3028 = vsel %vm746, %v3026, 0
        %3030 = vmatprep.subr.mxu0 0.0
        %3031 = vmatpush1.msra.mxu0 0.0
        %3032 = vmatprep.subr.mxu0 0.0
        %3033 = vmatpush1.msra.mxu0 0.0
        %3034 = vmatprep.subr.mxu0 0.0
        %3035 = vmatpush1.msra.mxu0 0.0
        %3036 = vmatprep.subr.mxu0 0.0
        %3037 = vmatpush1.msra.mxu0 0.0
        %3038 = vmatprep.subr.mxu0 0.0
        %3039 = vmatpush1.msra.mxu0 0.0
        %3040 = vmatprep.subr.mxu0 0.0
        %3041 = vmatpush1.msra.mxu0 0.0
        %3042 = vmatprep.subr.mxu0 0.0
        %3043 = vmatpush1.msra.mxu0 0.0
        %3044 = vmatprep.subr.mxu0 0.0
        %3045 = vmatpush1.msra.mxu0 0.0
        %3046 = vmatprep.subr.mxu0 0.0
        %3047 = vmatpush1.msra.mxu0 0.0
        %3048 = vmatprep.subr.mxu0 0.0
        %3049 = vmatpush1.msra.mxu0 0.0
        %3050 = vmatprep.subr.mxu0 0.0
        %3051 = vmatpush1.msra.mxu0 0.0
        %3052 = vmatprep.subr.mxu0 0.0
        %3053 = vmatpush1.msra.mxu0 0.0
        %3054 = vmatprep.subr.mxu0 0.0
        %3055 = vmatpush1.msra.mxu0 0.0
        %3056 = vmatprep.subr.mxu0 0.0
        %3057 = vmatpush1.msra.mxu0 0.0
        %3058 = vmatprep.subr.mxu0 0.0
        %3059 = vmatpush1.msra.mxu0 0.0
        %3060 = vmatprep.subr.mxu0 0.0
        %3061 = vmatpush1.msra.mxu0 %v2936
        %3062 = vmatprep.subr.mxu0 0.0
        %3063 = vmatpush2.msra.mxu0 0.0
        %3064 = vmatprep.subr.mxu0 0.0
        %3065 = vmatpush2.msra.mxu0 0.0
        %3066 = vmatprep.subr.mxu0 0.0
        %3067 = vmatpush2.msra.mxu0 0.0
        %3068 = vmatprep.subr.mxu0 0.0
        %3069 = vmatpush2.msra.mxu0 0.0
        %3070 = vmatprep.subr.mxu0 0.0
        %3071 = vmatpush2.msra.mxu0 0.0
        %3072 = vmatprep.subr.mxu0 0.0
        %3073 = vmatpush2.msra.mxu0 0.0
        %3074 = vmatprep.subr.mxu0 0.0
        %3075 = vmatpush2.msra.mxu0 0.0
        %3076 = vmatprep.subr.mxu0 0.0
        %3077 = vmatpush2.msra.mxu0 0.0
        %3078 = vmatprep.subr.mxu0 0.0
        %3079 = vmatpush2.msra.mxu0 0.0
        %3080 = vmatprep.subr.mxu0 0.0
        %3081 = vmatpush2.msra.mxu0 0.0
        %3082 = vmatprep.subr.mxu0 0.0
        %3083 = vmatpush2.msra.mxu0 0.0
        %3084 = vmatprep.subr.mxu0 0.0
        %3085 = vmatpush2.msra.mxu0 0.0
        %3086 = vmatprep.subr.mxu0 0.0
        %3087 = vmatpush2.msra.mxu0 0.0
        %3088 = vmatprep.subr.mxu0 0.0
        %3089 = vmatpush2.msra.mxu0 0.0
        %3090 = vmatprep.subr.mxu0 0.0
        %3091 = vmatpush2.msra.mxu0 0.0
        %3092 = vmatprep.subr.mxu0 0.0
        %3093 = vmatpush2.msra.mxu0 0.0
        %3094 = vmatprep.mubr.f32.mxu0 0.0
        %3095 = vmatmul.mubr.f32.gmra.mxu0 %v3028
        %v3096 = vpop.f32.mrf.mxu0
        %v3097 = vadd.f32 0.0, %v3096
        %v3098 = vpop.f32.mrf.mxu0
        %3099 = vdwg.mxu0
        %s3100 = scalar_lea.vmem %s5, 32
        %v3101 = vld [vmem:[%s3100] sm:$0xff]
        %s3102 = scalar_lea.vmem %s3, 416
        %v3103 = vld [vmem:[%s3102] sm:$0xff]
        %v3104 = vld [vmem:[%s3102 + $0x8] sm:$0xff]
        %v3105 = vld [vmem:[%s3102 + $0x10] sm:$0xff]
        %v3106 = vld [vmem:[%s3102 + $0x18] sm:$0xff]
        %s3107 = scalar_lea.vmem %s4, 13
        %v3108 = vld [vmem:[%s3107] sm:$0x1]
        %v3110 = vlaneseq
        %v3111 = vshrl.u32 %v3110, 7
        %v3112 = vsub.s32 0, %v3111
        %v3113 = vrot.slane %v3108, %v3112
        %3115 = vmatprep.subr.mxu0 0.0
        %3116 = vmatpush1.msra.mxu0 0.0
        %3117 = vmatprep.subr.mxu0 0.0
        %3118 = vmatpush1.msra.mxu0 0.0
        %3119 = vmatprep.subr.mxu0 0.0
        %3120 = vmatpush1.msra.mxu0 0.0
        %3121 = vmatprep.subr.mxu0 0.0
        %3122 = vmatpush1.msra.mxu0 0.0
        %3123 = vmatprep.subr.mxu0 0.0
        %3124 = vmatpush1.msra.mxu0 0.0
        %3125 = vmatprep.subr.mxu0 0.0
        %3126 = vmatpush1.msra.mxu0 0.0
        %3127 = vmatprep.subr.mxu0 0.0
        %3128 = vmatpush1.msra.mxu0 0.0
        %3129 = vmatprep.subr.mxu0 0.0
        %3130 = vmatpush1.msra.mxu0 0.0
        %3131 = vmatprep.subr.mxu0 0.0
        %3132 = vmatpush1.msra.mxu0 0.0
        %3133 = vmatprep.subr.mxu0 0.0
        %3134 = vmatpush1.msra.mxu0 0.0
        %3135 = vmatprep.subr.mxu0 0.0
        %3136 = vmatpush1.msra.mxu0 0.0
        %3137 = vmatprep.subr.mxu0 0.0
        %3138 = vmatpush1.msra.mxu0 0.0
        %3139 = vmatprep.subr.mxu0 0.0
        %3140 = vmatpush1.msra.mxu0 %v3106
        %3141 = vmatprep.subr.mxu0 0.0
        %3142 = vmatpush1.msra.mxu0 %v3105
        %3143 = vmatprep.subr.mxu0 0.0
        %3144 = vmatpush1.msra.mxu0 %v3104
        %3145 = vmatprep.subr.mxu0 0.0
        %3146 = vmatpush1.msra.mxu0 %v3103
        %3147 = vmatprep.subr.mxu0 0.0
        %3148 = vmatpush2.msra.mxu0 0.0
        %3149 = vmatprep.subr.mxu0 0.0
        %3150 = vmatpush2.msra.mxu0 0.0
        %3151 = vmatprep.subr.mxu0 0.0
        %3152 = vmatpush2.msra.mxu0 0.0
        %3153 = vmatprep.subr.mxu0 0.0
        %3154 = vmatpush2.msra.mxu0 0.0
        %3155 = vmatprep.subr.mxu0 0.0
        %3156 = vmatpush2.msra.mxu0 0.0
        %3157 = vmatprep.subr.mxu0 0.0
        %3158 = vmatpush2.msra.mxu0 0.0
        %3159 = vmatprep.subr.mxu0 0.0
        %3160 = vmatpush2.msra.mxu0 0.0
        %3161 = vmatprep.subr.mxu0 0.0
        %3162 = vmatpush2.msra.mxu0 0.0
        %3163 = vmatprep.subr.mxu0 0.0
        %3164 = vmatpush2.msra.mxu0 0.0
        %3165 = vmatprep.subr.mxu0 0.0
        %3166 = vmatpush2.msra.mxu0 0.0
        %3167 = vmatprep.subr.mxu0 0.0
        %3168 = vmatpush2.msra.mxu0 0.0
        %3169 = vmatprep.subr.mxu0 0.0
        %3170 = vmatpush2.msra.mxu0 0.0
        %3171 = vmatprep.subr.mxu0 0.0
        %3172 = vmatpush2.msra.mxu0 0.0
        %3173 = vmatprep.subr.mxu0 0.0
        %3174 = vmatpush2.msra.mxu0 0.0
        %3175 = vmatprep.subr.mxu0 0.0
        %3176 = vmatpush2.msra.mxu0 0.0
        %3177 = vmatprep.subr.mxu0 0.0
        %3178 = vmatpush2.msra.mxu0 0.0
        %3179 = vmatprep.mubr.f32.mxu0 0.0
        %3180 = vmatmul.mubr.f32.gmra.mxu0 %v2701
        %v3181 = vpop.f32.mrf.mxu0
        %v3182 = vadd.f32 %v3113, %v3181
        %v3183 = vpop.f32.mrf.mxu0
        %3184 = vdwg.mxu0
        %s3185 = scalar_lea.vmem %s3, 544
        %v3186 = vld [vmem:[%s3185] sm:$0xff]
        %v3187 = vld [vmem:[%s3185 + $0x8] sm:$0xff]
        %v3188 = vld [vmem:[%s3185 + $0x10] sm:$0xff]
        %v3189 = vld [vmem:[%s3185 + $0x18] sm:$0xff]
        %s3190 = scalar_lea.vmem %s4, 17
        %v3191 = vld [vmem:[%s3190] sm:$0x1]
        %v3193 = vlaneseq
        %v3194 = vshrl.u32 %v3193, 7
        %v3195 = vsub.s32 0, %v3194
        %v3196 = vrot.slane %v3191, %v3195
        %3198 = vmatprep.subr.mxu0 0.0
        %3199 = vmatpush1.msra.mxu0 0.0
        %3200 = vmatprep.subr.mxu0 0.0
        %3201 = vmatpush1.msra.mxu0 0.0
        %3202 = vmatprep.subr.mxu0 0.0
        %3203 = vmatpush1.msra.mxu0 0.0
        %3204 = vmatprep.subr.mxu0 0.0
        %3205 = vmatpush1.msra.mxu0 0.0
        %3206 = vmatprep.subr.mxu0 0.0
        %3207 = vmatpush1.msra.mxu0 0.0
        %3208 = vmatprep.subr.mxu0 0.0
        %3209 = vmatpush1.msra.mxu0 0.0
        %3210 = vmatprep.subr.mxu0 0.0
        %3211 = vmatpush1.msra.mxu0 0.0
        %3212 = vmatprep.subr.mxu0 0.0
        %3213 = vmatpush1.msra.mxu0 0.0
        %3214 = vmatprep.subr.mxu0 0.0
        %3215 = vmatpush1.msra.mxu0 0.0
        %3216 = vmatprep.subr.mxu0 0.0
        %3217 = vmatpush1.msra.mxu0 0.0
        %3218 = vmatprep.subr.mxu0 0.0
        %3219 = vmatpush1.msra.mxu0 0.0
        %3220 = vmatprep.subr.mxu0 0.0
        %3221 = vmatpush1.msra.mxu0 0.0
        %3222 = vmatprep.subr.mxu0 0.0
        %3223 = vmatpush1.msra.mxu0 %v3189
        %3224 = vmatprep.subr.mxu0 0.0
        %3225 = vmatpush1.msra.mxu0 %v3188
        %3226 = vmatprep.subr.mxu0 0.0
        %3227 = vmatpush1.msra.mxu0 %v3187
        %3228 = vmatprep.subr.mxu0 0.0
        %3229 = vmatpush1.msra.mxu0 %v3186
        %3230 = vmatprep.subr.mxu0 0.0
        %3231 = vmatpush2.msra.mxu0 0.0
        %3232 = vmatprep.subr.mxu0 0.0
        %3233 = vmatpush2.msra.mxu0 0.0
        %3234 = vmatprep.subr.mxu0 0.0
        %3235 = vmatpush2.msra.mxu0 0.0
        %3236 = vmatprep.subr.mxu0 0.0
        %3237 = vmatpush2.msra.mxu0 0.0
        %3238 = vmatprep.subr.mxu0 0.0
        %3239 = vmatpush2.msra.mxu0 0.0
        %3240 = vmatprep.subr.mxu0 0.0
        %3241 = vmatpush2.msra.mxu0 0.0
        %3242 = vmatprep.subr.mxu0 0.0
        %3243 = vmatpush2.msra.mxu0 0.0
        %3244 = vmatprep.subr.mxu0 0.0
        %3245 = vmatpush2.msra.mxu0 0.0
        %3246 = vmatprep.subr.mxu0 0.0
        %3247 = vmatpush2.msra.mxu0 0.0
        %3248 = vmatprep.subr.mxu0 0.0
        %3249 = vmatpush2.msra.mxu0 0.0
        %3250 = vmatprep.subr.mxu0 0.0
        %3251 = vmatpush2.msra.mxu0 0.0
        %3252 = vmatprep.subr.mxu0 0.0
        %3253 = vmatpush2.msra.mxu0 0.0
        %3254 = vmatprep.subr.mxu0 0.0
        %3255 = vmatpush2.msra.mxu0 0.0
        %3256 = vmatprep.subr.mxu0 0.0
        %3257 = vmatpush2.msra.mxu0 0.0
        %3258 = vmatprep.subr.mxu0 0.0
        %3259 = vmatpush2.msra.mxu0 0.0
        %3260 = vmatprep.subr.mxu0 0.0
        %3261 = vmatpush2.msra.mxu0 0.0
        %3262 = vmatprep.mubr.f32.mxu0 0.0
        %3263 = vmatmul.mubr.f32.gmra.mxu0 %v2701
        %v3264 = vpop.f32.mrf.mxu0
        %v3265 = vadd.f32 %v3196, %v3264
        %v3266 = vpop.f32.mrf.mxu0
        %3267 = vdwg.mxu0
        %s3268 = scalar_lea.vmem %s3, 672
        %v3269 = vld [vmem:[%s3268] sm:$0xff]
        %v3270 = vld [vmem:[%s3268 + $0x8] sm:$0xff]
        %v3271 = vld [vmem:[%s3268 + $0x10] sm:$0xff]
        %v3272 = vld [vmem:[%s3268 + $0x18] sm:$0xff]
        %s3273 = scalar_lea.vmem %s4, 21
        %v3274 = vld [vmem:[%s3273] sm:$0x1]
        %v3276 = vlaneseq
        %v3277 = vshrl.u32 %v3276, 7
        %v3278 = vsub.s32 0, %v3277
        %v3279 = vrot.slane %v3274, %v3278
        %3281 = vmatprep.subr.mxu0 0.0
        %3282 = vmatpush1.msra.mxu0 0.0
        %3283 = vmatprep.subr.mxu0 0.0
        %3284 = vmatpush1.msra.mxu0 0.0
        %3285 = vmatprep.subr.mxu0 0.0
        %3286 = vmatpush1.msra.mxu0 0.0
        %3287 = vmatprep.subr.mxu0 0.0
        %3288 = vmatpush1.msra.mxu0 0.0
        %3289 = vmatprep.subr.mxu0 0.0
        %3290 = vmatpush1.msra.mxu0 0.0
        %3291 = vmatprep.subr.mxu0 0.0
        %3292 = vmatpush1.msra.mxu0 0.0
        %3293 = vmatprep.subr.mxu0 0.0
        %3294 = vmatpush1.msra.mxu0 0.0
        %3295 = vmatprep.subr.mxu0 0.0
        %3296 = vmatpush1.msra.mxu0 0.0
        %3297 = vmatprep.subr.mxu0 0.0
        %3298 = vmatpush1.msra.mxu0 0.0
        %3299 = vmatprep.subr.mxu0 0.0
        %3300 = vmatpush1.msra.mxu0 0.0
        %3301 = vmatprep.subr.mxu0 0.0
        %3302 = vmatpush1.msra.mxu0 0.0
        %3303 = vmatprep.subr.mxu0 0.0
        %3304 = vmatpush1.msra.mxu0 0.0
        %3305 = vmatprep.subr.mxu0 0.0
        %3306 = vmatpush1.msra.mxu0 %v3272
        %3307 = vmatprep.subr.mxu0 0.0
        %3308 = vmatpush1.msra.mxu0 %v3271
        %3309 = vmatprep.subr.mxu0 0.0
        %3310 = vmatpush1.msra.mxu0 %v3270
        %3311 = vmatprep.subr.mxu0 0.0
        %3312 = vmatpush1.msra.mxu0 %v3269
        %3313 = vmatprep.subr.mxu0 0.0
        %3314 = vmatpush2.msra.mxu0 0.0
        %3315 = vmatprep.subr.mxu0 0.0
        %3316 = vmatpush2.msra.mxu0 0.0
        %3317 = vmatprep.subr.mxu0 0.0
        %3318 = vmatpush2.msra.mxu0 0.0
        %3319 = vmatprep.subr.mxu0 0.0
        %3320 = vmatpush2.msra.mxu0 0.0
        %3321 = vmatprep.subr.mxu0 0.0
        %3322 = vmatpush2.msra.mxu0 0.0
        %3323 = vmatprep.subr.mxu0 0.0
        %3324 = vmatpush2.msra.mxu0 0.0
        %3325 = vmatprep.subr.mxu0 0.0
        %3326 = vmatpush2.msra.mxu0 0.0
        %3327 = vmatprep.subr.mxu0 0.0
        %3328 = vmatpush2.msra.mxu0 0.0
        %3329 = vmatprep.subr.mxu0 0.0
        %3330 = vmatpush2.msra.mxu0 0.0
        %3331 = vmatprep.subr.mxu0 0.0
        %3332 = vmatpush2.msra.mxu0 0.0
        %3333 = vmatprep.subr.mxu0 0.0
        %3334 = vmatpush2.msra.mxu0 0.0
        %3335 = vmatprep.subr.mxu0 0.0
        %3336 = vmatpush2.msra.mxu0 0.0
        %3337 = vmatprep.subr.mxu0 0.0
        %3338 = vmatpush2.msra.mxu0 0.0
        %3339 = vmatprep.subr.mxu0 0.0
        %3340 = vmatpush2.msra.mxu0 0.0
        %3341 = vmatprep.subr.mxu0 0.0
        %3342 = vmatpush2.msra.mxu0 0.0
        %3343 = vmatprep.subr.mxu0 0.0
        %3344 = vmatpush2.msra.mxu0 0.0
        %3345 = vmatprep.mubr.f32.mxu0 0.0
        %3346 = vmatmul.mubr.f32.gmra.mxu0 %v2701
        %v3347 = vpop.f32.mrf.mxu0
        %v3348 = vadd.f32 %v3279, %v3347
        %v3349 = vpop.f32.mrf.mxu0
        %3350 = vdwg.mxu0
        %v3352 = vsel %vm746, %v3182, 0
        %v3355 = vsel %vm746, %v3265, 0
        %3357 = vmatprep.subr.mxu0 0.0
        %3358 = vmatpush1.xpose.msra.mxu0 0.0
        %3359 = vmatprep.subr.mxu0 0.0
        %3360 = vmatpush1.xpose.msra.mxu0 0.0
        %3361 = vmatprep.subr.mxu0 0.0
        %3362 = vmatpush1.xpose.msra.mxu0 0.0
        %3363 = vmatprep.subr.mxu0 0.0
        %3364 = vmatpush1.xpose.msra.mxu0 0.0
        %3365 = vmatprep.subr.mxu0 0.0
        %3366 = vmatpush1.xpose.msra.mxu0 0.0
        %3367 = vmatprep.subr.mxu0 0.0
        %3368 = vmatpush1.xpose.msra.mxu0 0.0
        %3369 = vmatprep.subr.mxu0 0.0
        %3370 = vmatpush1.xpose.msra.mxu0 0.0
        %3371 = vmatprep.subr.mxu0 0.0
        %3372 = vmatpush1.xpose.msra.mxu0 0.0
        %3373 = vmatprep.subr.mxu0 0.0
        %3374 = vmatpush1.xpose.msra.mxu0 0.0
        %3375 = vmatprep.subr.mxu0 0.0
        %3376 = vmatpush1.xpose.msra.mxu0 0.0
        %3377 = vmatprep.subr.mxu0 0.0
        %3378 = vmatpush1.xpose.msra.mxu0 0.0
        %3379 = vmatprep.subr.mxu0 0.0
        %3380 = vmatpush1.xpose.msra.mxu0 0.0
        %3381 = vmatprep.subr.mxu0 0.0
        %3382 = vmatpush1.xpose.msra.mxu0 0.0
        %3383 = vmatprep.subr.mxu0 0.0
        %3384 = vmatpush1.xpose.msra.mxu0 0.0
        %3385 = vmatprep.subr.mxu0 0.0
        %3386 = vmatpush1.xpose.msra.mxu0 0.0
        %3387 = vmatprep.subr.mxu0 0.0
        %3388 = vmatpush1.xpose.msra.mxu0 %v3355
        %3389 = vmatprep.subr.mxu0 0.0
        %3390 = vmatpush2.xpose.msra.mxu0 0.0
        %3391 = vmatprep.subr.mxu0 0.0
        %3392 = vmatpush2.xpose.msra.mxu0 0.0
        %3393 = vmatprep.subr.mxu0 0.0
        %3394 = vmatpush2.xpose.msra.mxu0 0.0
        %3395 = vmatprep.subr.mxu0 0.0
        %3396 = vmatpush2.xpose.msra.mxu0 0.0
        %3397 = vmatprep.subr.mxu0 0.0
        %3398 = vmatpush2.xpose.msra.mxu0 0.0
        %3399 = vmatprep.subr.mxu0 0.0
        %3400 = vmatpush2.xpose.msra.mxu0 0.0
        %3401 = vmatprep.subr.mxu0 0.0
        %3402 = vmatpush2.xpose.msra.mxu0 0.0
        %3403 = vmatprep.subr.mxu0 0.0
        %3404 = vmatpush2.xpose.msra.mxu0 0.0
        %3405 = vmatprep.subr.mxu0 0.0
        %3406 = vmatpush2.xpose.msra.mxu0 0.0
        %3407 = vmatprep.subr.mxu0 0.0
        %3408 = vmatpush2.xpose.msra.mxu0 0.0
        %3409 = vmatprep.subr.mxu0 0.0
        %3410 = vmatpush2.xpose.msra.mxu0 0.0
        %3411 = vmatprep.subr.mxu0 0.0
        %3412 = vmatpush2.xpose.msra.mxu0 0.0
        %3413 = vmatprep.subr.mxu0 0.0
        %3414 = vmatpush2.xpose.msra.mxu0 0.0
        %3415 = vmatprep.subr.mxu0 0.0
        %3416 = vmatpush2.xpose.msra.mxu0 0.0
        %3417 = vmatprep.subr.mxu0 0.0
        %3418 = vmatpush2.xpose.msra.mxu0 0.0
        %3419 = vmatprep.subr.mxu0 0.0
        %3420 = vmatpush2.xpose.msra.mxu0 0.0
        %3421 = vmatprep.mubr.f32.mxu0 0.0
        %3422 = vmatmul.mubr.f32.gmra.mxu0 %v3352
        %v3423 = vpop.f32.mrf.mxu0
        %v3424 = vadd.f32 0.0, %v3423
        %v3425 = vpop.f32.mrf.mxu0
        %3426 = vdwg.mxu0
        %v3427 = vmul.f32 %v3424, 0.35355338
        %v3428 = vsel %vm746, %v3427, -inf
        %3429 = vmax.xlane.f32.xlu0 %v3428
        %v3430 = vpop.xlane.xlu0 %3429
        %v3431 = vsub.f32 %v3427, %v3430
        %v3432 = vmul.f32 %v3431, 1.442695
        %v3433 = vpow.pop %v3432
        %v3434 = vsel %vm746, %v3433, 0.0
        %3435 = vadd.xlane.f32.xlu0 %v3434
        %v3436 = vpop.xlane.xlu0 %3435
        %v3437 = vrcp.pop %v3436
        %v3438 = vmul.f32 %v3433, %v3437
        %v3440 = vsel %vm746, %v3438, 0
        %3442 = vmatprep.subr.mxu0 0.0
        %3443 = vmatpush1.msra.mxu0 0.0
        %3444 = vmatprep.subr.mxu0 0.0
        %3445 = vmatpush1.msra.mxu0 0.0
        %3446 = vmatprep.subr.mxu0 0.0
        %3447 = vmatpush1.msra.mxu0 0.0
        %3448 = vmatprep.subr.mxu0 0.0
        %3449 = vmatpush1.msra.mxu0 0.0
        %3450 = vmatprep.subr.mxu0 0.0
        %3451 = vmatpush1.msra.mxu0 0.0
        %3452 = vmatprep.subr.mxu0 0.0
        %3453 = vmatpush1.msra.mxu0 0.0
        %3454 = vmatprep.subr.mxu0 0.0
        %3455 = vmatpush1.msra.mxu0 0.0
        %3456 = vmatprep.subr.mxu0 0.0
        %3457 = vmatpush1.msra.mxu0 0.0
        %3458 = vmatprep.subr.mxu0 0.0
        %3459 = vmatpush1.msra.mxu0 0.0
        %3460 = vmatprep.subr.mxu0 0.0
        %3461 = vmatpush1.msra.mxu0 0.0
        %3462 = vmatprep.subr.mxu0 0.0
        %3463 = vmatpush1.msra.mxu0 0.0
        %3464 = vmatprep.subr.mxu0 0.0
        %3465 = vmatpush1.msra.mxu0 0.0
        %3466 = vmatprep.subr.mxu0 0.0
        %3467 = vmatpush1.msra.mxu0 0.0
        %3468 = vmatprep.subr.mxu0 0.0
        %3469 = vmatpush1.msra.mxu0 0.0
        %3470 = vmatprep.subr.mxu0 0.0
        %3471 = vmatpush1.msra.mxu0 0.0
        %3472 = vmatprep.subr.mxu0 0.0
        %3473 = vmatpush1.msra.mxu0 %v3348
        %3474 = vmatprep.subr.mxu0 0.0
        %3475 = vmatpush2.msra.mxu0 0.0
        %3476 = vmatprep.subr.mxu0 0.0
        %3477 = vmatpush2.msra.mxu0 0.0
        %3478 = vmatprep.subr.mxu0 0.0
        %3479 = vmatpush2.msra.mxu0 0.0
        %3480 = vmatprep.subr.mxu0 0.0
        %3481 = vmatpush2.msra.mxu0 0.0
        %3482 = vmatprep.subr.mxu0 0.0
        %3483 = vmatpush2.msra.mxu0 0.0
        %3484 = vmatprep.subr.mxu0 0.0
        %3485 = vmatpush2.msra.mxu0 0.0
        %3486 = vmatprep.subr.mxu0 0.0
        %3487 = vmatpush2.msra.mxu0 0.0
        %3488 = vmatprep.subr.mxu0 0.0
        %3489 = vmatpush2.msra.mxu0 0.0
        %3490 = vmatprep.subr.mxu0 0.0
        %3491 = vmatpush2.msra.mxu0 0.0
        %3492 = vmatprep.subr.mxu0 0.0
        %3493 = vmatpush2.msra.mxu0 0.0
        %3494 = vmatprep.subr.mxu0 0.0
        %3495 = vmatpush2.msra.mxu0 0.0
        %3496 = vmatprep.subr.mxu0 0.0
        %3497 = vmatpush2.msra.mxu0 0.0
        %3498 = vmatprep.subr.mxu0 0.0
        %3499 = vmatpush2.msra.mxu0 0.0
        %3500 = vmatprep.subr.mxu0 0.0
        %3501 = vmatpush2.msra.mxu0 0.0
        %3502 = vmatprep.subr.mxu0 0.0
        %3503 = vmatpush2.msra.mxu0 0.0
        %3504 = vmatprep.subr.mxu0 0.0
        %3505 = vmatpush2.msra.mxu0 0.0
        %3506 = vmatprep.mubr.f32.mxu0 0.0
        %3507 = vmatmul.mubr.f32.gmra.mxu0 %v3440
        %v3508 = vpop.f32.mrf.mxu0
        %v3509 = vadd.f32 0.0, %v3508
        %v3510 = vpop.f32.mrf.mxu0
        %3511 = vdwg.mxu0
        %s3512 = scalar_lea.vmem %s5, 40
        %v3513 = vld [vmem:[%s3512] sm:$0xff]
        %v3515 = vsel %vm746, %v3509, 0
        %3517 = vmatprep.subr.mxu0 0.0
        %3518 = vmatpush1.msra.mxu0 0.0
        %3519 = vmatprep.subr.mxu0 0.0
        %3520 = vmatpush1.msra.mxu0 0.0
        %3521 = vmatprep.subr.mxu0 0.0
        %3522 = vmatpush1.msra.mxu0 0.0
        %3523 = vmatprep.subr.mxu0 0.0
        %3524 = vmatpush1.msra.mxu0 0.0
        %3525 = vmatprep.subr.mxu0 0.0
        %3526 = vmatpush1.msra.mxu0 0.0
        %3527 = vmatprep.subr.mxu0 0.0
        %3528 = vmatpush1.msra.mxu0 0.0
        %3529 = vmatprep.subr.mxu0 0.0
        %3530 = vmatpush1.msra.mxu0 0.0
        %3531 = vmatprep.subr.mxu0 0.0
        %3532 = vmatpush1.msra.mxu0 0.0
        %3533 = vmatprep.subr.mxu0 0.0
        %3534 = vmatpush1.msra.mxu0 0.0
        %3535 = vmatprep.subr.mxu0 0.0
        %3536 = vmatpush1.msra.mxu0 0.0
        %3537 = vmatprep.subr.mxu0 0.0
        %3538 = vmatpush1.msra.mxu0 0.0
        %3539 = vmatprep.subr.mxu0 0.0
        %3540 = vmatpush1.msra.mxu0 0.0
        %3541 = vmatprep.subr.mxu0 0.0
        %3542 = vmatpush1.msra.mxu0 0.0
        %3543 = vmatprep.subr.mxu0 0.0
        %3544 = vmatpush1.msra.mxu0 0.0
        %3545 = vmatprep.subr.mxu0 0.0
        %3546 = vmatpush1.msra.mxu0 0.0
        %3547 = vmatprep.subr.mxu0 0.0
        %3548 = vmatpush1.msra.mxu0 %v3513
        %3549 = vmatprep.subr.mxu0 0.0
        %3550 = vmatpush2.msra.mxu0 0.0
        %3551 = vmatprep.subr.mxu0 0.0
        %3552 = vmatpush2.msra.mxu0 0.0
        %3553 = vmatprep.subr.mxu0 0.0
        %3554 = vmatpush2.msra.mxu0 0.0
        %3555 = vmatprep.subr.mxu0 0.0
        %3556 = vmatpush2.msra.mxu0 0.0
        %3557 = vmatprep.subr.mxu0 0.0
        %3558 = vmatpush2.msra.mxu0 0.0
        %3559 = vmatprep.subr.mxu0 0.0
        %3560 = vmatpush2.msra.mxu0 0.0
        %3561 = vmatprep.subr.mxu0 0.0
        %3562 = vmatpush2.msra.mxu0 0.0
        %3563 = vmatprep.subr.mxu0 0.0
        %3564 = vmatpush2.msra.mxu0 0.0
        %3565 = vmatprep.subr.mxu0 0.0
        %3566 = vmatpush2.msra.mxu0 0.0
        %3567 = vmatprep.subr.mxu0 0.0
        %3568 = vmatpush2.msra.mxu0 0.0
        %3569 = vmatprep.subr.mxu0 0.0
        %3570 = vmatpush2.msra.mxu0 0.0
        %3571 = vmatprep.subr.mxu0 0.0
        %3572 = vmatpush2.msra.mxu0 0.0
        %3573 = vmatprep.subr.mxu0 0.0
        %3574 = vmatpush2.msra.mxu0 0.0
        %3575 = vmatprep.subr.mxu0 0.0
        %3576 = vmatpush2.msra.mxu0 0.0
        %3577 = vmatprep.subr.mxu0 0.0
        %3578 = vmatpush2.msra.mxu0 0.0
        %3579 = vmatprep.subr.mxu0 0.0
        %3580 = vmatpush2.msra.mxu0 0.0
        %3581 = vmatprep.mubr.f32.mxu0 0.0
        %3582 = vmatmul.mubr.f32.gmra.mxu0 %v3515
        %v3583 = vpop.f32.mrf.mxu0
        %v3584 = vadd.f32 0.0, %v3583
        %v3585 = vpop.f32.mrf.mxu0
        %3586 = vdwg.mxu0
        %v3588 = vsel %vm746, %v3097, 0
        %3590 = vmatprep.subr.mxu0 0.0
        %3591 = vmatpush1.msra.mxu0 0.0
        %3592 = vmatprep.subr.mxu0 0.0
        %3593 = vmatpush1.msra.mxu0 0.0
        %3594 = vmatprep.subr.mxu0 0.0
        %3595 = vmatpush1.msra.mxu0 0.0
        %3596 = vmatprep.subr.mxu0 0.0
        %3597 = vmatpush1.msra.mxu0 0.0
        %3598 = vmatprep.subr.mxu0 0.0
        %3599 = vmatpush1.msra.mxu0 0.0
        %3600 = vmatprep.subr.mxu0 0.0
        %3601 = vmatpush1.msra.mxu0 0.0
        %3602 = vmatprep.subr.mxu0 0.0
        %3603 = vmatpush1.msra.mxu0 0.0
        %3604 = vmatprep.subr.mxu0 0.0
        %3605 = vmatpush1.msra.mxu0 0.0
        %3606 = vmatprep.subr.mxu0 0.0
        %3607 = vmatpush1.msra.mxu0 0.0
        %3608 = vmatprep.subr.mxu0 0.0
        %3609 = vmatpush1.msra.mxu0 0.0
        %3610 = vmatprep.subr.mxu0 0.0
        %3611 = vmatpush1.msra.mxu0 0.0
        %3612 = vmatprep.subr.mxu0 0.0
        %3613 = vmatpush1.msra.mxu0 0.0
        %3614 = vmatprep.subr.mxu0 0.0
        %3615 = vmatpush1.msra.mxu0 0.0
        %3616 = vmatprep.subr.mxu0 0.0
        %3617 = vmatpush1.msra.mxu0 0.0
        %3618 = vmatprep.subr.mxu0 0.0
        %3619 = vmatpush1.msra.mxu0 0.0
        %3620 = vmatprep.subr.mxu0 0.0
        %3621 = vmatpush1.msra.mxu0 %v3101
        %3622 = vmatprep.subr.mxu0 0.0
        %3623 = vmatpush2.msra.mxu0 0.0
        %3624 = vmatprep.subr.mxu0 0.0
        %3625 = vmatpush2.msra.mxu0 0.0
        %3626 = vmatprep.subr.mxu0 0.0
        %3627 = vmatpush2.msra.mxu0 0.0
        %3628 = vmatprep.subr.mxu0 0.0
        %3629 = vmatpush2.msra.mxu0 0.0
        %3630 = vmatprep.subr.mxu0 0.0
        %3631 = vmatpush2.msra.mxu0 0.0
        %3632 = vmatprep.subr.mxu0 0.0
        %3633 = vmatpush2.msra.mxu0 0.0
        %3634 = vmatprep.subr.mxu0 0.0
        %3635 = vmatpush2.msra.mxu0 0.0
        %3636 = vmatprep.subr.mxu0 0.0
        %3637 = vmatpush2.msra.mxu0 0.0
        %3638 = vmatprep.subr.mxu0 0.0
        %3639 = vmatpush2.msra.mxu0 0.0
        %3640 = vmatprep.subr.mxu0 0.0
        %3641 = vmatpush2.msra.mxu0 0.0
        %3642 = vmatprep.subr.mxu0 0.0
        %3643 = vmatpush2.msra.mxu0 0.0
        %3644 = vmatprep.subr.mxu0 0.0
        %3645 = vmatpush2.msra.mxu0 0.0
        %3646 = vmatprep.subr.mxu0 0.0
        %3647 = vmatpush2.msra.mxu0 0.0
        %3648 = vmatprep.subr.mxu0 0.0
        %3649 = vmatpush2.msra.mxu0 0.0
        %3650 = vmatprep.subr.mxu0 0.0
        %3651 = vmatpush2.msra.mxu0 0.0
        %3652 = vmatprep.subr.mxu0 0.0
        %3653 = vmatpush2.msra.mxu0 0.0
        %3654 = vmatprep.mubr.f32.mxu0 0.0
        %3655 = vmatmul.mubr.f32.gmra.mxu0 %v3588
        %v3656 = vpop.f32.mrf.mxu0
        %v3657 = vadd.f32 %v3584, %v3656
        %v3658 = vpop.f32.mrf.mxu0
        %3659 = vdwg.mxu0
        %s3660 = scalar_lea.vmem %s3, 448
        %v3661 = vld [vmem:[%s3660] sm:$0xff]
        %v3662 = vld [vmem:[%s3660 + $0x8] sm:$0xff]
        %v3663 = vld [vmem:[%s3660 + $0x10] sm:$0xff]
        %v3664 = vld [vmem:[%s3660 + $0x18] sm:$0xff]
        %s3665 = scalar_lea.vmem %s4, 14
        %v3666 = vld [vmem:[%s3665] sm:$0x1]
        %v3668 = vlaneseq
        %v3669 = vshrl.u32 %v3668, 7
        %v3670 = vsub.s32 0, %v3669
        %v3671 = vrot.slane %v3666, %v3670
        %3673 = vmatprep.subr.mxu0 0.0
        %3674 = vmatpush1.msra.mxu0 0.0
        %3675 = vmatprep.subr.mxu0 0.0
        %3676 = vmatpush1.msra.mxu0 0.0
        %3677 = vmatprep.subr.mxu0 0.0
        %3678 = vmatpush1.msra.mxu0 0.0
        %3679 = vmatprep.subr.mxu0 0.0
        %3680 = vmatpush1.msra.mxu0 0.0
        %3681 = vmatprep.subr.mxu0 0.0
        %3682 = vmatpush1.msra.mxu0 0.0
        %3683 = vmatprep.subr.mxu0 0.0
        %3684 = vmatpush1.msra.mxu0 0.0
        %3685 = vmatprep.subr.mxu0 0.0
        %3686 = vmatpush1.msra.mxu0 0.0
        %3687 = vmatprep.subr.mxu0 0.0
        %3688 = vmatpush1.msra.mxu0 0.0
        %3689 = vmatprep.subr.mxu0 0.0
        %3690 = vmatpush1.msra.mxu0 0.0
        %3691 = vmatprep.subr.mxu0 0.0
        %3692 = vmatpush1.msra.mxu0 0.0
        %3693 = vmatprep.subr.mxu0 0.0
        %3694 = vmatpush1.msra.mxu0 0.0
        %3695 = vmatprep.subr.mxu0 0.0
        %3696 = vmatpush1.msra.mxu0 0.0
        %3697 = vmatprep.subr.mxu0 0.0
        %3698 = vmatpush1.msra.mxu0 %v3664
        %3699 = vmatprep.subr.mxu0 0.0
        %3700 = vmatpush1.msra.mxu0 %v3663
        %3701 = vmatprep.subr.mxu0 0.0
        %3702 = vmatpush1.msra.mxu0 %v3662
        %3703 = vmatprep.subr.mxu0 0.0
        %3704 = vmatpush1.msra.mxu0 %v3661
        %3705 = vmatprep.subr.mxu0 0.0
        %3706 = vmatpush2.msra.mxu0 0.0
        %3707 = vmatprep.subr.mxu0 0.0
        %3708 = vmatpush2.msra.mxu0 0.0
        %3709 = vmatprep.subr.mxu0 0.0
        %3710 = vmatpush2.msra.mxu0 0.0
        %3711 = vmatprep.subr.mxu0 0.0
        %3712 = vmatpush2.msra.mxu0 0.0
        %3713 = vmatprep.subr.mxu0 0.0
        %3714 = vmatpush2.msra.mxu0 0.0
        %3715 = vmatprep.subr.mxu0 0.0
        %3716 = vmatpush2.msra.mxu0 0.0
        %3717 = vmatprep.subr.mxu0 0.0
        %3718 = vmatpush2.msra.mxu0 0.0
        %3719 = vmatprep.subr.mxu0 0.0
        %3720 = vmatpush2.msra.mxu0 0.0
        %3721 = vmatprep.subr.mxu0 0.0
        %3722 = vmatpush2.msra.mxu0 0.0
        %3723 = vmatprep.subr.mxu0 0.0
        %3724 = vmatpush2.msra.mxu0 0.0
        %3725 = vmatprep.subr.mxu0 0.0
        %3726 = vmatpush2.msra.mxu0 0.0
        %3727 = vmatprep.subr.mxu0 0.0
        %3728 = vmatpush2.msra.mxu0 0.0
        %3729 = vmatprep.subr.mxu0 0.0
        %3730 = vmatpush2.msra.mxu0 0.0
        %3731 = vmatprep.subr.mxu0 0.0
        %3732 = vmatpush2.msra.mxu0 0.0
        %3733 = vmatprep.subr.mxu0 0.0
        %3734 = vmatpush2.msra.mxu0 0.0
        %3735 = vmatprep.subr.mxu0 0.0
        %3736 = vmatpush2.msra.mxu0 0.0
        %3737 = vmatprep.mubr.f32.mxu0 0.0
        %3738 = vmatmul.mubr.f32.gmra.mxu0 %v2701
        %v3739 = vpop.f32.mrf.mxu0
        %v3740 = vadd.f32 %v3671, %v3739
        %v3741 = vpop.f32.mrf.mxu0
        %3742 = vdwg.mxu0
        %s3743 = scalar_lea.vmem %s3, 576
        %v3744 = vld [vmem:[%s3743] sm:$0xff]
        %v3745 = vld [vmem:[%s3743 + $0x8] sm:$0xff]
        %v3746 = vld [vmem:[%s3743 + $0x10] sm:$0xff]
        %v3747 = vld [vmem:[%s3743 + $0x18] sm:$0xff]
        %s3748 = scalar_lea.vmem %s4, 18
        %v3749 = vld [vmem:[%s3748] sm:$0x1]
        %v3751 = vlaneseq
        %v3752 = vshrl.u32 %v3751, 7
        %v3753 = vsub.s32 0, %v3752
        %v3754 = vrot.slane %v3749, %v3753
        %3756 = vmatprep.subr.mxu0 0.0
        %3757 = vmatpush1.msra.mxu0 0.0
        %3758 = vmatprep.subr.mxu0 0.0
        %3759 = vmatpush1.msra.mxu0 0.0
        %3760 = vmatprep.subr.mxu0 0.0
        %3761 = vmatpush1.msra.mxu0 0.0
        %3762 = vmatprep.subr.mxu0 0.0
        %3763 = vmatpush1.msra.mxu0 0.0
        %3764 = vmatprep.subr.mxu0 0.0
        %3765 = vmatpush1.msra.mxu0 0.0
        %3766 = vmatprep.subr.mxu0 0.0
        %3767 = vmatpush1.msra.mxu0 0.0
        %3768 = vmatprep.subr.mxu0 0.0
        %3769 = vmatpush1.msra.mxu0 0.0
        %3770 = vmatprep.subr.mxu0 0.0
        %3771 = vmatpush1.msra.mxu0 0.0
        %3772 = vmatprep.subr.mxu0 0.0
        %3773 = vmatpush1.msra.mxu0 0.0
        %3774 = vmatprep.subr.mxu0 0.0
        %3775 = vmatpush1.msra.mxu0 0.0
        %3776 = vmatprep.subr.mxu0 0.0
        %3777 = vmatpush1.msra.mxu0 0.0
        %3778 = vmatprep.subr.mxu0 0.0
        %3779 = vmatpush1.msra.mxu0 0.0
        %3780 = vmatprep.subr.mxu0 0.0
        %3781 = vmatpush1.msra.mxu0 %v3747
        %3782 = vmatprep.subr.mxu0 0.0
        %3783 = vmatpush1.msra.mxu0 %v3746
        %3784 = vmatprep.subr.mxu0 0.0
        %3785 = vmatpush1.msra.mxu0 %v3745
        %3786 = vmatprep.subr.mxu0 0.0
        %3787 = vmatpush1.msra.mxu0 %v3744
        %3788 = vmatprep.subr.mxu0 0.0
        %3789 = vmatpush2.msra.mxu0 0.0
        %3790 = vmatprep.subr.mxu0 0.0
        %3791 = vmatpush2.msra.mxu0 0.0
        %3792 = vmatprep.subr.mxu0 0.0
        %3793 = vmatpush2.msra.mxu0 0.0
        %3794 = vmatprep.subr.mxu0 0.0
        %3795 = vmatpush2.msra.mxu0 0.0
        %3796 = vmatprep.subr.mxu0 0.0
        %3797 = vmatpush2.msra.mxu0 0.0
        %3798 = vmatprep.subr.mxu0 0.0
        %3799 = vmatpush2.msra.mxu0 0.0
        %3800 = vmatprep.subr.mxu0 0.0
        %3801 = vmatpush2.msra.mxu0 0.0
        %3802 = vmatprep.subr.mxu0 0.0
        %3803 = vmatpush2.msra.mxu0 0.0
        %3804 = vmatprep.subr.mxu0 0.0
        %3805 = vmatpush2.msra.mxu0 0.0
        %3806 = vmatprep.subr.mxu0 0.0
        %3807 = vmatpush2.msra.mxu0 0.0
        %3808 = vmatprep.subr.mxu0 0.0
        %3809 = vmatpush2.msra.mxu0 0.0
        %3810 = vmatprep.subr.mxu0 0.0
        %3811 = vmatpush2.msra.mxu0 0.0
        %3812 = vmatprep.subr.mxu0 0.0
        %3813 = vmatpush2.msra.mxu0 0.0
        %3814 = vmatprep.subr.mxu0 0.0
        %3815 = vmatpush2.msra.mxu0 0.0
        %3816 = vmatprep.subr.mxu0 0.0
        %3817 = vmatpush2.msra.mxu0 0.0
        %3818 = vmatprep.subr.mxu0 0.0
        %3819 = vmatpush2.msra.mxu0 0.0
        %3820 = vmatprep.mubr.f32.mxu0 0.0
        %3821 = vmatmul.mubr.f32.gmra.mxu0 %v2701
        %v3822 = vpop.f32.mrf.mxu0
        %v3823 = vadd.f32 %v3754, %v3822
        %v3824 = vpop.f32.mrf.mxu0
        %3825 = vdwg.mxu0
        %s3826 = scalar_lea.vmem %s3, 704
        %v3827 = vld [vmem:[%s3826] sm:$0xff]
        %v3828 = vld [vmem:[%s3826 + $0x8] sm:$0xff]
        %v3829 = vld [vmem:[%s3826 + $0x10] sm:$0xff]
        %v3830 = vld [vmem:[%s3826 + $0x18] sm:$0xff]
        %s3831 = scalar_lea.vmem %s4, 22
        %v3832 = vld [vmem:[%s3831] sm:$0x1]
        %v3834 = vlaneseq
        %v3835 = vshrl.u32 %v3834, 7
        %v3836 = vsub.s32 0, %v3835
        %v3837 = vrot.slane %v3832, %v3836
        %3839 = vmatprep.subr.mxu0 0.0
        %3840 = vmatpush1.msra.mxu0 0.0
        %3841 = vmatprep.subr.mxu0 0.0
        %3842 = vmatpush1.msra.mxu0 0.0
        %3843 = vmatprep.subr.mxu0 0.0
        %3844 = vmatpush1.msra.mxu0 0.0
        %3845 = vmatprep.subr.mxu0 0.0
        %3846 = vmatpush1.msra.mxu0 0.0
        %3847 = vmatprep.subr.mxu0 0.0
        %3848 = vmatpush1.msra.mxu0 0.0
        %3849 = vmatprep.subr.mxu0 0.0
        %3850 = vmatpush1.msra.mxu0 0.0
        %3851 = vmatprep.subr.mxu0 0.0
        %3852 = vmatpush1.msra.mxu0 0.0
        %3853 = vmatprep.subr.mxu0 0.0
        %3854 = vmatpush1.msra.mxu0 0.0
        %3855 = vmatprep.subr.mxu0 0.0
        %3856 = vmatpush1.msra.mxu0 0.0
        %3857 = vmatprep.subr.mxu0 0.0
        %3858 = vmatpush1.msra.mxu0 0.0
        %3859 = vmatprep.subr.mxu0 0.0
        %3860 = vmatpush1.msra.mxu0 0.0
        %3861 = vmatprep.subr.mxu0 0.0
        %3862 = vmatpush1.msra.mxu0 0.0
        %3863 = vmatprep.subr.mxu0 0.0
        %3864 = vmatpush1.msra.mxu0 %v3830
        %3865 = vmatprep.subr.mxu0 0.0
        %3866 = vmatpush1.msra.mxu0 %v3829
        %3867 = vmatprep.subr.mxu0 0.0
        %3868 = vmatpush1.msra.mxu0 %v3828
        %3869 = vmatprep.subr.mxu0 0.0
        %3870 = vmatpush1.msra.mxu0 %v3827
        %3871 = vmatprep.subr.mxu0 0.0
        %3872 = vmatpush2.msra.mxu0 0.0
        %3873 = vmatprep.subr.mxu0 0.0
        %3874 = vmatpush2.msra.mxu0 0.0
        %3875 = vmatprep.subr.mxu0 0.0
        %3876 = vmatpush2.msra.mxu0 0.0
        %3877 = vmatprep.subr.mxu0 0.0
        %3878 = vmatpush2.msra.mxu0 0.0
        %3879 = vmatprep.subr.mxu0 0.0
        %3880 = vmatpush2.msra.mxu0 0.0
        %3881 = vmatprep.subr.mxu0 0.0
        %3882 = vmatpush2.msra.mxu0 0.0
        %3883 = vmatprep.subr.mxu0 0.0
        %3884 = vmatpush2.msra.mxu0 0.0
        %3885 = vmatprep.subr.mxu0 0.0
        %3886 = vmatpush2.msra.mxu0 0.0
        %3887 = vmatprep.subr.mxu0 0.0
        %3888 = vmatpush2.msra.mxu0 0.0
        %3889 = vmatprep.subr.mxu0 0.0
        %3890 = vmatpush2.msra.mxu0 0.0
        %3891 = vmatprep.subr.mxu0 0.0
        %3892 = vmatpush2.msra.mxu0 0.0
        %3893 = vmatprep.subr.mxu0 0.0
        %3894 = vmatpush2.msra.mxu0 0.0
        %3895 = vmatprep.subr.mxu0 0.0
        %3896 = vmatpush2.msra.mxu0 0.0
        %3897 = vmatprep.subr.mxu0 0.0
        %3898 = vmatpush2.msra.mxu0 0.0
        %3899 = vmatprep.subr.mxu0 0.0
        %3900 = vmatpush2.msra.mxu0 0.0
        %3901 = vmatprep.subr.mxu0 0.0
        %3902 = vmatpush2.msra.mxu0 0.0
        %3903 = vmatprep.mubr.f32.mxu0 0.0
        %3904 = vmatmul.mubr.f32.gmra.mxu0 %v2701
        %v3905 = vpop.f32.mrf.mxu0
        %v3906 = vadd.f32 %v3837, %v3905
        %v3907 = vpop.f32.mrf.mxu0
        %3908 = vdwg.mxu0
        %v3910 = vsel %vm746, %v3740, 0
        %v3913 = vsel %vm746, %v3823, 0
        %3915 = vmatprep.subr.mxu0 0.0
        %3916 = vmatpush1.xpose.msra.mxu0 0.0
        %3917 = vmatprep.subr.mxu0 0.0
        %3918 = vmatpush1.xpose.msra.mxu0 0.0
        %3919 = vmatprep.subr.mxu0 0.0
        %3920 = vmatpush1.xpose.msra.mxu0 0.0
        %3921 = vmatprep.subr.mxu0 0.0
        %3922 = vmatpush1.xpose.msra.mxu0 0.0
        %3923 = vmatprep.subr.mxu0 0.0
        %3924 = vmatpush1.xpose.msra.mxu0 0.0
        %3925 = vmatprep.subr.mxu0 0.0
        %3926 = vmatpush1.xpose.msra.mxu0 0.0
        %3927 = vmatprep.subr.mxu0 0.0
        %3928 = vmatpush1.xpose.msra.mxu0 0.0
        %3929 = vmatprep.subr.mxu0 0.0
        %3930 = vmatpush1.xpose.msra.mxu0 0.0
        %3931 = vmatprep.subr.mxu0 0.0
        %3932 = vmatpush1.xpose.msra.mxu0 0.0
        %3933 = vmatprep.subr.mxu0 0.0
        %3934 = vmatpush1.xpose.msra.mxu0 0.0
        %3935 = vmatprep.subr.mxu0 0.0
        %3936 = vmatpush1.xpose.msra.mxu0 0.0
        %3937 = vmatprep.subr.mxu0 0.0
        %3938 = vmatpush1.xpose.msra.mxu0 0.0
        %3939 = vmatprep.subr.mxu0 0.0
        %3940 = vmatpush1.xpose.msra.mxu0 0.0
        %3941 = vmatprep.subr.mxu0 0.0
        %3942 = vmatpush1.xpose.msra.mxu0 0.0
        %3943 = vmatprep.subr.mxu0 0.0
        %3944 = vmatpush1.xpose.msra.mxu0 0.0
        %3945 = vmatprep.subr.mxu0 0.0
        %3946 = vmatpush1.xpose.msra.mxu0 %v3913
        %3947 = vmatprep.subr.mxu0 0.0
        %3948 = vmatpush2.xpose.msra.mxu0 0.0
        %3949 = vmatprep.subr.mxu0 0.0
        %3950 = vmatpush2.xpose.msra.mxu0 0.0
        %3951 = vmatprep.subr.mxu0 0.0
        %3952 = vmatpush2.xpose.msra.mxu0 0.0
        %3953 = vmatprep.subr.mxu0 0.0
        %3954 = vmatpush2.xpose.msra.mxu0 0.0
        %3955 = vmatprep.subr.mxu0 0.0
        %3956 = vmatpush2.xpose.msra.mxu0 0.0
        %3957 = vmatprep.subr.mxu0 0.0
        %3958 = vmatpush2.xpose.msra.mxu0 0.0
        %3959 = vmatprep.subr.mxu0 0.0
        %3960 = vmatpush2.xpose.msra.mxu0 0.0
        %3961 = vmatprep.subr.mxu0 0.0
        %3962 = vmatpush2.xpose.msra.mxu0 0.0
        %3963 = vmatprep.subr.mxu0 0.0
        %3964 = vmatpush2.xpose.msra.mxu0 0.0
        %3965 = vmatprep.subr.mxu0 0.0
        %3966 = vmatpush2.xpose.msra.mxu0 0.0
        %3967 = vmatprep.subr.mxu0 0.0
        %3968 = vmatpush2.xpose.msra.mxu0 0.0
        %3969 = vmatprep.subr.mxu0 0.0
        %3970 = vmatpush2.xpose.msra.mxu0 0.0
        %3971 = vmatprep.subr.mxu0 0.0
        %3972 = vmatpush2.xpose.msra.mxu0 0.0
        %3973 = vmatprep.subr.mxu0 0.0
        %3974 = vmatpush2.xpose.msra.mxu0 0.0
        %3975 = vmatprep.subr.mxu0 0.0
        %3976 = vmatpush2.xpose.msra.mxu0 0.0
        %3977 = vmatprep.subr.mxu0 0.0
        %3978 = vmatpush2.xpose.msra.mxu0 0.0
        %3979 = vmatprep.mubr.f32.mxu0 0.0
        %3980 = vmatmul.mubr.f32.gmra.mxu0 %v3910
        %v3981 = vpop.f32.mrf.mxu0
        %v3982 = vadd.f32 0.0, %v3981
        %v3983 = vpop.f32.mrf.mxu0
        %3984 = vdwg.mxu0
        %v3985 = vmul.f32 %v3982, 0.35355338
        %v3986 = vsel %vm746, %v3985, -inf
        %3987 = vmax.xlane.f32.xlu0 %v3986
        %v3988 = vpop.xlane.xlu0 %3987
        %v3989 = vsub.f32 %v3985, %v3988
        %v3990 = vmul.f32 %v3989, 1.442695
        %v3991 = vpow.pop %v3990
        %v3992 = vsel %vm746, %v3991, 0.0
        %3993 = vadd.xlane.f32.xlu0 %v3992
        %v3994 = vpop.xlane.xlu0 %3993
        %v3995 = vrcp.pop %v3994
        %v3996 = vmul.f32 %v3991, %v3995
        %v3998 = vsel %vm746, %v3996, 0
        %4000 = vmatprep.subr.mxu0 0.0
        %4001 = vmatpush1.msra.mxu0 0.0
        %4002 = vmatprep.subr.mxu0 0.0
        %4003 = vmatpush1.msra.mxu0 0.0
        %4004 = vmatprep.subr.mxu0 0.0
        %4005 = vmatpush1.msra.mxu0 0.0
        %4006 = vmatprep.subr.mxu0 0.0
        %4007 = vmatpush1.msra.mxu0 0.0
        %4008 = vmatprep.subr.mxu0 0.0
        %4009 = vmatpush1.msra.mxu0 0.0
        %4010 = vmatprep.subr.mxu0 0.0
        %4011 = vmatpush1.msra.mxu0 0.0
        %4012 = vmatprep.subr.mxu0 0.0
        %4013 = vmatpush1.msra.mxu0 0.0
        %4014 = vmatprep.subr.mxu0 0.0
        %4015 = vmatpush1.msra.mxu0 0.0
        %4016 = vmatprep.subr.mxu0 0.0
        %4017 = vmatpush1.msra.mxu0 0.0
        %4018 = vmatprep.subr.mxu0 0.0
        %4019 = vmatpush1.msra.mxu0 0.0
        %4020 = vmatprep.subr.mxu0 0.0
        %4021 = vmatpush1.msra.mxu0 0.0
        %4022 = vmatprep.subr.mxu0 0.0
        %4023 = vmatpush1.msra.mxu0 0.0
        %4024 = vmatprep.subr.mxu0 0.0
        %4025 = vmatpush1.msra.mxu0 0.0
        %4026 = vmatprep.subr.mxu0 0.0
        %4027 = vmatpush1.msra.mxu0 0.0
        %4028 = vmatprep.subr.mxu0 0.0
        %4029 = vmatpush1.msra.mxu0 0.0
        %4030 = vmatprep.subr.mxu0 0.0
        %4031 = vmatpush1.msra.mxu0 %v3906
        %4032 = vmatprep.subr.mxu0 0.0
        %4033 = vmatpush2.msra.mxu0 0.0
        %4034 = vmatprep.subr.mxu0 0.0
        %4035 = vmatpush2.msra.mxu0 0.0
        %4036 = vmatprep.subr.mxu0 0.0
        %4037 = vmatpush2.msra.mxu0 0.0
        %4038 = vmatprep.subr.mxu0 0.0
        %4039 = vmatpush2.msra.mxu0 0.0
        %4040 = vmatprep.subr.mxu0 0.0
        %4041 = vmatpush2.msra.mxu0 0.0
        %4042 = vmatprep.subr.mxu0 0.0
        %4043 = vmatpush2.msra.mxu0 0.0
        %4044 = vmatprep.subr.mxu0 0.0
        %4045 = vmatpush2.msra.mxu0 0.0
        %4046 = vmatprep.subr.mxu0 0.0
        %4047 = vmatpush2.msra.mxu0 0.0
        %4048 = vmatprep.subr.mxu0 0.0
        %4049 = vmatpush2.msra.mxu0 0.0
        %4050 = vmatprep.subr.mxu0 0.0
        %4051 = vmatpush2.msra.mxu0 0.0
        %4052 = vmatprep.subr.mxu0 0.0
        %4053 = vmatpush2.msra.mxu0 0.0
        %4054 = vmatprep.subr.mxu0 0.0
        %4055 = vmatpush2.msra.mxu0 0.0
        %4056 = vmatprep.subr.mxu0 0.0
        %4057 = vmatpush2.msra.mxu0 0.0
        %4058 = vmatprep.subr.mxu0 0.0
        %4059 = vmatpush2.msra.mxu0 0.0
        %4060 = vmatprep.subr.mxu0 0.0
        %4061 = vmatpush2.msra.mxu0 0.0
        %4062 = vmatprep.subr.mxu0 0.0
        %4063 = vmatpush2.msra.mxu0 0.0
        %4064 = vmatprep.mubr.f32.mxu0 0.0
        %4065 = vmatmul.mubr.f32.gmra.mxu0 %v3998
        %v4066 = vpop.f32.mrf.mxu0
        %v4067 = vadd.f32 0.0, %v4066
        %v4068 = vpop.f32.mrf.mxu0
        %4069 = vdwg.mxu0
        %s4070 = scalar_lea.vmem %s5, 48
        %v4071 = vld [vmem:[%s4070] sm:$0xff]
        %v4073 = vsel %vm746, %v4067, 0
        %4075 = vmatprep.subr.mxu0 0.0
        %4076 = vmatpush1.msra.mxu0 0.0
        %4077 = vmatprep.subr.mxu0 0.0
        %4078 = vmatpush1.msra.mxu0 0.0
        %4079 = vmatprep.subr.mxu0 0.0
        %4080 = vmatpush1.msra.mxu0 0.0
        %4081 = vmatprep.subr.mxu0 0.0
        %4082 = vmatpush1.msra.mxu0 0.0
        %4083 = vmatprep.subr.mxu0 0.0
        %4084 = vmatpush1.msra.mxu0 0.0
        %4085 = vmatprep.subr.mxu0 0.0
        %4086 = vmatpush1.msra.mxu0 0.0
        %4087 = vmatprep.subr.mxu0 0.0
        %4088 = vmatpush1.msra.mxu0 0.0
        %4089 = vmatprep.subr.mxu0 0.0
        %4090 = vmatpush1.msra.mxu0 0.0
        %4091 = vmatprep.subr.mxu0 0.0
        %4092 = vmatpush1.msra.mxu0 0.0
        %4093 = vmatprep.subr.mxu0 0.0
        %4094 = vmatpush1.msra.mxu0 0.0
        %4095 = vmatprep.subr.mxu0 0.0
        %4096 = vmatpush1.msra.mxu0 0.0
        %4097 = vmatprep.subr.mxu0 0.0
        %4098 = vmatpush1.msra.mxu0 0.0
        %4099 = vmatprep.subr.mxu0 0.0
        %4100 = vmatpush1.msra.mxu0 0.0
        %4101 = vmatprep.subr.mxu0 0.0
        %4102 = vmatpush1.msra.mxu0 0.0
        %4103 = vmatprep.subr.mxu0 0.0
        %4104 = vmatpush1.msra.mxu0 0.0
        %4105 = vmatprep.subr.mxu0 0.0
        %4106 = vmatpush1.msra.mxu0 %v4071
        %4107 = vmatprep.subr.mxu0 0.0
        %4108 = vmatpush2.msra.mxu0 0.0
        %4109 = vmatprep.subr.mxu0 0.0
        %4110 = vmatpush2.msra.mxu0 0.0
        %4111 = vmatprep.subr.mxu0 0.0
        %4112 = vmatpush2.msra.mxu0 0.0
        %4113 = vmatprep.subr.mxu0 0.0
        %4114 = vmatpush2.msra.mxu0 0.0
        %4115 = vmatprep.subr.mxu0 0.0
        %4116 = vmatpush2.msra.mxu0 0.0
        %4117 = vmatprep.subr.mxu0 0.0
        %4118 = vmatpush2.msra.mxu0 0.0
        %4119 = vmatprep.subr.mxu0 0.0
        %4120 = vmatpush2.msra.mxu0 0.0
        %4121 = vmatprep.subr.mxu0 0.0
        %4122 = vmatpush2.msra.mxu0 0.0
        %4123 = vmatprep.subr.mxu0 0.0
        %4124 = vmatpush2.msra.mxu0 0.0
        %4125 = vmatprep.subr.mxu0 0.0
        %4126 = vmatpush2.msra.mxu0 0.0
        %4127 = vmatprep.subr.mxu0 0.0
        %4128 = vmatpush2.msra.mxu0 0.0
        %4129 = vmatprep.subr.mxu0 0.0
        %4130 = vmatpush2.msra.mxu0 0.0
        %4131 = vmatprep.subr.mxu0 0.0
        %4132 = vmatpush2.msra.mxu0 0.0
        %4133 = vmatprep.subr.mxu0 0.0
        %4134 = vmatpush2.msra.mxu0 0.0
        %4135 = vmatprep.subr.mxu0 0.0
        %4136 = vmatpush2.msra.mxu0 0.0
        %4137 = vmatprep.subr.mxu0 0.0
        %4138 = vmatpush2.msra.mxu0 0.0
        %4139 = vmatprep.mubr.f32.mxu0 0.0
        %4140 = vmatmul.mubr.f32.gmra.mxu0 %v4073
        %v4141 = vpop.f32.mrf.mxu0
        %v4142 = vadd.f32 0.0, %v4141
        %v4143 = vpop.f32.mrf.mxu0
        %4144 = vdwg.mxu0
        %v4145 = vadd.f32 %v3657, %v4142
        %s4146 = scalar_lea.vmem %s3, 480
        %v4147 = vld [vmem:[%s4146] sm:$0xff]
        %v4148 = vld [vmem:[%s4146 + $0x8] sm:$0xff]
        %v4149 = vld [vmem:[%s4146 + $0x10] sm:$0xff]
        %v4150 = vld [vmem:[%s4146 + $0x18] sm:$0xff]
        %s4151 = scalar_lea.vmem %s4, 15
        %v4152 = vld [vmem:[%s4151] sm:$0x1]
        %v4154 = vlaneseq
        %v4155 = vshrl.u32 %v4154, 7
        %v4156 = vsub.s32 0, %v4155
        %v4157 = vrot.slane %v4152, %v4156
        %4159 = vmatprep.subr.mxu0 0.0
        %4160 = vmatpush1.msra.mxu0 0.0
        %4161 = vmatprep.subr.mxu0 0.0
        %4162 = vmatpush1.msra.mxu0 0.0
        %4163 = vmatprep.subr.mxu0 0.0
        %4164 = vmatpush1.msra.mxu0 0.0
        %4165 = vmatprep.subr.mxu0 0.0
        %4166 = vmatpush1.msra.mxu0 0.0
        %4167 = vmatprep.subr.mxu0 0.0
        %4168 = vmatpush1.msra.mxu0 0.0
        %4169 = vmatprep.subr.mxu0 0.0
        %4170 = vmatpush1.msra.mxu0 0.0
        %4171 = vmatprep.subr.mxu0 0.0
        %4172 = vmatpush1.msra.mxu0 0.0
        %4173 = vmatprep.subr.mxu0 0.0
        %4174 = vmatpush1.msra.mxu0 0.0
        %4175 = vmatprep.subr.mxu0 0.0
        %4176 = vmatpush1.msra.mxu0 0.0
        %4177 = vmatprep.subr.mxu0 0.0
        %4178 = vmatpush1.msra.mxu0 0.0
        %4179 = vmatprep.subr.mxu0 0.0
        %4180 = vmatpush1.msra.mxu0 0.0
        %4181 = vmatprep.subr.mxu0 0.0
        %4182 = vmatpush1.msra.mxu0 0.0
        %4183 = vmatprep.subr.mxu0 0.0
        %4184 = vmatpush1.msra.mxu0 %v4150
        %4185 = vmatprep.subr.mxu0 0.0
        %4186 = vmatpush1.msra.mxu0 %v4149
        %4187 = vmatprep.subr.mxu0 0.0
        %4188 = vmatpush1.msra.mxu0 %v4148
        %4189 = vmatprep.subr.mxu0 0.0
        %4190 = vmatpush1.msra.mxu0 %v4147
        %4191 = vmatprep.subr.mxu0 0.0
        %4192 = vmatpush2.msra.mxu0 0.0
        %4193 = vmatprep.subr.mxu0 0.0
        %4194 = vmatpush2.msra.mxu0 0.0
        %4195 = vmatprep.subr.mxu0 0.0
        %4196 = vmatpush2.msra.mxu0 0.0
        %4197 = vmatprep.subr.mxu0 0.0
        %4198 = vmatpush2.msra.mxu0 0.0
        %4199 = vmatprep.subr.mxu0 0.0
        %4200 = vmatpush2.msra.mxu0 0.0
        %4201 = vmatprep.subr.mxu0 0.0
        %4202 = vmatpush2.msra.mxu0 0.0
        %4203 = vmatprep.subr.mxu0 0.0
        %4204 = vmatpush2.msra.mxu0 0.0
        %4205 = vmatprep.subr.mxu0 0.0
        %4206 = vmatpush2.msra.mxu0 0.0
        %4207 = vmatprep.subr.mxu0 0.0
        %4208 = vmatpush2.msra.mxu0 0.0
        %4209 = vmatprep.subr.mxu0 0.0
        %4210 = vmatpush2.msra.mxu0 0.0
        %4211 = vmatprep.subr.mxu0 0.0
        %4212 = vmatpush2.msra.mxu0 0.0
        %4213 = vmatprep.subr.mxu0 0.0
        %4214 = vmatpush2.msra.mxu0 0.0
        %4215 = vmatprep.subr.mxu0 0.0
        %4216 = vmatpush2.msra.mxu0 0.0
        %4217 = vmatprep.subr.mxu0 0.0
        %4218 = vmatpush2.msra.mxu0 0.0
        %4219 = vmatprep.subr.mxu0 0.0
        %4220 = vmatpush2.msra.mxu0 0.0
        %4221 = vmatprep.subr.mxu0 0.0
        %4222 = vmatpush2.msra.mxu0 0.0
        %4223 = vmatprep.mubr.f32.mxu0 0.0
        %4224 = vmatmul.mubr.f32.gmra.mxu0 %v2701
        %v4225 = vpop.f32.mrf.mxu0
        %v4226 = vadd.f32 %v4157, %v4225
        %v4227 = vpop.f32.mrf.mxu0
        %4228 = vdwg.mxu0
        %s4229 = scalar_lea.vmem %s3, 608
        %v4230 = vld [vmem:[%s4229] sm:$0xff]
        %v4231 = vld [vmem:[%s4229 + $0x8] sm:$0xff]
        %v4232 = vld [vmem:[%s4229 + $0x10] sm:$0xff]
        %v4233 = vld [vmem:[%s4229 + $0x18] sm:$0xff]
        %s4234 = scalar_lea.vmem %s4, 19
        %v4235 = vld [vmem:[%s4234] sm:$0x1]
        %v4237 = vlaneseq
        %v4238 = vshrl.u32 %v4237, 7
        %v4239 = vsub.s32 0, %v4238
        %v4240 = vrot.slane %v4235, %v4239
        %4242 = vmatprep.subr.mxu0 0.0
        %4243 = vmatpush1.msra.mxu0 0.0
        %4244 = vmatprep.subr.mxu0 0.0
        %4245 = vmatpush1.msra.mxu0 0.0
        %4246 = vmatprep.subr.mxu0 0.0
        %4247 = vmatpush1.msra.mxu0 0.0
        %4248 = vmatprep.subr.mxu0 0.0
        %4249 = vmatpush1.msra.mxu0 0.0
        %4250 = vmatprep.subr.mxu0 0.0
        %4251 = vmatpush1.msra.mxu0 0.0
        %4252 = vmatprep.subr.mxu0 0.0
        %4253 = vmatpush1.msra.mxu0 0.0
        %4254 = vmatprep.subr.mxu0 0.0
        %4255 = vmatpush1.msra.mxu0 0.0
        %4256 = vmatprep.subr.mxu0 0.0
        %4257 = vmatpush1.msra.mxu0 0.0
        %4258 = vmatprep.subr.mxu0 0.0
        %4259 = vmatpush1.msra.mxu0 0.0
        %4260 = vmatprep.subr.mxu0 0.0
        %4261 = vmatpush1.msra.mxu0 0.0
        %4262 = vmatprep.subr.mxu0 0.0
        %4263 = vmatpush1.msra.mxu0 0.0
        %4264 = vmatprep.subr.mxu0 0.0
        %4265 = vmatpush1.msra.mxu0 0.0
        %4266 = vmatprep.subr.mxu0 0.0
        %4267 = vmatpush1.msra.mxu0 %v4233
        %4268 = vmatprep.subr.mxu0 0.0
        %4269 = vmatpush1.msra.mxu0 %v4232
        %4270 = vmatprep.subr.mxu0 0.0
        %4271 = vmatpush1.msra.mxu0 %v4231
        %4272 = vmatprep.subr.mxu0 0.0
        %4273 = vmatpush1.msra.mxu0 %v4230
        %4274 = vmatprep.subr.mxu0 0.0
        %4275 = vmatpush2.msra.mxu0 0.0
        %4276 = vmatprep.subr.mxu0 0.0
        %4277 = vmatpush2.msra.mxu0 0.0
        %4278 = vmatprep.subr.mxu0 0.0
        %4279 = vmatpush2.msra.mxu0 0.0
        %4280 = vmatprep.subr.mxu0 0.0
        %4281 = vmatpush2.msra.mxu0 0.0
        %4282 = vmatprep.subr.mxu0 0.0
        %4283 = vmatpush2.msra.mxu0 0.0
        %4284 = vmatprep.subr.mxu0 0.0
        %4285 = vmatpush2.msra.mxu0 0.0
        %4286 = vmatprep.subr.mxu0 0.0
        %4287 = vmatpush2.msra.mxu0 0.0
        %4288 = vmatprep.subr.mxu0 0.0
        %4289 = vmatpush2.msra.mxu0 0.0
        %4290 = vmatprep.subr.mxu0 0.0
        %4291 = vmatpush2.msra.mxu0 0.0
        %4292 = vmatprep.subr.mxu0 0.0
        %4293 = vmatpush2.msra.mxu0 0.0
        %4294 = vmatprep.subr.mxu0 0.0
        %4295 = vmatpush2.msra.mxu0 0.0
        %4296 = vmatprep.subr.mxu0 0.0
        %4297 = vmatpush2.msra.mxu0 0.0
        %4298 = vmatprep.subr.mxu0 0.0
        %4299 = vmatpush2.msra.mxu0 0.0
        %4300 = vmatprep.subr.mxu0 0.0
        %4301 = vmatpush2.msra.mxu0 0.0
        %4302 = vmatprep.subr.mxu0 0.0
        %4303 = vmatpush2.msra.mxu0 0.0
        %4304 = vmatprep.subr.mxu0 0.0
        %4305 = vmatpush2.msra.mxu0 0.0
        %4306 = vmatprep.mubr.f32.mxu0 0.0
        %4307 = vmatmul.mubr.f32.gmra.mxu0 %v2701
        %v4308 = vpop.f32.mrf.mxu0
        %v4309 = vadd.f32 %v4240, %v4308
        %v4310 = vpop.f32.mrf.mxu0
        %4311 = vdwg.mxu0
        %s4312 = scalar_lea.vmem %s3, 736
        %v4313 = vld [vmem:[%s4312] sm:$0xff]
        %v4314 = vld [vmem:[%s4312 + $0x8] sm:$0xff]
        %v4315 = vld [vmem:[%s4312 + $0x10] sm:$0xff]
        %v4316 = vld [vmem:[%s4312 + $0x18] sm:$0xff]
        %s4317 = scalar_lea.vmem %s4, 23
        %v4318 = vld [vmem:[%s4317] sm:$0x1]
        %v4320 = vlaneseq
        %v4321 = vshrl.u32 %v4320, 7
        %v4322 = vsub.s32 0, %v4321
        %v4323 = vrot.slane %v4318, %v4322
        %4325 = vmatprep.subr.mxu0 0.0
        %4326 = vmatpush1.msra.mxu0 0.0
        %4327 = vmatprep.subr.mxu0 0.0
        %4328 = vmatpush1.msra.mxu0 0.0
        %4329 = vmatprep.subr.mxu0 0.0
        %4330 = vmatpush1.msra.mxu0 0.0
        %4331 = vmatprep.subr.mxu0 0.0
        %4332 = vmatpush1.msra.mxu0 0.0
        %4333 = vmatprep.subr.mxu0 0.0
        %4334 = vmatpush1.msra.mxu0 0.0
        %4335 = vmatprep.subr.mxu0 0.0
        %4336 = vmatpush1.msra.mxu0 0.0
        %4337 = vmatprep.subr.mxu0 0.0
        %4338 = vmatpush1.msra.mxu0 0.0
        %4339 = vmatprep.subr.mxu0 0.0
        %4340 = vmatpush1.msra.mxu0 0.0
        %4341 = vmatprep.subr.mxu0 0.0
        %4342 = vmatpush1.msra.mxu0 0.0
        %4343 = vmatprep.subr.mxu0 0.0
        %4344 = vmatpush1.msra.mxu0 0.0
        %4345 = vmatprep.subr.mxu0 0.0
        %4346 = vmatpush1.msra.mxu0 0.0
        %4347 = vmatprep.subr.mxu0 0.0
        %4348 = vmatpush1.msra.mxu0 0.0
        %4349 = vmatprep.subr.mxu0 0.0
        %4350 = vmatpush1.msra.mxu0 %v4316
        %4351 = vmatprep.subr.mxu0 0.0
        %4352 = vmatpush1.msra.mxu0 %v4315
        %4353 = vmatprep.subr.mxu0 0.0
        %4354 = vmatpush1.msra.mxu0 %v4314
        %4355 = vmatprep.subr.mxu0 0.0
        %4356 = vmatpush1.msra.mxu0 %v4313
        %4357 = vmatprep.subr.mxu0 0.0
        %4358 = vmatpush2.msra.mxu0 0.0
        %4359 = vmatprep.subr.mxu0 0.0
        %4360 = vmatpush2.msra.mxu0 0.0
        %4361 = vmatprep.subr.mxu0 0.0
        %4362 = vmatpush2.msra.mxu0 0.0
        %4363 = vmatprep.subr.mxu0 0.0
        %4364 = vmatpush2.msra.mxu0 0.0
        %4365 = vmatprep.subr.mxu0 0.0
        %4366 = vmatpush2.msra.mxu0 0.0
        %4367 = vmatprep.subr.mxu0 0.0
        %4368 = vmatpush2.msra.mxu0 0.0
        %4369 = vmatprep.subr.mxu0 0.0
        %4370 = vmatpush2.msra.mxu0 0.0
        %4371 = vmatprep.subr.mxu0 0.0
        %4372 = vmatpush2.msra.mxu0 0.0
        %4373 = vmatprep.subr.mxu0 0.0
        %4374 = vmatpush2.msra.mxu0 0.0
        %4375 = vmatprep.subr.mxu0 0.0
        %4376 = vmatpush2.msra.mxu0 0.0
        %4377 = vmatprep.subr.mxu0 0.0
        %4378 = vmatpush2.msra.mxu0 0.0
        %4379 = vmatprep.subr.mxu0 0.0
        %4380 = vmatpush2.msra.mxu0 0.0
        %4381 = vmatprep.subr.mxu0 0.0
        %4382 = vmatpush2.msra.mxu0 0.0
        %4383 = vmatprep.subr.mxu0 0.0
        %4384 = vmatpush2.msra.mxu0 0.0
        %4385 = vmatprep.subr.mxu0 0.0
        %4386 = vmatpush2.msra.mxu0 0.0
        %4387 = vmatprep.subr.mxu0 0.0
        %4388 = vmatpush2.msra.mxu0 0.0
        %4389 = vmatprep.mubr.f32.mxu0 0.0
        %4390 = vmatmul.mubr.f32.gmra.mxu0 %v2701
        %v4391 = vpop.f32.mrf.mxu0
        %v4392 = vadd.f32 %v4323, %v4391
        %v4393 = vpop.f32.mrf.mxu0
        %4394 = vdwg.mxu0
        %v4396 = vsel %vm746, %v4226, 0
        %v4399 = vsel %vm746, %v4309, 0
        %4401 = vmatprep.subr.mxu0 0.0
        %4402 = vmatpush1.xpose.msra.mxu0 0.0
        %4403 = vmatprep.subr.mxu0 0.0
        %4404 = vmatpush1.xpose.msra.mxu0 0.0
        %4405 = vmatprep.subr.mxu0 0.0
        %4406 = vmatpush1.xpose.msra.mxu0 0.0
        %4407 = vmatprep.subr.mxu0 0.0
        %4408 = vmatpush1.xpose.msra.mxu0 0.0
        %4409 = vmatprep.subr.mxu0 0.0
        %4410 = vmatpush1.xpose.msra.mxu0 0.0
        %4411 = vmatprep.subr.mxu0 0.0
        %4412 = vmatpush1.xpose.msra.mxu0 0.0
        %4413 = vmatprep.subr.mxu0 0.0
        %4414 = vmatpush1.xpose.msra.mxu0 0.0
        %4415 = vmatprep.subr.mxu0 0.0
        %4416 = vmatpush1.xpose.msra.mxu0 0.0
        %4417 = vmatprep.subr.mxu0 0.0
        %4418 = vmatpush1.xpose.msra.mxu0 0.0
        %4419 = vmatprep.subr.mxu0 0.0
        %4420 = vmatpush1.xpose.msra.mxu0 0.0
        %4421 = vmatprep.subr.mxu0 0.0
        %4422 = vmatpush1.xpose.msra.mxu0 0.0
        %4423 = vmatprep.subr.mxu0 0.0
        %4424 = vmatpush1.xpose.msra.mxu0 0.0
        %4425 = vmatprep.subr.mxu0 0.0
        %4426 = vmatpush1.xpose.msra.mxu0 0.0
        %4427 = vmatprep.subr.mxu0 0.0
        %4428 = vmatpush1.xpose.msra.mxu0 0.0
        %4429 = vmatprep.subr.mxu0 0.0
        %4430 = vmatpush1.xpose.msra.mxu0 0.0
        %4431 = vmatprep.subr.mxu0 0.0
        %4432 = vmatpush1.xpose.msra.mxu0 %v4399
        %4433 = vmatprep.subr.mxu0 0.0
        %4434 = vmatpush2.xpose.msra.mxu0 0.0
        %4435 = vmatprep.subr.mxu0 0.0
        %4436 = vmatpush2.xpose.msra.mxu0 0.0
        %4437 = vmatprep.subr.mxu0 0.0
        %4438 = vmatpush2.xpose.msra.mxu0 0.0
        %4439 = vmatprep.subr.mxu0 0.0
        %4440 = vmatpush2.xpose.msra.mxu0 0.0
        %4441 = vmatprep.subr.mxu0 0.0
        %4442 = vmatpush2.xpose.msra.mxu0 0.0
        %4443 = vmatprep.subr.mxu0 0.0
        %4444 = vmatpush2.xpose.msra.mxu0 0.0
        %4445 = vmatprep.subr.mxu0 0.0
        %4446 = vmatpush2.xpose.msra.mxu0 0.0
        %4447 = vmatprep.subr.mxu0 0.0
        %4448 = vmatpush2.xpose.msra.mxu0 0.0
        %4449 = vmatprep.subr.mxu0 0.0
        %4450 = vmatpush2.xpose.msra.mxu0 0.0
        %4451 = vmatprep.subr.mxu0 0.0
        %4452 = vmatpush2.xpose.msra.mxu0 0.0
        %4453 = vmatprep.subr.mxu0 0.0
        %4454 = vmatpush2.xpose.msra.mxu0 0.0
        %4455 = vmatprep.subr.mxu0 0.0
        %4456 = vmatpush2.xpose.msra.mxu0 0.0
        %4457 = vmatprep.subr.mxu0 0.0
        %4458 = vmatpush2.xpose.msra.mxu0 0.0
        %4459 = vmatprep.subr.mxu0 0.0
        %4460 = vmatpush2.xpose.msra.mxu0 0.0
        %4461 = vmatprep.subr.mxu0 0.0
        %4462 = vmatpush2.xpose.msra.mxu0 0.0
        %4463 = vmatprep.subr.mxu0 0.0
        %4464 = vmatpush2.xpose.msra.mxu0 0.0
        %4465 = vmatprep.mubr.f32.mxu0 0.0
        %4466 = vmatmul.mubr.f32.gmra.mxu0 %v4396
        %v4467 = vpop.f32.mrf.mxu0
        %v4468 = vadd.f32 0.0, %v4467
        %v4469 = vpop.f32.mrf.mxu0
        %4470 = vdwg.mxu0
        %v4471 = vmul.f32 %v4468, 0.35355338
        %v4472 = vsel %vm746, %v4471, -inf
        %4473 = vmax.xlane.f32.xlu0 %v4472
        %v4474 = vpop.xlane.xlu0 %4473
        %v4475 = vsub.f32 %v4471, %v4474
        %v4476 = vmul.f32 %v4475, 1.442695
        %v4477 = vpow.pop %v4476
        %v4478 = vsel %vm746, %v4477, 0.0
        %4479 = vadd.xlane.f32.xlu0 %v4478
        %v4480 = vpop.xlane.xlu0 %4479
        %v4481 = vrcp.pop %v4480
        %v4482 = vmul.f32 %v4477, %v4481
        %v4484 = vsel %vm746, %v4482, 0
        %4486 = vmatprep.subr.mxu0 0.0
        %4487 = vmatpush1.msra.mxu0 0.0
        %4488 = vmatprep.subr.mxu0 0.0
        %4489 = vmatpush1.msra.mxu0 0.0
        %4490 = vmatprep.subr.mxu0 0.0
        %4491 = vmatpush1.msra.mxu0 0.0
        %4492 = vmatprep.subr.mxu0 0.0
        %4493 = vmatpush1.msra.mxu0 0.0
        %4494 = vmatprep.subr.mxu0 0.0
        %4495 = vmatpush1.msra.mxu0 0.0
        %4496 = vmatprep.subr.mxu0 0.0
        %4497 = vmatpush1.msra.mxu0 0.0
        %4498 = vmatprep.subr.mxu0 0.0
        %4499 = vmatpush1.msra.mxu0 0.0
        %4500 = vmatprep.subr.mxu0 0.0
        %4501 = vmatpush1.msra.mxu0 0.0
        %4502 = vmatprep.subr.mxu0 0.0
        %4503 = vmatpush1.msra.mxu0 0.0
        %4504 = vmatprep.subr.mxu0 0.0
        %4505 = vmatpush1.msra.mxu0 0.0
        %4506 = vmatprep.subr.mxu0 0.0
        %4507 = vmatpush1.msra.mxu0 0.0
        %4508 = vmatprep.subr.mxu0 0.0
        %4509 = vmatpush1.msra.mxu0 0.0
        %4510 = vmatprep.subr.mxu0 0.0
        %4511 = vmatpush1.msra.mxu0 0.0
        %4512 = vmatprep.subr.mxu0 0.0
        %4513 = vmatpush1.msra.mxu0 0.0
        %4514 = vmatprep.subr.mxu0 0.0
        %4515 = vmatpush1.msra.mxu0 0.0
        %4516 = vmatprep.subr.mxu0 0.0
        %4517 = vmatpush1.msra.mxu0 %v4392
        %4518 = vmatprep.subr.mxu0 0.0
        %4519 = vmatpush2.msra.mxu0 0.0
        %4520 = vmatprep.subr.mxu0 0.0
        %4521 = vmatpush2.msra.mxu0 0.0
        %4522 = vmatprep.subr.mxu0 0.0
        %4523 = vmatpush2.msra.mxu0 0.0
        %4524 = vmatprep.subr.mxu0 0.0
        %4525 = vmatpush2.msra.mxu0 0.0
        %4526 = vmatprep.subr.mxu0 0.0
        %4527 = vmatpush2.msra.mxu0 0.0
        %4528 = vmatprep.subr.mxu0 0.0
        %4529 = vmatpush2.msra.mxu0 0.0
        %4530 = vmatprep.subr.mxu0 0.0
        %4531 = vmatpush2.msra.mxu0 0.0
        %4532 = vmatprep.subr.mxu0 0.0
        %4533 = vmatpush2.msra.mxu0 0.0
        %4534 = vmatprep.subr.mxu0 0.0
        %4535 = vmatpush2.msra.mxu0 0.0
        %4536 = vmatprep.subr.mxu0 0.0
        %4537 = vmatpush2.msra.mxu0 0.0
        %4538 = vmatprep.subr.mxu0 0.0
        %4539 = vmatpush2.msra.mxu0 0.0
        %4540 = vmatprep.subr.mxu0 0.0
        %4541 = vmatpush2.msra.mxu0 0.0
        %4542 = vmatprep.subr.mxu0 0.0
        %4543 = vmatpush2.msra.mxu0 0.0
        %4544 = vmatprep.subr.mxu0 0.0
        %4545 = vmatpush2.msra.mxu0 0.0
        %4546 = vmatprep.subr.mxu0 0.0
        %4547 = vmatpush2.msra.mxu0 0.0
        %4548 = vmatprep.subr.mxu0 0.0
        %4549 = vmatpush2.msra.mxu0 0.0
        %4550 = vmatprep.mubr.f32.mxu0 0.0
        %4551 = vmatmul.mubr.f32.gmra.mxu0 %v4484
        %v4552 = vpop.f32.mrf.mxu0
        %v4553 = vadd.f32 0.0, %v4552
        %v4554 = vpop.f32.mrf.mxu0
        %4555 = vdwg.mxu0
        %s4556 = scalar_lea.vmem %s5, 56
        %v4557 = vld [vmem:[%s4556] sm:$0xff]
        %v4559 = vsel %vm746, %v4553, 0
        %4561 = vmatprep.subr.mxu0 0.0
        %4562 = vmatpush1.msra.mxu0 0.0
        %4563 = vmatprep.subr.mxu0 0.0
        %4564 = vmatpush1.msra.mxu0 0.0
        %4565 = vmatprep.subr.mxu0 0.0
        %4566 = vmatpush1.msra.mxu0 0.0
        %4567 = vmatprep.subr.mxu0 0.0
        %4568 = vmatpush1.msra.mxu0 0.0
        %4569 = vmatprep.subr.mxu0 0.0
        %4570 = vmatpush1.msra.mxu0 0.0
        %4571 = vmatprep.subr.mxu0 0.0
        %4572 = vmatpush1.msra.mxu0 0.0
        %4573 = vmatprep.subr.mxu0 0.0
        %4574 = vmatpush1.msra.mxu0 0.0
        %4575 = vmatprep.subr.mxu0 0.0
        %4576 = vmatpush1.msra.mxu0 0.0
        %4577 = vmatprep.subr.mxu0 0.0
        %4578 = vmatpush1.msra.mxu0 0.0
        %4579 = vmatprep.subr.mxu0 0.0
        %4580 = vmatpush1.msra.mxu0 0.0
        %4581 = vmatprep.subr.mxu0 0.0
        %4582 = vmatpush1.msra.mxu0 0.0
        %4583 = vmatprep.subr.mxu0 0.0
        %4584 = vmatpush1.msra.mxu0 0.0
        %4585 = vmatprep.subr.mxu0 0.0
        %4586 = vmatpush1.msra.mxu0 0.0
        %4587 = vmatprep.subr.mxu0 0.0
        %4588 = vmatpush1.msra.mxu0 0.0
        %4589 = vmatprep.subr.mxu0 0.0
        %4590 = vmatpush1.msra.mxu0 0.0
        %4591 = vmatprep.subr.mxu0 0.0
        %4592 = vmatpush1.msra.mxu0 %v4557
        %4593 = vmatprep.subr.mxu0 0.0
        %4594 = vmatpush2.msra.mxu0 0.0
        %4595 = vmatprep.subr.mxu0 0.0
        %4596 = vmatpush2.msra.mxu0 0.0
        %4597 = vmatprep.subr.mxu0 0.0
        %4598 = vmatpush2.msra.mxu0 0.0
        %4599 = vmatprep.subr.mxu0 0.0
        %4600 = vmatpush2.msra.mxu0 0.0
        %4601 = vmatprep.subr.mxu0 0.0
        %4602 = vmatpush2.msra.mxu0 0.0
        %4603 = vmatprep.subr.mxu0 0.0
        %4604 = vmatpush2.msra.mxu0 0.0
        %4605 = vmatprep.subr.mxu0 0.0
        %4606 = vmatpush2.msra.mxu0 0.0
        %4607 = vmatprep.subr.mxu0 0.0
        %4608 = vmatpush2.msra.mxu0 0.0
        %4609 = vmatprep.subr.mxu0 0.0
        %4610 = vmatpush2.msra.mxu0 0.0
        %4611 = vmatprep.subr.mxu0 0.0
        %4612 = vmatpush2.msra.mxu0 0.0
        %4613 = vmatprep.subr.mxu0 0.0
        %4614 = vmatpush2.msra.mxu0 0.0
        %4615 = vmatprep.subr.mxu0 0.0
        %4616 = vmatpush2.msra.mxu0 0.0
        %4617 = vmatprep.subr.mxu0 0.0
        %4618 = vmatpush2.msra.mxu0 0.0
        %4619 = vmatprep.subr.mxu0 0.0
        %4620 = vmatpush2.msra.mxu0 0.0
        %4621 = vmatprep.subr.mxu0 0.0
        %4622 = vmatpush2.msra.mxu0 0.0
        %4623 = vmatprep.subr.mxu0 0.0
        %4624 = vmatpush2.msra.mxu0 0.0
        %4625 = vmatprep.mubr.f32.mxu0 0.0
        %4626 = vmatmul.mubr.f32.gmra.mxu0 %v4559
        %v4627 = vpop.f32.mrf.mxu0
        %v4628 = vadd.f32 0.0, %v4627
        %v4629 = vpop.f32.mrf.mxu0
        %4630 = vdwg.mxu0
        %v4631 = vadd.f32 %v4145, %v4628
        %s4632 = scalar_lea.vmem %s6, 6
        %v4633 = vld [vmem:[%s4632] sm:$0x1]
        %v4635 = vlaneseq
        %v4636 = vshrl.u32 %v4635, 7
        %v4637 = vsub.s32 0, %v4636
        %v4638 = vrot.slane %v4633, %v4637
        %v4640 = vadd.f32 %v4631, %v4638
        %v4641 = vadd.f32 %v2686, %v4640
        %s4642 = scalar_lea.vmem %s6, 7
        %v4643 = vld [vmem:[%s4642] sm:$0x1]
        %s4644 = scalar_lea.vmem %s6, 8
        %v4645 = vld [vmem:[%s4644] sm:$0x1]
        %v4646 = vsel %vm422, %v4641, 0.0
        %4647 = vadd.xlane.f32.xlu0 %v4646
        %v4648 = vpop.xlane.xlu0 %4647
        %v4649 = vmul.f32 %v4648, %v2455
        %v4650 = vsub.f32 %v4641, %v4649
        %v4651 = vmul.f32 %v4650, %v4650
        %v4652 = vsel %vm422, %v4651, 0.0
        %4653 = vadd.xlane.f32.xlu0 %v4652
        %v4654 = vpop.xlane.xlu0 %4653
        %v4655 = vmul.f32 %v4654, %v2455
        %v4656 = vadd.f32 %v4655, 1e-05
        %v4657 = vrsqrt.pop %v4656
        %v4658 = vmul.f32 %v4650, %v4657
        %v4660 = vlaneseq
        %v4661 = vshrl.u32 %v4660, 7
        %v4662 = vsub.s32 0, %v4661
        %v4663 = vrot.slane %v4643, %v4662
        %v4665 = vmul.f32 %v4658, %v4663
        %v4667 = vlaneseq
        %v4668 = vshrl.u32 %v4667, 7
        %v4669 = vsub.s32 0, %v4668
        %v4670 = vrot.slane %v4645, %v4669
        %v4672 = vadd.f32 %v4665, %v4670
        %s4673 = scalar_lea.vmem %s7, 32
        %v4674 = vld [vmem:[%s4673] sm:$0xff]
        %v4675 = vld [vmem:[%s4673 + $0x8] sm:$0xff]
        %v4676 = vld [vmem:[%s4673 + $0x10] sm:$0xff]
        %v4677 = vld [vmem:[%s4673 + $0x18] sm:$0xff]
        %s4678 = scalar_lea.vmem %s8, 1
        %v4679 = vld [vmem:[%s4678] sm:$0x1]
        %v4681 = vlaneseq
        %v4682 = vshrl.u32 %v4681, 7
        %v4683 = vsub.s32 0, %v4682
        %v4684 = vrot.slane %v4679, %v4683
        %v4687 = vsel %vm422, %v4672, 0
        %4689 = vmatprep.subr.mxu0 0.0
        %4690 = vmatpush1.msra.mxu0 0.0
        %4691 = vmatprep.subr.mxu0 0.0
        %4692 = vmatpush1.msra.mxu0 0.0
        %4693 = vmatprep.subr.mxu0 0.0
        %4694 = vmatpush1.msra.mxu0 0.0
        %4695 = vmatprep.subr.mxu0 0.0
        %4696 = vmatpush1.msra.mxu0 0.0
        %4697 = vmatprep.subr.mxu0 0.0
        %4698 = vmatpush1.msra.mxu0 0.0
        %4699 = vmatprep.subr.mxu0 0.0
        %4700 = vmatpush1.msra.mxu0 0.0
        %4701 = vmatprep.subr.mxu0 0.0
        %4702 = vmatpush1.msra.mxu0 0.0
        %4703 = vmatprep.subr.mxu0 0.0
        %4704 = vmatpush1.msra.mxu0 0.0
        %4705 = vmatprep.subr.mxu0 0.0
        %4706 = vmatpush1.msra.mxu0 0.0
        %4707 = vmatprep.subr.mxu0 0.0
        %4708 = vmatpush1.msra.mxu0 0.0
        %4709 = vmatprep.subr.mxu0 0.0
        %4710 = vmatpush1.msra.mxu0 0.0
        %4711 = vmatprep.subr.mxu0 0.0
        %4712 = vmatpush1.msra.mxu0 0.0
        %4713 = vmatprep.subr.mxu0 0.0
        %4714 = vmatpush1.msra.mxu0 %v4677
        %4715 = vmatprep.subr.mxu0 0.0
        %4716 = vmatpush1.msra.mxu0 %v4676
        %4717 = vmatprep.subr.mxu0 0.0
        %4718 = vmatpush1.msra.mxu0 %v4675
        %4719 = vmatprep.subr.mxu0 0.0
        %4720 = vmatpush1.msra.mxu0 %v4674
        %4721 = vmatprep.subr.mxu0 0.0
        %4722 = vmatpush2.msra.mxu0 0.0
        %4723 = vmatprep.subr.mxu0 0.0
        %4724 = vmatpush2.msra.mxu0 0.0
        %4725 = vmatprep.subr.mxu0 0.0
        %4726 = vmatpush2.msra.mxu0 0.0
        %4727 = vmatprep.subr.mxu0 0.0
        %4728 = vmatpush2.msra.mxu0 0.0
        %4729 = vmatprep.subr.mxu0 0.0
        %4730 = vmatpush2.msra.mxu0 0.0
        %4731 = vmatprep.subr.mxu0 0.0
        %4732 = vmatpush2.msra.mxu0 0.0
        %4733 = vmatprep.subr.mxu0 0.0
        %4734 = vmatpush2.msra.mxu0 0.0
        %4735 = vmatprep.subr.mxu0 0.0
        %4736 = vmatpush2.msra.mxu0 0.0
        %4737 = vmatprep.subr.mxu0 0.0
        %4738 = vmatpush2.msra.mxu0 0.0
        %4739 = vmatprep.subr.mxu0 0.0
        %4740 = vmatpush2.msra.mxu0 0.0
        %4741 = vmatprep.subr.mxu0 0.0
        %4742 = vmatpush2.msra.mxu0 0.0
        %4743 = vmatprep.subr.mxu0 0.0
        %4744 = vmatpush2.msra.mxu0 0.0
        %4745 = vmatprep.subr.mxu0 0.0
        %4746 = vmatpush2.msra.mxu0 0.0
        %4747 = vmatprep.subr.mxu0 0.0
        %4748 = vmatpush2.msra.mxu0 0.0
        %4749 = vmatprep.subr.mxu0 0.0
        %4750 = vmatpush2.msra.mxu0 0.0
        %4751 = vmatprep.subr.mxu0 0.0
        %4752 = vmatpush2.msra.mxu0 0.0
        %4753 = vmatprep.mubr.f32.mxu0 0.0
        %4754 = vmatmul.mubr.f32.gmra.mxu0 %v4687
        %v4755 = vpop.f32.mrf.mxu0
        %v4756 = vadd.f32 %v4684, %v4755
        %v4757 = vpop.f32.mrf.mxu0
        %4758 = vdwg.mxu0
        %v4759 = vmax.f32 %v4756, 0.0
        %s4760 = scalar_lea.vmem %s9, 64
        %v4761 = vld [vmem:[%s4760] sm:$0xff]
        %v4762 = vld [vmem:[%s4760 + $0x8] sm:$0xff]
        %v4763 = vld [vmem:[%s4760 + $0x10] sm:$0xff]
        %v4764 = vld [vmem:[%s4760 + $0x18] sm:$0xff]
        %v4765 = vld [vmem:[%s4760 + $0x20] sm:$0xff]
        %v4766 = vld [vmem:[%s4760 + $0x28] sm:$0xff]
        %v4767 = vld [vmem:[%s4760 + $0x30] sm:$0xff]
        %v4768 = vld [vmem:[%s4760 + $0x38] sm:$0xff]
        %s4769 = scalar_lea.vmem %s6, 9
        %v4770 = vld [vmem:[%s4769] sm:$0x1]
        %v4772 = vlaneseq
        %v4773 = vshrl.u32 %v4772, 7
        %v4774 = vsub.s32 0, %v4773
        %v4775 = vrot.slane %v4770, %v4774
        %v4778 = vsel %vm2581, %v4759, 0
        %4780 = vmatprep.subr.mxu0 0.0
        %4781 = vmatpush1.msra.mxu0 0.0
        %4782 = vmatprep.subr.mxu0 0.0
        %4783 = vmatpush1.msra.mxu0 0.0
        %4784 = vmatprep.subr.mxu0 0.0
        %4785 = vmatpush1.msra.mxu0 0.0
        %4786 = vmatprep.subr.mxu0 0.0
        %4787 = vmatpush1.msra.mxu0 0.0
        %4788 = vmatprep.subr.mxu0 0.0
        %4789 = vmatpush1.msra.mxu0 0.0
        %4790 = vmatprep.subr.mxu0 0.0
        %4791 = vmatpush1.msra.mxu0 0.0
        %4792 = vmatprep.subr.mxu0 0.0
        %4793 = vmatpush1.msra.mxu0 0.0
        %4794 = vmatprep.subr.mxu0 0.0
        %4795 = vmatpush1.msra.mxu0 0.0
        %4796 = vmatprep.subr.mxu0 0.0
        %4797 = vmatpush1.msra.mxu0 %v4768
        %4798 = vmatprep.subr.mxu0 0.0
        %4799 = vmatpush1.msra.mxu0 %v4767
        %4800 = vmatprep.subr.mxu0 0.0
        %4801 = vmatpush1.msra.mxu0 %v4766
        %4802 = vmatprep.subr.mxu0 0.0
        %4803 = vmatpush1.msra.mxu0 %v4765
        %4804 = vmatprep.subr.mxu0 0.0
        %4805 = vmatpush1.msra.mxu0 %v4764
        %4806 = vmatprep.subr.mxu0 0.0
        %4807 = vmatpush1.msra.mxu0 %v4763
        %4808 = vmatprep.subr.mxu0 0.0
        %4809 = vmatpush1.msra.mxu0 %v4762
        %4810 = vmatprep.subr.mxu0 0.0
        %4811 = vmatpush1.msra.mxu0 %v4761
        %4812 = vmatprep.subr.mxu0 0.0
        %4813 = vmatpush2.msra.mxu0 0.0
        %4814 = vmatprep.subr.mxu0 0.0
        %4815 = vmatpush2.msra.mxu0 0.0
        %4816 = vmatprep.subr.mxu0 0.0
        %4817 = vmatpush2.msra.mxu0 0.0
        %4818 = vmatprep.subr.mxu0 0.0
        %4819 = vmatpush2.msra.mxu0 0.0
        %4820 = vmatprep.subr.mxu0 0.0
        %4821 = vmatpush2.msra.mxu0 0.0
        %4822 = vmatprep.subr.mxu0 0.0
        %4823 = vmatpush2.msra.mxu0 0.0
        %4824 = vmatprep.subr.mxu0 0.0
        %4825 = vmatpush2.msra.mxu0 0.0
        %4826 = vmatprep.subr.mxu0 0.0
        %4827 = vmatpush2.msra.mxu0 0.0
        %4828 = vmatprep.subr.mxu0 0.0
        %4829 = vmatpush2.msra.mxu0 0.0
        %4830 = vmatprep.subr.mxu0 0.0
        %4831 = vmatpush2.msra.mxu0 0.0
        %4832 = vmatprep.subr.mxu0 0.0
        %4833 = vmatpush2.msra.mxu0 0.0
        %4834 = vmatprep.subr.mxu0 0.0
        %4835 = vmatpush2.msra.mxu0 0.0
        %4836 = vmatprep.subr.mxu0 0.0
        %4837 = vmatpush2.msra.mxu0 0.0
        %4838 = vmatprep.subr.mxu0 0.0
        %4839 = vmatpush2.msra.mxu0 0.0
        %4840 = vmatprep.subr.mxu0 0.0
        %4841 = vmatpush2.msra.mxu0 0.0
        %4842 = vmatprep.subr.mxu0 0.0
        %4843 = vmatpush2.msra.mxu0 0.0
        %4844 = vmatprep.mubr.f32.mxu0 0.0
        %4845 = vmatmul.mubr.f32.gmra.mxu0 %v4778
        %v4846 = vpop.f32.mrf.mxu0
        %v4847 = vadd.f32 %v4775, %v4846
        %v4848 = vpop.f32.mrf.mxu0
        %4849 = vdwg.mxu0
        %v4850 = vadd.f32 %v4672, %v4847
        %s4851 = scalar_lea.vmem %s6, 10
        %v4852 = vld [vmem:[%s4851] sm:$0x1]
        %s4853 = scalar_lea.vmem %s6, 11
        %v4854 = vld [vmem:[%s4853] sm:$0x1]
        %v4855 = vsel %vm422, %v4850, 0.0
        %4856 = vadd.xlane.f32.xlu0 %v4855
        %v4857 = vpop.xlane.xlu0 %4856
        %v4858 = vmul.f32 %v4857, %v2455
        %v4859 = vsub.f32 %v4850, %v4858
        %v4860 = vmul.f32 %v4859, %v4859
        %v4861 = vsel %vm422, %v4860, 0.0
        %4862 = vadd.xlane.f32.xlu0 %v4861
        %v4863 = vpop.xlane.xlu0 %4862
        %v4864 = vmul.f32 %v4863, %v2455
        %v4865 = vadd.f32 %v4864, 1e-05
        %v4866 = vrsqrt.pop %v4865
        %v4867 = vmul.f32 %v4859, %v4866
        %v4869 = vlaneseq
        %v4870 = vshrl.u32 %v4869, 7
        %v4871 = vsub.s32 0, %v4870
        %v4872 = vrot.slane %v4852, %v4871
        %v4874 = vmul.f32 %v4867, %v4872
        %v4876 = vlaneseq
        %v4877 = vshrl.u32 %v4876, 7
        %v4878 = vsub.s32 0, %v4877
        %v4879 = vrot.slane %v4854, %v4878
        %v4881 = vadd.f32 %v4874, %v4879
        %v4882 = vsel %vm422, %v4881, 0.0
        %v4883 = vrot.slane %v4882, 4
        %v4884 = vadd.f32 %v4882, %v4883
        %v4885 = vrot.slane %v4884, 2
        %v4886 = vadd.f32 %v4884, %v4885
        %v4887 = vrot.slane %v4886, 1
        %v4888 = vadd.f32 %v4886, %v4887
        %v4889 = vmul.f32 %v4888, 0.125
        %v4890 = vld [vmem:[%s10] sm:$0xff]
        %v4891 = vld [vmem:[%s10 + $0x8] sm:$0xff]
        %v4892 = vld [vmem:[%s10 + $0x10] sm:$0xff]
        %v4893 = vld [vmem:[%s10 + $0x18] sm:$0xff]
        %v4894 = vld [vmem:[%s11] sm:$0x1]
        %v4896 = vsel %vm422, %v4889, 0
        %4898 = vmatprep.subr.mxu0 0.0
        %4899 = vmatpush1.msra.mxu0 0.0
        %4900 = vmatprep.subr.mxu0 0.0
        %4901 = vmatpush1.msra.mxu0 0.0
        %4902 = vmatprep.subr.mxu0 0.0
        %4903 = vmatpush1.msra.mxu0 0.0
        %4904 = vmatprep.subr.mxu0 0.0
        %4905 = vmatpush1.msra.mxu0 0.0
        %4906 = vmatprep.subr.mxu0 0.0
        %4907 = vmatpush1.msra.mxu0 0.0
        %4908 = vmatprep.subr.mxu0 0.0
        %4909 = vmatpush1.msra.mxu0 0.0
        %4910 = vmatprep.subr.mxu0 0.0
        %4911 = vmatpush1.msra.mxu0 0.0
        %4912 = vmatprep.subr.mxu0 0.0
        %4913 = vmatpush1.msra.mxu0 0.0
        %4914 = vmatprep.subr.mxu0 0.0
        %4915 = vmatpush1.msra.mxu0 0.0
        %4916 = vmatprep.subr.mxu0 0.0
        %4917 = vmatpush1.msra.mxu0 0.0
        %4918 = vmatprep.subr.mxu0 0.0
        %4919 = vmatpush1.msra.mxu0 0.0
        %4920 = vmatprep.subr.mxu0 0.0
        %4921 = vmatpush1.msra.mxu0 0.0
        %4922 = vmatprep.subr.mxu0 0.0
        %4923 = vmatpush1.msra.mxu0 %v4893
        %4924 = vmatprep.subr.mxu0 0.0
        %4925 = vmatpush1.msra.mxu0 %v4892
        %4926 = vmatprep.subr.mxu0 0.0
        %4927 = vmatpush1.msra.mxu0 %v4891
        %4928 = vmatprep.subr.mxu0 0.0
        %4929 = vmatpush1.msra.mxu0 %v4890
        %4930 = vmatprep.subr.mxu0 0.0
        %4931 = vmatpush2.msra.mxu0 0.0
        %4932 = vmatprep.subr.mxu0 0.0
        %4933 = vmatpush2.msra.mxu0 0.0
        %4934 = vmatprep.subr.mxu0 0.0
        %4935 = vmatpush2.msra.mxu0 0.0
        %4936 = vmatprep.subr.mxu0 0.0
        %4937 = vmatpush2.msra.mxu0 0.0
        %4938 = vmatprep.subr.mxu0 0.0
        %4939 = vmatpush2.msra.mxu0 0.0
        %4940 = vmatprep.subr.mxu0 0.0
        %4941 = vmatpush2.msra.mxu0 0.0
        %4942 = vmatprep.subr.mxu0 0.0
        %4943 = vmatpush2.msra.mxu0 0.0
        %4944 = vmatprep.subr.mxu0 0.0
        %4945 = vmatpush2.msra.mxu0 0.0
        %4946 = vmatprep.subr.mxu0 0.0
        %4947 = vmatpush2.msra.mxu0 0.0
        %4948 = vmatprep.subr.mxu0 0.0
        %4949 = vmatpush2.msra.mxu0 0.0
        %4950 = vmatprep.subr.mxu0 0.0
        %4951 = vmatpush2.msra.mxu0 0.0
        %4952 = vmatprep.subr.mxu0 0.0
        %4953 = vmatpush2.msra.mxu0 0.0
        %4954 = vmatprep.subr.mxu0 0.0
        %4955 = vmatpush2.msra.mxu0 0.0
        %4956 = vmatprep.subr.mxu0 0.0
        %4957 = vmatpush2.msra.mxu0 0.0
        %4958 = vmatprep.subr.mxu0 0.0
        %4959 = vmatpush2.msra.mxu0 0.0
        %4960 = vmatprep.subr.mxu0 0.0
        %4961 = vmatpush2.msra.mxu0 0.0
        %4962 = vmatprep.mubr.f32.mxu0 0.0
        %4963 = vmatmul.mubr.f32.gmra.mxu0 %v4896
        %v4964 = vpop.f32.mrf.mxu0
        %v4965 = vadd.f32 %v4894, %v4964
        %v4966 = vpop.f32.mrf.mxu0
        %4967 = vdwg.mxu0
        %vm4968 = vcmask 24576
        %4969 = vst.msk [vmem:[%s403] sm:$0x1] %vm4968, %v4965
        %s4970 = sand.u32 %s291, 1
        %s4971 = scalar_lea.sflag [#allocation3], %s4970
        %s4972 = sand.u32 %s291, 1
        %s4973 = scalar_lea.vmem [#allocation2], %s4972
        // Predicated region
        $region69: #{tpu_custom_call.1} parent=67 // pred_check
          %p4974 = pneg %p301
        $region70: #{tpu_custom_call.1} parent=67 // pred_check_branch
          %4976 = sbr.rel (%p4974) target = $region72
        $region71: #{tpu_custom_call.1} parent=67 // pred_region
          %s4978 = ssub.s32 16, 16
          %4979 = vsyncadd %s4971, %s4978
          %s4980 = smul.addr %s26, 16
          %s4981 = scalar_lea.hbm %s12, %s4980
          %s4983 = sshll.u32 %s4973, 4
          %s4984 = int_to_ptr.vmem [resolvable:$true] %s4983
          %4986 = dma.vmem_to_hbm [thread:$0]  %s4984, 16, %s4981, %s4971
        $region72: #{tpu_custom_call.1} parent=67 // pred_fallthru
          _
      $region68: #{tpu_custom_call.1} parent=5 // pred_fallthru
        _
      %p4987 = scmp.le.s32.totalorder 2, %s21
      // Predicated region
      $region73: #{tpu_custom_call.1} parent=5 // pred_check
        %p4988 = pneg %p4987
      $region74: #{tpu_custom_call.1} parent=5 // pred_check_branch
        %4990 = sbr.rel (%p4988) target = $region76
      $region75: #{tpu_custom_call.1} parent=5 // pred_region
        %s4991 = ssub.s32 %s21, 2
        // Predicated region
        $region77: #{tpu_custom_call.1} parent=75 // pred_check
          %p4992 = pneg %p307
        $region78: #{tpu_custom_call.1} parent=75 // pred_check_branch
          %4994 = sbr.rel (%p4992) target = $region80
        $region79: #{tpu_custom_call.1} parent=75 // pred_region
          %s4995 = sand.u32 %s292, 1
          %s4996 = scalar_lea.sflag [#allocation3], %s4995
          %s4997 = sand.u32 %s292, 1
          %s4998 = scalar_lea.vmem [#allocation2], %s4997
          %4999 = dma.done %s4996, 16
        $region80: #{tpu_custom_call.1} parent=75 // pred_fallthru
          _
      $region76: #{tpu_custom_call.1} parent=5 // pred_fallthru
        _
    $region6: #{tpu_custom_call.1} parent=1 // loop_footer
      %s25 = sadd.s32 1, %s21
    $region7: #{tpu_custom_call.1} parent=1 // loop_footer_branch
      %20 = sbr.rel target = $region3
    $region8: #{tpu_custom_call.1} parent=1 // loop_exit
      _
    %5000 = vsyncpa [#allocation3], 1
    %s5001 = scalar_lea.sflag [#allocation3], 1
    %5002 = vsyncpa %s5001, 1

</llo_original>
